<compile_context>
chip_gen: v5e
topology: v5e:2x2
jax: 0.10.0
libtpu: 0.0.40
codegen_flags: <defaults>
</compile_context>

<pallas_src>
import numpy as np
import jax
import jax.numpy as jnp
from jax.experimental import pallas as pl
from jax.experimental.pallas import tpu as pltpu

LATENT = 32      # hparams.latent_size
OUT_PAD = 128    # padded lane width of the final layer (real width = 100)


# ----------------------------------------------------------------------------
# Parameter setup (glue, plain numpy/JAX)
# ----------------------------------------------------------------------------
def convtranspose2d_as_matrix(w, b, h_in, w_in, stride, padding):
    """Lower torch.nn.ConvTranspose2d (dilation=1, groups=1, output_padding=0)
    to a dense matrix M of shape (Cin*Hin*Win, Cout*Hout*Wout) plus a flat
    bias, such that  y_flat = x_flat @ M + bias  matches PyTorch exactly.

    w: (Cin, Cout, kH, kW) numpy, b: (Cout,) numpy.
    """
    c_in, c_out, kh, kw = w.shape
    h_out = (h_in - 1) * stride - 2 * padding + kh
    w_out = (w_in - 1) * stride - 2 * padding + kw
    M = np.zeros((c_in * h_in * w_in, c_out * h_out * w_out), np.float32)
    for ci in range(c_in):
        for ih in range(h_in):
            for iw in range(w_in):
                row = (ci * h_in + ih) * w_in + iw
                for co in range(c_out):
                    for dkh in range(kh):
                        oh = ih * stride - padding + dkh
                        if oh < 0 or oh >= h_out:
                            continue
                        for dkw in range(kw):
                            ow = iw * stride - padding + dkw
                            if ow < 0 or ow >= w_out:
                                continue
                            col = (co * h_out + oh) * w_out + ow
                            M[row, col] += float(w[ci, co, dkh, dkw])
    bias = np.repeat(np.asarray(b, np.float32), h_out * w_out)
    return M, bias, (h_out, w_out)


def _pad_to(a, shape):
    """Zero-pad a numpy array up to `shape`."""
    out = np.zeros(shape, np.float32)
    out[tuple(slice(0, s) for s in a.shape)] = a
    return out


def make_params(key):
    """Deterministic synthetic weights (PyTorch-like fan-in scaling).

    Matmul weights are stored bf16 (lane-padded to multiples of 128);
    biases stay f32 with shape (1, N).
    """
    ks = jax.random.split(key, 10)

    def rnd(k, shape, fan_in):
        return (jax.random.uniform(k, shape, jnp.float32, -1.0, 1.0)
                / np.sqrt(fan_in))

    # Linear(latent, 1024), Linear(1024, 512) — stored transposed (in, out)
    w1 = np.asarray(rnd(ks[0], (LATENT, 1024), LATENT))
    b1 = np.asarray(rnd(ks[1], (1024,), LATENT))
    w2 = np.asarray(rnd(ks[2], (1024, 512), 1024))
    b2 = np.asarray(rnd(ks[3], (512,), 1024))

    # ConvTranspose2d weights in PyTorch layout (Cin, Cout, kH, kW)
    cw3 = np.asarray(rnd(ks[4], (32, 16, 2, 2), 32 * 2 * 2))
    cb3 = np.asarray(rnd(ks[5], (16,), 32 * 2 * 2))
    cw4 = np.asarray(rnd(ks[6], (16, 8, 2, 2), 16 * 2 * 2))
    cb4 = np.asarray(rnd(ks[7], (8,), 16 * 2 * 2))
    cw5 = np.asarray(rnd(ks[8], (8, 1, 3, 3), 8 * 3 * 3))
    cb5 = np.asarray(rnd(ks[9], (1,), 8 * 3 * 3))

    m3, c3, hw3 = convtranspose2d_as_matrix(cw3, cb3, 4, 4, stride=2, padding=1)
    m4, c4, hw4 = convtranspose2d_as_matrix(cw4, cb4, *hw3, stride=2, padding=1)
    m5, c5, hw5 = convtranspose2d_as_matrix(cw5, cb5, *hw4, stride=1, padding=1)
    assert hw5 == (10, 10)              # final reshape to (B, 1, 100)
    assert m3.shape == (512, 576) and m4.shape == (576, 800)
    assert m5.shape == (800, 100)

    # Lane-dense padding (zero rows/cols -> exact zeros propagate through ReLU)
    m3p, c3p = _pad_to(m3, (512, 640)), _pad_to(c3, (640,))
    m4p, c4p = _pad_to(m4, (640, 896)), _pad_to(c4, (896,))
    m5p, c5p = _pad_to(m5, (896, OUT_PAD)), _pad_to(c5, (OUT_PAD,))

    bf16 = jnp.bfloat16
    params = (
        jnp.asarray(w1, dtype=bf16),  jnp.asarray(b1[None, :], jnp.float32),
        jnp.asarray(w2, dtype=bf16),  jnp.asarray(b2[None, :], jnp.float32),
        jnp.asarray(m3p, dtype=bf16), jnp.asarray(c3p[None, :], jnp.float32),
        jnp.asarray(m4p, dtype=bf16), jnp.asarray(c4p[None, :], jnp.float32),
        jnp.asarray(m5p, dtype=bf16), jnp.asarray(c5p[None, :], jnp.float32),
    )
    return params


# ----------------------------------------------------------------------------
# Pallas kernel: whole decoder as one fused matmul/ReLU chain in VMEM
# ----------------------------------------------------------------------------
def _decoder_kernel(x_ref, w1, b1, w2, b2, m3, c3, m4, c4, m5, c5, o_ref):
    def mm(h, w_ref, b_ref):
        # bf16 x bf16 on the MXU, f32 accumulation, f32 bias add.
        return jnp.dot(h.astype(jnp.bfloat16), w_ref[...],
                       preferred_element_type=jnp.float32) + b_ref[...]

    h = jnp.maximum(mm(x_ref[...], w1, b1), 0.0)   # Linear + ReLU
    h = jnp.maximum(mm(h, w2, b2), 0.0)            # Linear + ReLU
    # (B,512) is the channel-major flat view of (B,32,4,4): ConvT as matmul
    h = jnp.maximum(mm(h, m3, c3), 0.0)            # ConvT(32->16) + ReLU
    h = jnp.maximum(mm(h, m4, c4), 0.0)            # ConvT(16->8)  + ReLU
    o_ref[...] = mm(h, m5, c5)                     # ConvT(8->1), no ReLU


def decoder_forward(x, params):
    """x: (B, LATENT) -> (B, 1, 100) f32 (matches Decoderv3.forward)."""
    B = x.shape[0]
    # Kernel math is bf16 anyway; halve the (tiny) activation DMA.
    x = x.astype(jnp.bfloat16)

    # Batch-tile selection (see header):
    #   B <= 256      : single tile; the call is weight-DMA bound, splitting
    #                   would duplicate the weight DMA per v7x TensorCore.
    #   256 < B <= 512: TB=256 -> nb=2 (even), one tile per v7x TensorCore.
    #   B > 512       : TB=512 amortizes per-grid-step pipeline overhead.
    if B <= 256:
        TB = B
    elif B <= 512:
        TB = 256
    else:
        TB = 512
    nb = pl.cdiv(B, TB)

    weights = tuple(params)
    in_specs = [pl.BlockSpec((TB, LATENT), lambda i: (i, 0))]
    # Weights/biases: constant block index -> fetched once and VMEM-resident
    # across grid steps; Buffered(1) drops the useless second pipeline buffer
    # (halves the weight VMEM footprint).
    in_specs += [
        pl.BlockSpec(w.shape, lambda i: (0, 0), pipeline_mode=pl.Buffered(1))
        for w in weights
    ]

    out = pl.pallas_call(
        _decoder_kernel,
        grid=(nb,),
        in_specs=in_specs,
        out_specs=pl.BlockSpec((TB, OUT_PAD), lambda i: (i, 0)),
        out_shape=jax.ShapeDtypeStruct((B, OUT_PAD), jnp.float32),
        compiler_params=pltpu.CompilerParams(
            dimension_semantics=("parallel",),
            vmem_limit_bytes=32 * 1024 * 1024,
        ),
    )(x, *weights)
    return out[:, :100].reshape(B, 1, 100)


# ----------------------------------------------------------------------------
# Plain-JAX references for correctness checks
# ----------------------------------------------------------------------------
def reference_forward_bf16(x, params):
    """Mirrors the kernel math exactly (bf16 operands, f32 accumulation)."""
    w1, b1, w2, b2, m3, c3, m4, c4, m5, c5 = params

    def mm(h, w, b):
        return jnp.dot(h.astype(jnp.bfloat16), w,
                       preferred_element_type=jnp.float32) + b

    h = jnp.maximum(mm(x, w1, b1), 0.0)
    h = jnp.maximum(mm(h, w2, b2), 0.0)
    h = jnp.maximum(mm(h, m3, c3), 0.0)
    h = jnp.maximum(mm(h, m4, c4), 0.0)
    h = mm(h, m5, c5)
    return h[:, :100].reshape(x.shape[0], 1, 100)


def reference_forward_f32(x, params):
    """Full-f32 math on the same (bf16-stored) weights."""
    w1, b1, w2, b2, m3, c3, m4, c4, m5, c5 = params
    f32 = lambda a: a.astype(jnp.float32)
    h = jnp.maximum(x @ f32(w1) + b1, 0.0)
    h = jnp.maximum(h @ f32(w2) + b2, 0.0)
    h = jnp.maximum(h @ f32(m3) + c3, 0.0)
    h = jnp.maximum(h @ f32(m4) + c4, 0.0)
    h = h @ f32(m5) + c5
    return h[:, :100].reshape(x.shape[0], 1, 100)


if __name__ == "__main__":
    key = jax.random.PRNGKey(0)
    k_param, k_x = jax.random.split(key)
    params = make_params(k_param)

    B = 2
    x = jax.random.normal(k_x, (B, LATENT), jnp.float32)

    y = jax.block_until_ready(decoder_forward(x, params))
    assert y.shape == (B, 1, 100) and y.dtype == jnp.float32

    # Tight check against a reference that mirrors the kernel math exactly.
    y_bf = jax.block_until_ready(reference_forward_bf16(x, params))
    np.testing.assert_allclose(np.asarray(y), np.asarray(y_bf),
                               rtol=2e-3, atol=2e-3)

    # Looser check against full-f32 math (bounds the bf16 rounding error).
    y_f32 = jax.block_until_ready(reference_forward_f32(x, params))
    np.testing.assert_allclose(np.asarray(y), np.asarray(y_f32),
                               rtol=3e-2, atol=3e-2)

    assert np.all(np.isfinite(np.asarray(y)))
    print("KERNEL_OK")
</pallas_src>

<mosaic_0001>
module attributes {stable_mosaic.version = 11 : i64} {
  func.func @_decoder_kernel(%arg0: i32, %arg1: memref<2x32xbf16, #tpu.memory_space<vmem>>, %arg2: memref<32x1024xbf16, #tpu.memory_space<vmem>>, %arg3: memref<1x1024xf32, #tpu.memory_space<vmem>>, %arg4: memref<1024x512xbf16, #tpu.memory_space<vmem>>, %arg5: memref<1x512xf32, #tpu.memory_space<vmem>>, %arg6: memref<512x640xbf16, #tpu.memory_space<vmem>>, %arg7: memref<1x640xf32, #tpu.memory_space<vmem>>, %arg8: memref<640x896xbf16, #tpu.memory_space<vmem>>, %arg9: memref<1x896xf32, #tpu.memory_space<vmem>>, %arg10: memref<896x128xbf16, #tpu.memory_space<vmem>>, %arg11: memref<1x128xf32, #tpu.memory_space<vmem>>, %arg12: memref<2x128xf32, #tpu.memory_space<vmem>>) attributes {dimension_semantics = [#tpu.dimension_semantics<parallel>], iteration_bounds = array<i64: 1>, scalar_prefetch = 0 : i64, scratch_operands = 0 : i64, tpu.core_type = #tpu.core_type<tc>, window_params = [{transform_indices = @transform_0, window_bounds = array<i64: 2, 32>}, {pipeline_mode = #tpu.pipeline_mode<synchronous>, transform_indices = @transform_1, window_bounds = array<i64: 32, 1024>}, {pipeline_mode = #tpu.pipeline_mode<synchronous>, transform_indices = @transform_2, window_bounds = array<i64: 1, 1024>}, {pipeline_mode = #tpu.pipeline_mode<synchronous>, transform_indices = @transform_3, window_bounds = array<i64: 1024, 512>}, {pipeline_mode = #tpu.pipeline_mode<synchronous>, transform_indices = @transform_4, window_bounds = array<i64: 1, 512>}, {pipeline_mode = #tpu.pipeline_mode<synchronous>, transform_indices = @transform_5, window_bounds = array<i64: 512, 640>}, {pipeline_mode = #tpu.pipeline_mode<synchronous>, transform_indices = @transform_6, window_bounds = array<i64: 1, 640>}, {pipeline_mode = #tpu.pipeline_mode<synchronous>, transform_indices = @transform_7, window_bounds = array<i64: 640, 896>}, {pipeline_mode = #tpu.pipeline_mode<synchronous>, transform_indices = @transform_8, window_bounds = array<i64: 1, 896>}, {pipeline_mode = #tpu.pipeline_mode<synchronous>, transform_indices = @transform_9, window_bounds = array<i64: 896, 128>}, {pipeline_mode = #tpu.pipeline_mode<synchronous>, transform_indices = @transform_10, window_bounds = array<i64: 1, 128>}, {transform_indices = @transform_11, window_bounds = array<i64: 2, 128>}]} {
    %c0 = arith.constant 0 : index
    %c0_0 = arith.constant 0 : index
    %0 = vector.load %arg1[%c0, %c0_0] : memref<2x32xbf16, #tpu.memory_space<vmem>>, vector<2x32xbf16>
    %c0_1 = arith.constant 0 : index
    %c0_2 = arith.constant 0 : index
    %1 = vector.load %arg2[%c0_1, %c0_2] : memref<32x1024xbf16, #tpu.memory_space<vmem>>, vector<32x1024xbf16>
    %cst = arith.constant dense<0.000000e+00> : vector<2x1024xf32>
    %2 = tpu.matmul %0, %1, %cst {dimension_numbers = #tpu.dot_dimension_numbers<[1], [0], [0], [1], [0, 0, 1, 1], [], []>} : vector<2x32xbf16>, vector<32x1024xbf16>, vector<2x1024xf32> -> vector<2x1024xf32>
    %c0_3 = arith.constant 0 : index
    %c0_4 = arith.constant 0 : index
    %3 = vector.load %arg3[%c0_3, %c0_4] : memref<1x1024xf32, #tpu.memory_space<vmem>>, vector<1x1024xf32>
    %4 = vector.broadcast %3 : vector<1x1024xf32> to vector<2x1024xf32>
    %5 = arith.addf %2, %4 : vector<2x1024xf32>
    %cst_5 = arith.constant 0.000000e+00 : f32
    %6 = vector.broadcast %cst_5 : f32 to vector<2x1024xf32>
    %7 = arith.maximumf %5, %6 : vector<2x1024xf32>
    %8 = arith.truncf %7 : vector<2x1024xf32> to vector<2x1024xbf16>
    %c0_6 = arith.constant 0 : index
    %c0_7 = arith.constant 0 : index
    %9 = vector.load %arg4[%c0_6, %c0_7] : memref<1024x512xbf16, #tpu.memory_space<vmem>>, vector<1024x512xbf16>
    %cst_8 = arith.constant dense<0.000000e+00> : vector<2x512xf32>
    %10 = tpu.matmul %8, %9, %cst_8 {dimension_numbers = #tpu.dot_dimension_numbers<[1], [0], [0], [1], [0, 0, 1, 1], [], []>} : vector<2x1024xbf16>, vector<1024x512xbf16>, vector<2x512xf32> -> vector<2x512xf32>
    %c0_9 = arith.constant 0 : index
    %c0_10 = arith.constant 0 : index
    %11 = vector.load %arg5[%c0_9, %c0_10] : memref<1x512xf32, #tpu.memory_space<vmem>>, vector<1x512xf32>
    %12 = vector.broadcast %11 : vector<1x512xf32> to vector<2x512xf32>
    %13 = arith.addf %10, %12 : vector<2x512xf32>
    %cst_11 = arith.constant 0.000000e+00 : f32
    %14 = vector.broadcast %cst_11 : f32 to vector<2x512xf32>
    %15 = arith.maximumf %13, %14 : vector<2x512xf32>
    %16 = arith.truncf %15 : vector<2x512xf32> to vector<2x512xbf16>
    %c0_12 = arith.constant 0 : index
    %c0_13 = arith.constant 0 : index
    %17 = vector.load %arg6[%c0_12, %c0_13] : memref<512x640xbf16, #tpu.memory_space<vmem>>, vector<512x640xbf16>
    %cst_14 = arith.constant dense<0.000000e+00> : vector<2x640xf32>
    %18 = tpu.matmul %16, %17, %cst_14 {dimension_numbers = #tpu.dot_dimension_numbers<[1], [0], [0], [1], [0, 0, 1, 1], [], []>} : vector<2x512xbf16>, vector<512x640xbf16>, vector<2x640xf32> -> vector<2x640xf32>
    %c0_15 = arith.constant 0 : index
    %c0_16 = arith.constant 0 : index
    %19 = vector.load %arg7[%c0_15, %c0_16] : memref<1x640xf32, #tpu.memory_space<vmem>>, vector<1x640xf32>
    %20 = vector.broadcast %19 : vector<1x640xf32> to vector<2x640xf32>
    %21 = arith.addf %18, %20 : vector<2x640xf32>
    %cst_17 = arith.constant 0.000000e+00 : f32
    %22 = vector.broadcast %cst_17 : f32 to vector<2x640xf32>
    %23 = arith.maximumf %21, %22 : vector<2x640xf32>
    %24 = arith.truncf %23 : vector<2x640xf32> to vector<2x640xbf16>
    %c0_18 = arith.constant 0 : index
    %c0_19 = arith.constant 0 : index
    %25 = vector.load %arg8[%c0_18, %c0_19] : memref<640x896xbf16, #tpu.memory_space<vmem>>, vector<640x896xbf16>
    %cst_20 = arith.constant dense<0.000000e+00> : vector<2x896xf32>
    %26 = tpu.matmul %24, %25, %cst_20 {dimension_numbers = #tpu.dot_dimension_numbers<[1], [0], [0], [1], [0, 0, 1, 1], [], []>} : vector<2x640xbf16>, vector<640x896xbf16>, vector<2x896xf32> -> vector<2x896xf32>
    %c0_21 = arith.constant 0 : index
    %c0_22 = arith.constant 0 : index
    %27 = vector.load %arg9[%c0_21, %c0_22] : memref<1x896xf32, #tpu.memory_space<vmem>>, vector<1x896xf32>
    %28 = vector.broadcast %27 : vector<1x896xf32> to vector<2x896xf32>
    %29 = arith.addf %26, %28 : vector<2x896xf32>
    %cst_23 = arith.constant 0.000000e+00 : f32
    %30 = vector.broadcast %cst_23 : f32 to vector<2x896xf32>
    %31 = arith.maximumf %29, %30 : vector<2x896xf32>
    %32 = arith.truncf %31 : vector<2x896xf32> to vector<2x896xbf16>
    %c0_24 = arith.constant 0 : index
    %c0_25 = arith.constant 0 : index
    %33 = vector.load %arg10[%c0_24, %c0_25] : memref<896x128xbf16, #tpu.memory_space<vmem>>, vector<896x128xbf16>
    %cst_26 = arith.constant dense<0.000000e+00> : vector<2x128xf32>
    %34 = tpu.matmul %32, %33, %cst_26 {dimension_numbers = #tpu.dot_dimension_numbers<[1], [0], [0], [1], [0, 0, 1, 1], [], []>} : vector<2x896xbf16>, vector<896x128xbf16>, vector<2x128xf32> -> vector<2x128xf32>
    %c0_27 = arith.constant 0 : index
    %c0_28 = arith.constant 0 : index
    %35 = vector.load %arg11[%c0_27, %c0_28] : memref<1x128xf32, #tpu.memory_space<vmem>>, vector<1x128xf32>
    %36 = vector.broadcast %35 : vector<1x128xf32> to vector<2x128xf32>
    %37 = arith.addf %34, %36 : vector<2x128xf32>
    %c0_29 = arith.constant 0 : index
    %c0_30 = arith.constant 0 : index
    %38 = vector.load %arg12[%c0_29, %c0_30] : memref<2x128xf32, #tpu.memory_space<vmem>>, vector<2x128xf32>
    tpu.vector_store %arg12[%c0_29, %c0_30], %37 {strides = array<i32>} : memref<2x128xf32, #tpu.memory_space<vmem>>, vector<2x128xf32>,
    return
  }
  func.func @transform_0(%arg0: i32) -> (i32, i32) {
    %c0_i32 = arith.constant 0 : i32
    %c0_i32_0 = arith.constant 0 : i32
    return %arg0, %c0_i32 : i32, i32
  }
  func.func @transform_1(%arg0: i32) -> (i32, i32) {
    %c0_i32 = arith.constant 0 : i32
    %c0_i32_0 = arith.constant 0 : i32
    %c0_i32_1 = arith.constant 0 : i32
    return %c0_i32, %c0_i32_0 : i32, i32
  }
  func.func @transform_2(%arg0: i32) -> (i32, i32) {
    %c0_i32 = arith.constant 0 : i32
    %c0_i32_0 = arith.constant 0 : i32
    %c0_i32_1 = arith.constant 0 : i32
    return %c0_i32, %c0_i32_0 : i32, i32
  }
  func.func @transform_3(%arg0: i32) -> (i32, i32) {
    %c0_i32 = arith.constant 0 : i32
    %c0_i32_0 = arith.constant 0 : i32
    %c0_i32_1 = arith.constant 0 : i32
    return %c0_i32, %c0_i32_0 : i32, i32
  }
  func.func @transform_4(%arg0: i32) -> (i32, i32) {
    %c0_i32 = arith.constant 0 : i32
    %c0_i32_0 = arith.constant 0 : i32
    %c0_i32_1 = arith.constant 0 : i32
    return %c0_i32, %c0_i32_0 : i32, i32
  }
  func.func @transform_5(%arg0: i32) -> (i32, i32) {
    %c0_i32 = arith.constant 0 : i32
    %c0_i32_0 = arith.constant 0 : i32
    %c0_i32_1 = arith.constant 0 : i32
    return %c0_i32, %c0_i32_0 : i32, i32
  }
  func.func @transform_6(%arg0: i32) -> (i32, i32) {
    %c0_i32 = arith.constant 0 : i32
    %c0_i32_0 = arith.constant 0 : i32
    %c0_i32_1 = arith.constant 0 : i32
    return %c0_i32, %c0_i32_0 : i32, i32
  }
  func.func @transform_7(%arg0: i32) -> (i32, i32) {
    %c0_i32 = arith.constant 0 : i32
    %c0_i32_0 = arith.constant 0 : i32
    %c0_i32_1 = arith.constant 0 : i32
    return %c0_i32, %c0_i32_0 : i32, i32
  }
  func.func @transform_8(%arg0: i32) -> (i32, i32) {
    %c0_i32 = arith.constant 0 : i32
    %c0_i32_0 = arith.constant 0 : i32
    %c0_i32_1 = arith.constant 0 : i32
    return %c0_i32, %c0_i32_0 : i32, i32
  }
  func.func @transform_9(%arg0: i32) -> (i32, i32) {
    %c0_i32 = arith.constant 0 : i32
    %c0_i32_0 = arith.constant 0 : i32
    %c0_i32_1 = arith.constant 0 : i32
    return %c0_i32, %c0_i32_0 : i32, i32
  }
  func.func @transform_10(%arg0: i32) -> (i32, i32) {
    %c0_i32 = arith.constant 0 : i32
    %c0_i32_0 = arith.constant 0 : i32
    %c0_i32_1 = arith.constant 0 : i32
    return %c0_i32, %c0_i32_0 : i32, i32
  }
  func.func @transform_11(%arg0: i32) -> (i32, i32) {
    %c0_i32 = arith.constant 0 : i32
    %c0_i32_0 = arith.constant 0 : i32
    return %arg0, %c0_i32 : i32, i32
  }
}

</mosaic_0001>

<llo_original>
// kernel: tpu_custom_call.1
$region0: #{tpu_custom_call.1}
  #allocation0 [shape = 'u32[]', space=smem, size = 0x4, offset = 0x4, fixed_abs, tag = 'smem constant byte address 0x4 - core index']
  #allocation1 [shape = 'u32[72,128]{1,0:T(1,128)}', space=vmem, size = 0x9000, scoped, tag = 'internal scratch']
  %s0 = inlined_call_operand.hbm [shape: bf16[2,32], index: 0, kind: input, shape index: {}]
  %s1 = inlined_call_operand.hbm [shape: bf16[32,1024], index: 1, kind: input, shape index: {}]
  %s2 = inlined_call_operand.hbm [shape: f32[1,1024], index: 2, kind: input, shape index: {}]
  %s3 = inlined_call_operand.hbm [shape: bf16[1024,512], index: 3, kind: input, shape index: {}]
  %s4 = inlined_call_operand.hbm [shape: f32[1,512], index: 4, kind: input, shape index: {}]
  %s5 = inlined_call_operand.hbm [shape: bf16[512,640], index: 5, kind: input, shape index: {}]
  %s6 = inlined_call_operand.hbm [shape: f32[1,640], index: 6, kind: input, shape index: {}]
  %s7 = inlined_call_operand.hbm [shape: bf16[640,896], index: 7, kind: input, shape index: {}]
  %s8 = inlined_call_operand.hbm [shape: f32[1,896], index: 8, kind: input, shape index: {}]
  %s9 = inlined_call_operand.hbm [shape: bf16[896,128], index: 9, kind: input, shape index: {}]
  %s10 = inlined_call_operand.hbm [shape: f32[1,128], index: 10, kind: input, shape index: {}]
  %s11 = inlined_call_operand.hbm [shape: f32[2,128], index: 11, kind: output, shape index: {}]
  %s12 = sld [smem:[#allocation0]]
  $region98: #{tpu_custom_call.1} parent=0
    _
  %s14 = ssub.s32 1, %s12
  %s15 = scalar_select 0, %s14, %s12
  $region1: #{tpu_custom_call.1} parent=0
    #allocation2 [shape = 'u8[512]{0}', space=vmem, size = 0x400, scoped, tag = 'input window, operand 0, single buffered']
    #allocation3 [shape = 's32[1]{0}', space=sflag, size = 0x4, scoped, tag = 'scoped memory for tpu_custom_call.1']
    #allocation4 [shape = 's32[1]{0}', space=sflag, size = 0x4, scoped, tag = 'scoped memory for tpu_custom_call.1']
    #allocation5 [shape = 'u8[65536]{0}', space=vmem, size = 0x10000, scoped, tag = 'input window, operand 1, single buffered']
    #allocation6 [shape = 's32[1]{0}', space=sflag, size = 0x4, scoped, tag = 'scoped memory for tpu_custom_call.1']
    #allocation7 [shape = 'u8[4096]{0}', space=vmem, size = 0x1000, scoped, tag = 'input window, operand 2, single buffered']
    #allocation8 [shape = 'u8[1048576]{0}', space=vmem, size = 0x100000, scoped, tag = 'input window, operand 3, single buffered']
    #allocation9 [shape = 's32[1]{0}', space=sflag, size = 0x4, scoped, tag = 'scoped memory for tpu_custom_call.1']
    #allocation10 [shape = 'u8[2048]{0}', space=vmem, size = 0x800, scoped, tag = 'input window, operand 4, single buffered']
    #allocation11 [shape = 'u8[655360]{0}', space=vmem, size = 0xa0000, scoped, tag = 'input window, operand 5, single buffered']
    #allocation12 [shape = 's32[1]{0}', space=sflag, size = 0x4, scoped, tag = 'scoped memory for tpu_custom_call.1']
    #allocation13 [shape = 'u8[2560]{0}', space=vmem, size = 0xc00, scoped, tag = 'input window, operand 6, single buffered']
    #allocation14 [shape = 'u8[1146880]{0}', space=vmem, size = 0x118000, scoped, tag = 'input window, operand 7, single buffered']
    #allocation15 [shape = 's32[1]{0}', space=sflag, size = 0x4, scoped, tag = 'scoped memory for tpu_custom_call.1']
    #allocation16 [shape = 'u8[3584]{0}', space=vmem, size = 0x1000, scoped, tag = 'input window, operand 8, single buffered']
    #allocation17 [shape = 'u8[229376]{0}', space=vmem, size = 0x38000, scoped, tag = 'input window, operand 9, single buffered']
    #allocation18 [shape = 's32[1]{0}', space=sflag, size = 0x4, scoped, tag = 'scoped memory for tpu_custom_call.1']
    #allocation19 [shape = 'u8[512]{0}', space=vmem, size = 0x400, scoped, tag = 'input window, operand 10, single buffered']
    #allocation20 [shape = 'u8[1024]{0}', space=vmem, size = 0x400, scoped, tag = 'output window, operand 0, single buffered']
    %16 = vsyncpa [#allocation3], 0
    %17 = vsyncpa [#allocation6], 0
    %18 = vsyncpa [#allocation9], 0
    %19 = vsyncpa [#allocation12], 0
    %20 = vsyncpa [#allocation15], 0
    %21 = vsyncpa [#allocation18], 0
    %22 = vsyncpa [#allocation4], 0
    // Predicated region
    $region2: #{tpu_custom_call.1} parent=1 // pred_check
      _
    $region3: #{tpu_custom_call.1} parent=1 // pred_check_branch
      %24 = sbr.rel (0) target = $region5
    $region4: #{tpu_custom_call.1} parent=1 // pred_region
      %26 = vsyncadd [#allocation3], 0
      %s28 = sshll.u32 %s0, 4
      %s29 = int_to_ptr.hbm [resolvable:$true] %s28
      %s30 = sshll.u32 [#allocation2], 4
      %s31 = int_to_ptr.vmem [resolvable:$true] %s30
      %33 = dma.hbm_to_vmem [thread:$0]  %s29, 16, %s31, [#allocation3]
    $region5: #{tpu_custom_call.1} parent=1 // pred_fallthru
      _
    // Predicated region
    $region6: #{tpu_custom_call.1} parent=1 // pred_check
      _
    $region7: #{tpu_custom_call.1} parent=1 // pred_check_branch
      %35 = sbr.rel (0) target = $region9
    $region8: #{tpu_custom_call.1} parent=1 // pred_region
      %37 = vsyncadd [#allocation6], 0
      %s38 = sshll.u32 %s1, 4
      %s39 = int_to_ptr.hbm [resolvable:$true] %s38
      %s40 = sshll.u32 [#allocation5], 4
      %s41 = int_to_ptr.vmem [resolvable:$true] %s40
      %46 = dma.hbm_to_vmem [thread:$0]  %s39, 2048, %s41, [#allocation6], 512, 512, 32
    $region9: #{tpu_custom_call.1} parent=1 // pred_fallthru
      _
    // Predicated region
    $region10: #{tpu_custom_call.1} parent=1 // pred_check
      _
    $region11: #{tpu_custom_call.1} parent=1 // pred_check_branch
      %48 = sbr.rel (0) target = $region13
    $region12: #{tpu_custom_call.1} parent=1 // pred_region
      %50 = vsyncadd [#allocation6], 0
      %s52 = sshll.u32 %s2, 4
      %s53 = int_to_ptr.hbm [resolvable:$true] %s52
      %s54 = sshll.u32 [#allocation7], 4
      %s55 = int_to_ptr.vmem [resolvable:$true] %s54
      %57 = dma.hbm_to_vmem [thread:$0]  %s53, 128, %s55, [#allocation6]
    $region13: #{tpu_custom_call.1} parent=1 // pred_fallthru
      _
    // Predicated region
    $region14: #{tpu_custom_call.1} parent=1 // pred_check
      _
    $region15: #{tpu_custom_call.1} parent=1 // pred_check_branch
      %59 = sbr.rel (0) target = $region17
    $region16: #{tpu_custom_call.1} parent=1 // pred_region
      %61 = vsyncadd [#allocation9], 0
      %s62 = sshll.u32 %s3, 4
      %s63 = int_to_ptr.hbm [resolvable:$true] %s62
      %s64 = sshll.u32 [#allocation8], 4
      %s65 = int_to_ptr.vmem [resolvable:$true] %s64
      %70 = dma.hbm_to_vmem [thread:$0]  %s63, 32768, %s65, [#allocation9], 256, 256, 16
    $region17: #{tpu_custom_call.1} parent=1 // pred_fallthru
      _
    // Predicated region
    $region18: #{tpu_custom_call.1} parent=1 // pred_check
      _
    $region19: #{tpu_custom_call.1} parent=1 // pred_check_branch
      %72 = sbr.rel (0) target = $region21
    $region20: #{tpu_custom_call.1} parent=1 // pred_region
      %74 = vsyncadd [#allocation9], 0
      %s76 = sshll.u32 %s4, 4
      %s77 = int_to_ptr.hbm [resolvable:$true] %s76
      %s78 = sshll.u32 [#allocation10], 4
      %s79 = int_to_ptr.vmem [resolvable:$true] %s78
      %81 = dma.hbm_to_vmem [thread:$0]  %s77, 64, %s79, [#allocation9]
    $region21: #{tpu_custom_call.1} parent=1 // pred_fallthru
      _
    // Predicated region
    $region22: #{tpu_custom_call.1} parent=1 // pred_check
      _
    $region23: #{tpu_custom_call.1} parent=1 // pred_check_branch
      %83 = sbr.rel (0) target = $region25
    $region24: #{tpu_custom_call.1} parent=1 // pred_region
      %85 = vsyncadd [#allocation12], 0
      %s86 = sshll.u32 %s5, 4
      %s87 = int_to_ptr.hbm [resolvable:$true] %s86
      %s88 = sshll.u32 [#allocation11], 4
      %s89 = int_to_ptr.vmem [resolvable:$true] %s88
      %94 = dma.hbm_to_vmem [thread:$0]  %s87, 20480, %s89, [#allocation12], 320, 320, 20
    $region25: #{tpu_custom_call.1} parent=1 // pred_fallthru
      _
    // Predicated region
    $region26: #{tpu_custom_call.1} parent=1 // pred_check
      _
    $region27: #{tpu_custom_call.1} parent=1 // pred_check_branch
      %96 = sbr.rel (0) target = $region29
    $region28: #{tpu_custom_call.1} parent=1 // pred_region
      %98 = vsyncadd [#allocation12], 0
      %s100 = sshll.u32 %s6, 4
      %s101 = int_to_ptr.hbm [resolvable:$true] %s100
      %s102 = sshll.u32 [#allocation13], 4
      %s103 = int_to_ptr.vmem [resolvable:$true] %s102
      %105 = dma.hbm_to_vmem [thread:$0]  %s101, 80, %s103, [#allocation12]
    $region29: #{tpu_custom_call.1} parent=1 // pred_fallthru
      _
    // Predicated region
    $region30: #{tpu_custom_call.1} parent=1 // pred_check
      _
    $region31: #{tpu_custom_call.1} parent=1 // pred_check_branch
      %107 = sbr.rel (0) target = $region33
    $region32: #{tpu_custom_call.1} parent=1 // pred_region
      %109 = vsyncadd [#allocation15], 0
      %s110 = sshll.u32 %s7, 4
      %s111 = int_to_ptr.hbm [resolvable:$true] %s110
      %s112 = sshll.u32 [#allocation14], 4
      %s113 = int_to_ptr.vmem [resolvable:$true] %s112
      %118 = dma.hbm_to_vmem [thread:$0]  %s111, 35840, %s113, [#allocation15], 448, 448, 28
    $region33: #{tpu_custom_call.1} parent=1 // pred_fallthru
      _
    // Predicated region
    $region34: #{tpu_custom_call.1} parent=1 // pred_check
      _
    $region35: #{tpu_custom_call.1} parent=1 // pred_check_branch
      %120 = sbr.rel (0) target = $region37
    $region36: #{tpu_custom_call.1} parent=1 // pred_region
      %122 = vsyncadd [#allocation15], 0
      %s124 = sshll.u32 %s8, 4
      %s125 = int_to_ptr.hbm [resolvable:$true] %s124
      %s126 = sshll.u32 [#allocation16], 4
      %s127 = int_to_ptr.vmem [resolvable:$true] %s126
      %129 = dma.hbm_to_vmem [thread:$0]  %s125, 112, %s127, [#allocation15]
    $region37: #{tpu_custom_call.1} parent=1 // pred_fallthru
      _
    // Predicated region
    $region38: #{tpu_custom_call.1} parent=1 // pred_check
      _
    $region39: #{tpu_custom_call.1} parent=1 // pred_check_branch
      %131 = sbr.rel (0) target = $region41
    $region40: #{tpu_custom_call.1} parent=1 // pred_region
      %133 = vsyncadd [#allocation18], 0
      %s134 = sshll.u32 %s9, 4
      %s135 = int_to_ptr.hbm [resolvable:$true] %s134
      %s136 = sshll.u32 [#allocation17], 4
      %s137 = int_to_ptr.vmem [resolvable:$true] %s136
      %142 = dma.hbm_to_vmem [thread:$0]  %s135, 7168, %s137, [#allocation18], 64, 64, 4
    $region41: #{tpu_custom_call.1} parent=1 // pred_fallthru
      _
    // Predicated region
    $region42: #{tpu_custom_call.1} parent=1 // pred_check
      _
    $region43: #{tpu_custom_call.1} parent=1 // pred_check_branch
      %144 = sbr.rel (0) target = $region45
    $region44: #{tpu_custom_call.1} parent=1 // pred_region
      %146 = vsyncadd [#allocation18], 0
      %s148 = sshll.u32 %s10, 4
      %s149 = int_to_ptr.hbm [resolvable:$true] %s148
      %s150 = sshll.u32 [#allocation19], 4
      %s151 = int_to_ptr.vmem [resolvable:$true] %s150
      %153 = dma.hbm_to_vmem [thread:$0]  %s149, 16, %s151, [#allocation18]
    $region45: #{tpu_custom_call.1} parent=1 // pred_fallthru
      _
    // Predicated region
    $region46: #{tpu_custom_call.1} parent=1 // pred_check
      _
    $region47: #{tpu_custom_call.1} parent=1 // pred_check_branch
      %155 = sbr.rel (0) target = $region49
    $region48: #{tpu_custom_call.1} parent=1 // pred_region
      %157 = dma.done [#allocation3], 16
    $region49: #{tpu_custom_call.1} parent=1 // pred_fallthru
      _
    // Predicated region
    $region50: #{tpu_custom_call.1} parent=1 // pred_check
      _
    $region51: #{tpu_custom_call.1} parent=1 // pred_check_branch
      %159 = sbr.rel (0) target = $region53
    $region52: #{tpu_custom_call.1} parent=1 // pred_region
      %161 = dma.done [#allocation6], 2048
    $region53: #{tpu_custom_call.1} parent=1 // pred_fallthru
      _
    // Predicated region
    $region54: #{tpu_custom_call.1} parent=1 // pred_check
      _
    $region55: #{tpu_custom_call.1} parent=1 // pred_check_branch
      %163 = sbr.rel (0) target = $region57
    $region56: #{tpu_custom_call.1} parent=1 // pred_region
      %165 = dma.done [#allocation6], 128
    $region57: #{tpu_custom_call.1} parent=1 // pred_fallthru
      _
    // Predicated region
    $region58: #{tpu_custom_call.1} parent=1 // pred_check
      _
    $region59: #{tpu_custom_call.1} parent=1 // pred_check_branch
      %167 = sbr.rel (0) target = $region61
    $region60: #{tpu_custom_call.1} parent=1 // pred_region
      %169 = dma.done [#allocation9], 32768
    $region61: #{tpu_custom_call.1} parent=1 // pred_fallthru
      _
    // Predicated region
    $region62: #{tpu_custom_call.1} parent=1 // pred_check
      _
    $region63: #{tpu_custom_call.1} parent=1 // pred_check_branch
      %171 = sbr.rel (0) target = $region65
    $region64: #{tpu_custom_call.1} parent=1 // pred_region
      %173 = dma.done [#allocation9], 64
    $region65: #{tpu_custom_call.1} parent=1 // pred_fallthru
      _
    // Predicated region
    $region66: #{tpu_custom_call.1} parent=1 // pred_check
      _
    $region67: #{tpu_custom_call.1} parent=1 // pred_check_branch
      %175 = sbr.rel (0) target = $region69
    $region68: #{tpu_custom_call.1} parent=1 // pred_region
      %177 = dma.done [#allocation12], 20480
    $region69: #{tpu_custom_call.1} parent=1 // pred_fallthru
      _
    // Predicated region
    $region70: #{tpu_custom_call.1} parent=1 // pred_check
      _
    $region71: #{tpu_custom_call.1} parent=1 // pred_check_branch
      %179 = sbr.rel (0) target = $region73
    $region72: #{tpu_custom_call.1} parent=1 // pred_region
      %181 = dma.done [#allocation12], 80
    $region73: #{tpu_custom_call.1} parent=1 // pred_fallthru
      _
    // Predicated region
    $region74: #{tpu_custom_call.1} parent=1 // pred_check
      _
    $region75: #{tpu_custom_call.1} parent=1 // pred_check_branch
      %183 = sbr.rel (0) target = $region77
    $region76: #{tpu_custom_call.1} parent=1 // pred_region
      %185 = dma.done [#allocation15], 35840
    $region77: #{tpu_custom_call.1} parent=1 // pred_fallthru
      _
    // Predicated region
    $region78: #{tpu_custom_call.1} parent=1 // pred_check
      _
    $region79: #{tpu_custom_call.1} parent=1 // pred_check_branch
      %187 = sbr.rel (0) target = $region81
    $region80: #{tpu_custom_call.1} parent=1 // pred_region
      %189 = dma.done [#allocation15], 112
    $region81: #{tpu_custom_call.1} parent=1 // pred_fallthru
      _
    // Predicated region
    $region82: #{tpu_custom_call.1} parent=1 // pred_check
      _
    $region83: #{tpu_custom_call.1} parent=1 // pred_check_branch
      %191 = sbr.rel (0) target = $region85
    $region84: #{tpu_custom_call.1} parent=1 // pred_region
      %193 = dma.done [#allocation18], 7168
    $region85: #{tpu_custom_call.1} parent=1 // pred_fallthru
      _
    // Predicated region
    $region86: #{tpu_custom_call.1} parent=1 // pred_check
      _
    $region87: #{tpu_custom_call.1} parent=1 // pred_check_branch
      %195 = sbr.rel (0) target = $region89
    $region88: #{tpu_custom_call.1} parent=1 // pred_region
      %197 = dma.done [#allocation18], 16
    $region89: #{tpu_custom_call.1} parent=1 // pred_fallthru
      _
    %v199 = vld [vmem:[#allocation2] sm:$0x1]
    %v200 = vld [vmem:[#allocation5] sm:$0xff]
    %v201 = vld [vmem:[#allocation5 + $0x8] sm:$0xff]
    %v202 = vld [vmem:[#allocation5 + $0x10] sm:$0xff]
    %v203 = vld [vmem:[#allocation5 + $0x18] sm:$0xff]
    %v204 = vld [vmem:[#allocation5 + $0x20] sm:$0xff]
    %v205 = vld [vmem:[#allocation5 + $0x28] sm:$0xff]
    %v206 = vld [vmem:[#allocation5 + $0x30] sm:$0xff]
    %v207 = vld [vmem:[#allocation5 + $0x38] sm:$0xff]
    %v208 = vld [vmem:[#allocation5 + $0x40] sm:$0xff]
    %v209 = vld [vmem:[#allocation5 + $0x48] sm:$0xff]
    %v210 = vld [vmem:[#allocation5 + $0x50] sm:$0xff]
    %v211 = vld [vmem:[#allocation5 + $0x58] sm:$0xff]
    %v212 = vld [vmem:[#allocation5 + $0x60] sm:$0xff]
    %v213 = vld [vmem:[#allocation5 + $0x68] sm:$0xff]
    %v214 = vld [vmem:[#allocation5 + $0x70] sm:$0xff]
    %v215 = vld [vmem:[#allocation5 + $0x78] sm:$0xff]
    %v216 = vld [vmem:[#allocation7] sm:$0xff]
    %v218 = vperm.slane %v216, 0
    %v219 = vperm.slane %v216, 1
    %v220 = vperm.slane %v216, 2
    %v221 = vperm.slane %v216, 3
    %v222 = vperm.slane %v216, 4
    %v223 = vperm.slane %v216, 5
    %v224 = vperm.slane %v216, 6
    %v225 = vperm.slane %v216, 7
    %v250 = vunpack.c.l.b16 %v200
    %v251 = vunpack.c.h.b16 %v200
    %v252 = vunpack.c.l.b16 %v201
    %v253 = vunpack.c.h.b16 %v201
    %v254 = vunpack.c.l.b16 %v202
    %v255 = vunpack.c.h.b16 %v202
    %v256 = vunpack.c.l.b16 %v203
    %v257 = vunpack.c.h.b16 %v203
    %v258 = vunpack.c.l.b16 %v204
    %v259 = vunpack.c.h.b16 %v204
    %v260 = vunpack.c.l.b16 %v205
    %v261 = vunpack.c.h.b16 %v205
    %v262 = vunpack.c.l.b16 %v206
    %v263 = vunpack.c.h.b16 %v206
    %v264 = vunpack.c.l.b16 %v207
    %v265 = vunpack.c.h.b16 %v207
    %v266 = vunpack.c.l.b16 %v208
    %v267 = vunpack.c.h.b16 %v208
    %v268 = vunpack.c.l.b16 %v209
    %v269 = vunpack.c.h.b16 %v209
    %v270 = vunpack.c.l.b16 %v210
    %v271 = vunpack.c.h.b16 %v210
    %v272 = vunpack.c.l.b16 %v211
    %v273 = vunpack.c.h.b16 %v211
    %v274 = vunpack.c.l.b16 %v212
    %v275 = vunpack.c.h.b16 %v212
    %v276 = vunpack.c.l.b16 %v213
    %v277 = vunpack.c.h.b16 %v213
    %v278 = vunpack.c.l.b16 %v214
    %v279 = vunpack.c.h.b16 %v214
    %v280 = vunpack.c.l.b16 %v215
    %v281 = vunpack.c.h.b16 %v215
    %v282 = vpack.c.b16 %v258, %v250
    %v283 = vpack.c.b16 %v259, %v251
    %v284 = vpack.c.b16 %v260, %v252
    %v285 = vpack.c.b16 %v261, %v253
    %v286 = vpack.c.b16 %v262, %v254
    %v287 = vpack.c.b16 %v263, %v255
    %v288 = vpack.c.b16 %v264, %v256
    %v289 = vpack.c.b16 %v265, %v257
    %v290 = vpack.c.b16 %v274, %v266
    %v291 = vpack.c.b16 %v275, %v267
    %v292 = vpack.c.b16 %v276, %v268
    %v293 = vpack.c.b16 %v277, %v269
    %v294 = vpack.c.b16 %v278, %v270
    %v295 = vpack.c.b16 %v279, %v271
    %v296 = vpack.c.b16 %v280, %v272
    %v297 = vpack.c.b16 %v281, %v273
    %vm314 = vcmask 261120
    %v316 = vsel %vm314, %v199, 0
    %318 = vmatpush.bf16.msra.mxu0 0
    %319 = vmatpush.bf16.msra.mxu0 0
    %320 = vmatpush.bf16.msra.mxu0 0
    %321 = vmatpush.bf16.msra.mxu0 0
    %322 = vmatpush.bf16.msra.mxu0 0
    %323 = vmatpush.bf16.msra.mxu0 0
    %324 = vmatpush.bf16.msra.mxu0 %v290
    %325 = vmatpush.bf16.msra.mxu0 %v282
    %326 = vmatmul.bf16.gmra.mxu0 %v316
    %v327 = vpop.f32.mrf.mxu0
    %v328 = vadd.f32 %v218, %v327
    %v329 = vpop.f32.mrf.mxu0
    %330 = vdwg.mxu0
    %331 = vmatpush.bf16.msra.mxu0 0
    %332 = vmatpush.bf16.msra.mxu0 0
    %333 = vmatpush.bf16.msra.mxu0 0
    %334 = vmatpush.bf16.msra.mxu0 0
    %335 = vmatpush.bf16.msra.mxu0 0
    %336 = vmatpush.bf16.msra.mxu0 0
    %337 = vmatpush.bf16.msra.mxu0 %v291
    %338 = vmatpush.bf16.msra.mxu0 %v283
    %339 = vmatmul.bf16.gmra.mxu0 %v316
    %v340 = vpop.f32.mrf.mxu0
    %v341 = vadd.f32 %v219, %v340
    %v342 = vpop.f32.mrf.mxu0
    %343 = vdwg.mxu0
    %344 = vmatpush.bf16.msra.mxu0 0
    %345 = vmatpush.bf16.msra.mxu0 0
    %346 = vmatpush.bf16.msra.mxu0 0
    %347 = vmatpush.bf16.msra.mxu0 0
    %348 = vmatpush.bf16.msra.mxu0 0
    %349 = vmatpush.bf16.msra.mxu0 0
    %350 = vmatpush.bf16.msra.mxu0 %v292
    %351 = vmatpush.bf16.msra.mxu0 %v284
    %352 = vmatmul.bf16.gmra.mxu0 %v316
    %v353 = vpop.f32.mrf.mxu0
    %v354 = vadd.f32 %v220, %v353
    %v355 = vpop.f32.mrf.mxu0
    %356 = vdwg.mxu0
    %357 = vmatpush.bf16.msra.mxu0 0
    %358 = vmatpush.bf16.msra.mxu0 0
    %359 = vmatpush.bf16.msra.mxu0 0
    %360 = vmatpush.bf16.msra.mxu0 0
    %361 = vmatpush.bf16.msra.mxu0 0
    %362 = vmatpush.bf16.msra.mxu0 0
    %363 = vmatpush.bf16.msra.mxu0 %v293
    %364 = vmatpush.bf16.msra.mxu0 %v285
    %365 = vmatmul.bf16.gmra.mxu0 %v316
    %v366 = vpop.f32.mrf.mxu0
    %v367 = vadd.f32 %v221, %v366
    %v368 = vpop.f32.mrf.mxu0
    %369 = vdwg.mxu0
    %370 = vmatpush.bf16.msra.mxu0 0
    %371 = vmatpush.bf16.msra.mxu0 0
    %372 = vmatpush.bf16.msra.mxu0 0
    %373 = vmatpush.bf16.msra.mxu0 0
    %374 = vmatpush.bf16.msra.mxu0 0
    %375 = vmatpush.bf16.msra.mxu0 0
    %376 = vmatpush.bf16.msra.mxu0 %v294
    %377 = vmatpush.bf16.msra.mxu0 %v286
    %378 = vmatmul.bf16.gmra.mxu0 %v316
    %v379 = vpop.f32.mrf.mxu0
    %v380 = vadd.f32 %v222, %v379
    %v381 = vpop.f32.mrf.mxu0
    %382 = vdwg.mxu0
    %383 = vmatpush.bf16.msra.mxu0 0
    %384 = vmatpush.bf16.msra.mxu0 0
    %385 = vmatpush.bf16.msra.mxu0 0
    %386 = vmatpush.bf16.msra.mxu0 0
    %387 = vmatpush.bf16.msra.mxu0 0
    %388 = vmatpush.bf16.msra.mxu0 0
    %389 = vmatpush.bf16.msra.mxu0 %v295
    %390 = vmatpush.bf16.msra.mxu0 %v287
    %391 = vmatmul.bf16.gmra.mxu0 %v316
    %v392 = vpop.f32.mrf.mxu0
    %v393 = vadd.f32 %v223, %v392
    %v394 = vpop.f32.mrf.mxu0
    %395 = vdwg.mxu0
    %396 = vmatpush.bf16.msra.mxu0 0
    %397 = vmatpush.bf16.msra.mxu0 0
    %398 = vmatpush.bf16.msra.mxu0 0
    %399 = vmatpush.bf16.msra.mxu0 0
    %400 = vmatpush.bf16.msra.mxu0 0
    %401 = vmatpush.bf16.msra.mxu0 0
    %402 = vmatpush.bf16.msra.mxu0 %v296
    %403 = vmatpush.bf16.msra.mxu0 %v288
    %404 = vmatmul.bf16.gmra.mxu0 %v316
    %v405 = vpop.f32.mrf.mxu0
    %v406 = vadd.f32 %v224, %v405
    %v407 = vpop.f32.mrf.mxu0
    %408 = vdwg.mxu0
    %409 = vmatpush.bf16.msra.mxu0 0
    %410 = vmatpush.bf16.msra.mxu0 0
    %411 = vmatpush.bf16.msra.mxu0 0
    %412 = vmatpush.bf16.msra.mxu0 0
    %413 = vmatpush.bf16.msra.mxu0 0
    %414 = vmatpush.bf16.msra.mxu0 0
    %415 = vmatpush.bf16.msra.mxu0 %v297
    %416 = vmatpush.bf16.msra.mxu0 %v289
    %417 = vmatmul.bf16.gmra.mxu0 %v316
    %v418 = vpop.f32.mrf.mxu0
    %v419 = vadd.f32 %v225, %v418
    %v420 = vpop.f32.mrf.mxu0
    %421 = vdwg.mxu0
    %v422 = vmax.f32 %v328, 0.0
    %v423 = vmax.f32 %v341, 0.0
    %v424 = vmax.f32 %v354, 0.0
    %v425 = vmax.f32 %v367, 0.0
    %v426 = vmax.f32 %v380, 0.0
    %v427 = vmax.f32 %v393, 0.0
    %v428 = vmax.f32 %v406, 0.0
    %v429 = vmax.f32 %v419, 0.0
    %v430 = vpack.c.bf16 %v422, %v422
    %v431 = vpack.c.bf16 %v423, %v423
    %v432 = vpack.c.bf16 %v424, %v424
    %v433 = vpack.c.bf16 %v425, %v425
    %v434 = vpack.c.bf16 %v426, %v426
    %v435 = vpack.c.bf16 %v427, %v427
    %v436 = vpack.c.bf16 %v428, %v428
    %v437 = vpack.c.bf16 %v429, %v429
    %v438 = vld [vmem:[#allocation8] sm:$0xff]
    %v439 = vld [vmem:[#allocation8 + $0x8] sm:$0xff]
    %v440 = vld [vmem:[#allocation8 + $0x10] sm:$0xff]
    %v441 = vld [vmem:[#allocation8 + $0x18] sm:$0xff]
    %v442 = vld [vmem:[#allocation8 + $0x20] sm:$0xff]
    %v443 = vld [vmem:[#allocation8 + $0x28] sm:$0xff]
    %v444 = vld [vmem:[#allocation8 + $0x30] sm:$0xff]
    %v445 = vld [vmem:[#allocation8 + $0x38] sm:$0xff]
    %v446 = vld [vmem:[#allocation8 + $0x40] sm:$0xff]
    %v447 = vld [vmem:[#allocation8 + $0x48] sm:$0xff]
    %v448 = vld [vmem:[#allocation8 + $0x50] sm:$0xff]
    %v449 = vld [vmem:[#allocation8 + $0x58] sm:$0xff]
    %v450 = vld [vmem:[#allocation8 + $0x60] sm:$0xff]
    %v451 = vld [vmem:[#allocation8 + $0x68] sm:$0xff]
    %v452 = vld [vmem:[#allocation8 + $0x70] sm:$0xff]
    %v453 = vld [vmem:[#allocation8 + $0x78] sm:$0xff]
    %v454 = vld [vmem:[#allocation8 + $0x80] sm:$0xff]
    %v455 = vld [vmem:[#allocation8 + $0x88] sm:$0xff]
    %v456 = vld [vmem:[#allocation8 + $0x90] sm:$0xff]
    %v457 = vld [vmem:[#allocation8 + $0x98] sm:$0xff]
    %v458 = vld [vmem:[#allocation8 + $0xa0] sm:$0xff]
    %v459 = vld [vmem:[#allocation8 + $0xa8] sm:$0xff]
    %v460 = vld [vmem:[#allocation8 + $0xb0] sm:$0xff]
    %v461 = vld [vmem:[#allocation8 + $0xb8] sm:$0xff]
    %v462 = vld [vmem:[#allocation8 + $0xc0] sm:$0xff]
    %v463 = vld [vmem:[#allocation8 + $0xc8] sm:$0xff]
    %v464 = vld [vmem:[#allocation8 + $0xd0] sm:$0xff]
    %v465 = vld [vmem:[#allocation8 + $0xd8] sm:$0xff]
    %v466 = vld [vmem:[#allocation8 + $0xe0] sm:$0xff]
    %v467 = vld [vmem:[#allocation8 + $0xe8] sm:$0xff]
    %v468 = vld [vmem:[#allocation8 + $0xf0] sm:$0xff]
    %v469 = vld [vmem:[#allocation8 + $0xf8] sm:$0xff]
    %v470 = vld [vmem:[#allocation8 + $0x100] sm:$0xff]
    %v471 = vld [vmem:[#allocation8 + $0x108] sm:$0xff]
    %v472 = vld [vmem:[#allocation8 + $0x110] sm:$0xff]
    %v473 = vld [vmem:[#allocation8 + $0x118] sm:$0xff]
    %v474 = vld [vmem:[#allocation8 + $0x120] sm:$0xff]
    %v475 = vld [vmem:[#allocation8 + $0x128] sm:$0xff]
    %v476 = vld [vmem:[#allocation8 + $0x130] sm:$0xff]
    %v477 = vld [vmem:[#allocation8 + $0x138] sm:$0xff]
    %v478 = vld [vmem:[#allocation8 + $0x140] sm:$0xff]
    %v479 = vld [vmem:[#allocation8 + $0x148] sm:$0xff]
    %v480 = vld [vmem:[#allocation8 + $0x150] sm:$0xff]
    %v481 = vld [vmem:[#allocation8 + $0x158] sm:$0xff]
    %v482 = vld [vmem:[#allocation8 + $0x160] sm:$0xff]
    %v483 = vld [vmem:[#allocation8 + $0x168] sm:$0xff]
    %v484 = vld [vmem:[#allocation8 + $0x170] sm:$0xff]
    %v485 = vld [vmem:[#allocation8 + $0x178] sm:$0xff]
    %v486 = vld [vmem:[#allocation8 + $0x180] sm:$0xff]
    %v487 = vld [vmem:[#allocation8 + $0x188] sm:$0xff]
    %v488 = vld [vmem:[#allocation8 + $0x190] sm:$0xff]
    %v489 = vld [vmem:[#allocation8 + $0x198] sm:$0xff]
    %v490 = vld [vmem:[#allocation8 + $0x1a0] sm:$0xff]
    %v491 = vld [vmem:[#allocation8 + $0x1a8] sm:$0xff]
    %v492 = vld [vmem:[#allocation8 + $0x1b0] sm:$0xff]
    %v493 = vld [vmem:[#allocation8 + $0x1b8] sm:$0xff]
    %v494 = vld [vmem:[#allocation8 + $0x1c0] sm:$0xff]
    %v495 = vld [vmem:[#allocation8 + $0x1c8] sm:$0xff]
    %v496 = vld [vmem:[#allocation8 + $0x1d0] sm:$0xff]
    %v497 = vld [vmem:[#allocation8 + $0x1d8] sm:$0xff]
    %v498 = vld [vmem:[#allocation8 + $0x1e0] sm:$0xff]
    %v499 = vld [vmem:[#allocation8 + $0x1e8] sm:$0xff]
    %v500 = vld [vmem:[#allocation8 + $0x1f0] sm:$0xff]
    %v501 = vld [vmem:[#allocation8 + $0x1f8] sm:$0xff]
    %v502 = vld [vmem:[#allocation8 + $0x200] sm:$0xff]
    %v503 = vld [vmem:[#allocation8 + $0x208] sm:$0xff]
    %v504 = vld [vmem:[#allocation8 + $0x210] sm:$0xff]
    %v505 = vld [vmem:[#allocation8 + $0x218] sm:$0xff]
    %v506 = vld [vmem:[#allocation8 + $0x220] sm:$0xff]
    %v507 = vld [vmem:[#allocation8 + $0x228] sm:$0xff]
    %v508 = vld [vmem:[#allocation8 + $0x230] sm:$0xff]
    %v509 = vld [vmem:[#allocation8 + $0x238] sm:$0xff]
    %v510 = vld [vmem:[#allocation8 + $0x240] sm:$0xff]
    %v511 = vld [vmem:[#allocation8 + $0x248] sm:$0xff]
    %v512 = vld [vmem:[#allocation8 + $0x250] sm:$0xff]
    %v513 = vld [vmem:[#allocation8 + $0x258] sm:$0xff]
    %v514 = vld [vmem:[#allocation8 + $0x260] sm:$0xff]
    %v515 = vld [vmem:[#allocation8 + $0x268] sm:$0xff]
    %v516 = vld [vmem:[#allocation8 + $0x270] sm:$0xff]
    %v517 = vld [vmem:[#allocation8 + $0x278] sm:$0xff]
    %v518 = vld [vmem:[#allocation8 + $0x280] sm:$0xff]
    %v519 = vld [vmem:[#allocation8 + $0x288] sm:$0xff]
    %v520 = vld [vmem:[#allocation8 + $0x290] sm:$0xff]
    %v521 = vld [vmem:[#allocation8 + $0x298] sm:$0xff]
    %v522 = vld [vmem:[#allocation8 + $0x2a0] sm:$0xff]
    %v523 = vld [vmem:[#allocation8 + $0x2a8] sm:$0xff]
    %v524 = vld [vmem:[#allocation8 + $0x2b0] sm:$0xff]
    %v525 = vld [vmem:[#allocation8 + $0x2b8] sm:$0xff]
    %v526 = vld [vmem:[#allocation8 + $0x2c0] sm:$0xff]
    %v527 = vld [vmem:[#allocation8 + $0x2c8] sm:$0xff]
    %v528 = vld [vmem:[#allocation8 + $0x2d0] sm:$0xff]
    %v529 = vld [vmem:[#allocation8 + $0x2d8] sm:$0xff]
    %v530 = vld [vmem:[#allocation8 + $0x2e0] sm:$0xff]
    %v531 = vld [vmem:[#allocation8 + $0x2e8] sm:$0xff]
    %v532 = vld [vmem:[#allocation8 + $0x2f0] sm:$0xff]
    %v533 = vld [vmem:[#allocation8 + $0x2f8] sm:$0xff]
    %v534 = vld [vmem:[#allocation8 + $0x300] sm:$0xff]
    %v535 = vld [vmem:[#allocation8 + $0x308] sm:$0xff]
    %v536 = vld [vmem:[#allocation8 + $0x310] sm:$0xff]
    %v537 = vld [vmem:[#allocation8 + $0x318] sm:$0xff]
    %v538 = vld [vmem:[#allocation8 + $0x320] sm:$0xff]
    %v539 = vld [vmem:[#allocation8 + $0x328] sm:$0xff]
    %v540 = vld [vmem:[#allocation8 + $0x330] sm:$0xff]
    %v541 = vld [vmem:[#allocation8 + $0x338] sm:$0xff]
    %v542 = vld [vmem:[#allocation8 + $0x340] sm:$0xff]
    %v543 = vld [vmem:[#allocation8 + $0x348] sm:$0xff]
    %v544 = vld [vmem:[#allocation8 + $0x350] sm:$0xff]
    %v545 = vld [vmem:[#allocation8 + $0x358] sm:$0xff]
    %v546 = vld [vmem:[#allocation8 + $0x360] sm:$0xff]
    %v547 = vld [vmem:[#allocation8 + $0x368] sm:$0xff]
    %v548 = vld [vmem:[#allocation8 + $0x370] sm:$0xff]
    %v549 = vld [vmem:[#allocation8 + $0x378] sm:$0xff]
    %v550 = vld [vmem:[#allocation8 + $0x380] sm:$0xff]
    %v551 = vld [vmem:[#allocation8 + $0x388] sm:$0xff]
    %v552 = vld [vmem:[#allocation8 + $0x390] sm:$0xff]
    %v553 = vld [vmem:[#allocation8 + $0x398] sm:$0xff]
    %v554 = vld [vmem:[#allocation8 + $0x3a0] sm:$0xff]
    %v555 = vld [vmem:[#allocation8 + $0x3a8] sm:$0xff]
    %v556 = vld [vmem:[#allocation8 + $0x3b0] sm:$0xff]
    %v557 = vld [vmem:[#allocation8 + $0x3b8] sm:$0xff]
    %v558 = vld [vmem:[#allocation8 + $0x3c0] sm:$0xff]
    %v559 = vld [vmem:[#allocation8 + $0x3c8] sm:$0xff]
    %v560 = vld [vmem:[#allocation8 + $0x3d0] sm:$0xff]
    %v561 = vld [vmem:[#allocation8 + $0x3d8] sm:$0xff]
    %v562 = vld [vmem:[#allocation8 + $0x3e0] sm:$0xff]
    %v563 = vld [vmem:[#allocation8 + $0x3e8] sm:$0xff]
    %v564 = vld [vmem:[#allocation8 + $0x3f0] sm:$0xff]
    %v565 = vld [vmem:[#allocation8 + $0x3f8] sm:$0xff]
    %v566 = vld [vmem:[#allocation8 + $0x400] sm:$0xff]
    %v567 = vld [vmem:[#allocation8 + $0x408] sm:$0xff]
    %v568 = vld [vmem:[#allocation8 + $0x410] sm:$0xff]
    %v569 = vld [vmem:[#allocation8 + $0x418] sm:$0xff]
    %v570 = vld [vmem:[#allocation8 + $0x420] sm:$0xff]
    %v571 = vld [vmem:[#allocation8 + $0x428] sm:$0xff]
    %v572 = vld [vmem:[#allocation8 + $0x430] sm:$0xff]
    %v573 = vld [vmem:[#allocation8 + $0x438] sm:$0xff]
    %v574 = vld [vmem:[#allocation8 + $0x440] sm:$0xff]
    %v575 = vld [vmem:[#allocation8 + $0x448] sm:$0xff]
    %v576 = vld [vmem:[#allocation8 + $0x450] sm:$0xff]
    %v577 = vld [vmem:[#allocation8 + $0x458] sm:$0xff]
    %v578 = vld [vmem:[#allocation8 + $0x460] sm:$0xff]
    %v579 = vld [vmem:[#allocation8 + $0x468] sm:$0xff]
    %v580 = vld [vmem:[#allocation8 + $0x470] sm:$0xff]
    %v581 = vld [vmem:[#allocation8 + $0x478] sm:$0xff]
    %v582 = vld [vmem:[#allocation8 + $0x480] sm:$0xff]
    %v583 = vld [vmem:[#allocation8 + $0x488] sm:$0xff]
    %v584 = vld [vmem:[#allocation8 + $0x490] sm:$0xff]
    %v585 = vld [vmem:[#allocation8 + $0x498] sm:$0xff]
    %v586 = vld [vmem:[#allocation8 + $0x4a0] sm:$0xff]
    %v587 = vld [vmem:[#allocation8 + $0x4a8] sm:$0xff]
    %v588 = vld [vmem:[#allocation8 + $0x4b0] sm:$0xff]
    %v589 = vld [vmem:[#allocation8 + $0x4b8] sm:$0xff]
    %v590 = vld [vmem:[#allocation8 + $0x4c0] sm:$0xff]
    %v591 = vld [vmem:[#allocation8 + $0x4c8] sm:$0xff]
    %v592 = vld [vmem:[#allocation8 + $0x4d0] sm:$0xff]
    %v593 = vld [vmem:[#allocation8 + $0x4d8] sm:$0xff]
    %v594 = vld [vmem:[#allocation8 + $0x4e0] sm:$0xff]
    %v595 = vld [vmem:[#allocation8 + $0x4e8] sm:$0xff]
    %v596 = vld [vmem:[#allocation8 + $0x4f0] sm:$0xff]
    %v597 = vld [vmem:[#allocation8 + $0x4f8] sm:$0xff]
    %v598 = vld [vmem:[#allocation8 + $0x500] sm:$0xff]
    %v599 = vld [vmem:[#allocation8 + $0x508] sm:$0xff]
    %v600 = vld [vmem:[#allocation8 + $0x510] sm:$0xff]
    %v601 = vld [vmem:[#allocation8 + $0x518] sm:$0xff]
    %v602 = vld [vmem:[#allocation8 + $0x520] sm:$0xff]
    %v603 = vld [vmem:[#allocation8 + $0x528] sm:$0xff]
    %v604 = vld [vmem:[#allocation8 + $0x530] sm:$0xff]
    %v605 = vld [vmem:[#allocation8 + $0x538] sm:$0xff]
    %v606 = vld [vmem:[#allocation8 + $0x540] sm:$0xff]
    %v607 = vld [vmem:[#allocation8 + $0x548] sm:$0xff]
    %v608 = vld [vmem:[#allocation8 + $0x550] sm:$0xff]
    %v609 = vld [vmem:[#allocation8 + $0x558] sm:$0xff]
    %v610 = vld [vmem:[#allocation8 + $0x560] sm:$0xff]
    %v611 = vld [vmem:[#allocation8 + $0x568] sm:$0xff]
    %v612 = vld [vmem:[#allocation8 + $0x570] sm:$0xff]
    %v613 = vld [vmem:[#allocation8 + $0x578] sm:$0xff]
    %v614 = vld [vmem:[#allocation8 + $0x580] sm:$0xff]
    %v615 = vld [vmem:[#allocation8 + $0x588] sm:$0xff]
    %v616 = vld [vmem:[#allocation8 + $0x590] sm:$0xff]
    %v617 = vld [vmem:[#allocation8 + $0x598] sm:$0xff]
    %v618 = vld [vmem:[#allocation8 + $0x5a0] sm:$0xff]
    %v619 = vld [vmem:[#allocation8 + $0x5a8] sm:$0xff]
    %v620 = vld [vmem:[#allocation8 + $0x5b0] sm:$0xff]
    %v621 = vld [vmem:[#allocation8 + $0x5b8] sm:$0xff]
    %v622 = vld [vmem:[#allocation8 + $0x5c0] sm:$0xff]
    %v623 = vld [vmem:[#allocation8 + $0x5c8] sm:$0xff]
    %v624 = vld [vmem:[#allocation8 + $0x5d0] sm:$0xff]
    %v625 = vld [vmem:[#allocation8 + $0x5d8] sm:$0xff]
    %v626 = vld [vmem:[#allocation8 + $0x5e0] sm:$0xff]
    %v627 = vld [vmem:[#allocation8 + $0x5e8] sm:$0xff]
    %v628 = vld [vmem:[#allocation8 + $0x5f0] sm:$0xff]
    %v629 = vld [vmem:[#allocation8 + $0x5f8] sm:$0xff]
    %v630 = vld [vmem:[#allocation8 + $0x600] sm:$0xff]
    %v631 = vld [vmem:[#allocation8 + $0x608] sm:$0xff]
    %v632 = vld [vmem:[#allocation8 + $0x610] sm:$0xff]
    %v633 = vld [vmem:[#allocation8 + $0x618] sm:$0xff]
    %v634 = vld [vmem:[#allocation8 + $0x620] sm:$0xff]
    %v635 = vld [vmem:[#allocation8 + $0x628] sm:$0xff]
    %v636 = vld [vmem:[#allocation8 + $0x630] sm:$0xff]
    %v637 = vld [vmem:[#allocation8 + $0x638] sm:$0xff]
    %v638 = vld [vmem:[#allocation8 + $0x640] sm:$0xff]
    %v639 = vld [vmem:[#allocation8 + $0x648] sm:$0xff]
    %v640 = vld [vmem:[#allocation8 + $0x650] sm:$0xff]
    %v641 = vld [vmem:[#allocation8 + $0x658] sm:$0xff]
    %v642 = vld [vmem:[#allocation8 + $0x660] sm:$0xff]
    %v643 = vld [vmem:[#allocation8 + $0x668] sm:$0xff]
    %v644 = vld [vmem:[#allocation8 + $0x670] sm:$0xff]
    %v645 = vld [vmem:[#allocation8 + $0x678] sm:$0xff]
    %v646 = vld [vmem:[#allocation8 + $0x680] sm:$0xff]
    %v647 = vld [vmem:[#allocation8 + $0x688] sm:$0xff]
    %v648 = vld [vmem:[#allocation8 + $0x690] sm:$0xff]
    %v649 = vld [vmem:[#allocation8 + $0x698] sm:$0xff]
    %v650 = vld [vmem:[#allocation8 + $0x6a0] sm:$0xff]
    %v651 = vld [vmem:[#allocation8 + $0x6a8] sm:$0xff]
    %v652 = vld [vmem:[#allocation8 + $0x6b0] sm:$0xff]
    %v653 = vld [vmem:[#allocation8 + $0x6b8] sm:$0xff]
    %v654 = vld [vmem:[#allocation8 + $0x6c0] sm:$0xff]
    %v655 = vld [vmem:[#allocation8 + $0x6c8] sm:$0xff]
    %v656 = vld [vmem:[#allocation8 + $0x6d0] sm:$0xff]
    %v657 = vld [vmem:[#allocation8 + $0x6d8] sm:$0xff]
    %v658 = vld [vmem:[#allocation8 + $0x6e0] sm:$0xff]
    %v659 = vld [vmem:[#allocation8 + $0x6e8] sm:$0xff]
    %v660 = vld [vmem:[#allocation8 + $0x6f0] sm:$0xff]
    %v661 = vld [vmem:[#allocation8 + $0x6f8] sm:$0xff]
    %v662 = vld [vmem:[#allocation8 + $0x700] sm:$0xff]
    %v663 = vld [vmem:[#allocation8 + $0x708] sm:$0xff]
    %v664 = vld [vmem:[#allocation8 + $0x710] sm:$0xff]
    %v665 = vld [vmem:[#allocation8 + $0x718] sm:$0xff]
    %v666 = vld [vmem:[#allocation8 + $0x720] sm:$0xff]
    %v667 = vld [vmem:[#allocation8 + $0x728] sm:$0xff]
    %v668 = vld [vmem:[#allocation8 + $0x730] sm:$0xff]
    %v669 = vld [vmem:[#allocation8 + $0x738] sm:$0xff]
    %v670 = vld [vmem:[#allocation8 + $0x740] sm:$0xff]
    %v671 = vld [vmem:[#allocation8 + $0x748] sm:$0xff]
    %v672 = vld [vmem:[#allocation8 + $0x750] sm:$0xff]
    %v673 = vld [vmem:[#allocation8 + $0x758] sm:$0xff]
    %v674 = vld [vmem:[#allocation8 + $0x760] sm:$0xff]
    %v675 = vld [vmem:[#allocation8 + $0x768] sm:$0xff]
    %v676 = vld [vmem:[#allocation8 + $0x770] sm:$0xff]
    %v677 = vld [vmem:[#allocation8 + $0x778] sm:$0xff]
    %v678 = vld [vmem:[#allocation8 + $0x780] sm:$0xff]
    %v679 = vld [vmem:[#allocation8 + $0x788] sm:$0xff]
    %v680 = vld [vmem:[#allocation8 + $0x790] sm:$0xff]
    %v681 = vld [vmem:[#allocation8 + $0x798] sm:$0xff]
    %v682 = vld [vmem:[#allocation8 + $0x7a0] sm:$0xff]
    %v683 = vld [vmem:[#allocation8 + $0x7a8] sm:$0xff]
    %v684 = vld [vmem:[#allocation8 + $0x7b0] sm:$0xff]
    %v685 = vld [vmem:[#allocation8 + $0x7b8] sm:$0xff]
    %v686 = vld [vmem:[#allocation8 + $0x7c0] sm:$0xff]
    %v687 = vld [vmem:[#allocation8 + $0x7c8] sm:$0xff]
    %v688 = vld [vmem:[#allocation8 + $0x7d0] sm:$0xff]
    %v689 = vld [vmem:[#allocation8 + $0x7d8] sm:$0xff]
    %v690 = vld [vmem:[#allocation8 + $0x7e0] sm:$0xff]
    %v691 = vld [vmem:[#allocation8 + $0x7e8] sm:$0xff]
    %v692 = vld [vmem:[#allocation8 + $0x7f0] sm:$0xff]
    %v693 = vld [vmem:[#allocation8 + $0x7f8] sm:$0xff]
    %v694 = vld [vmem:[#allocation10] sm:$0xf]
    %v696 = vperm.slane %v694, 0
    %v697 = vperm.slane %v694, 1
    %v698 = vperm.slane %v694, 2
    %v699 = vperm.slane %v694, 3
    %v960 = vunpack.c.l.b16 %v438
    %v961 = vunpack.c.h.b16 %v438
    %v962 = vunpack.c.l.b16 %v439
    %v963 = vunpack.c.h.b16 %v439
    %v964 = vunpack.c.l.b16 %v440
    %v965 = vunpack.c.h.b16 %v440
    %v966 = vunpack.c.l.b16 %v441
    %v967 = vunpack.c.h.b16 %v441
    %v968 = vunpack.c.l.b16 %v442
    %v969 = vunpack.c.h.b16 %v442
    %v970 = vunpack.c.l.b16 %v443
    %v971 = vunpack.c.h.b16 %v443
    %v972 = vunpack.c.l.b16 %v444
    %v973 = vunpack.c.h.b16 %v444
    %v974 = vunpack.c.l.b16 %v445
    %v975 = vunpack.c.h.b16 %v445
    %v976 = vunpack.c.l.b16 %v446
    %v977 = vunpack.c.h.b16 %v446
    %v978 = vunpack.c.l.b16 %v447
    %v979 = vunpack.c.h.b16 %v447
    %v980 = vunpack.c.l.b16 %v448
    %v981 = vunpack.c.h.b16 %v448
    %v982 = vunpack.c.l.b16 %v449
    %v983 = vunpack.c.h.b16 %v449
    %v984 = vunpack.c.l.b16 %v450
    %v985 = vunpack.c.h.b16 %v450
    %v986 = vunpack.c.l.b16 %v451
    %v987 = vunpack.c.h.b16 %v451
    %v988 = vunpack.c.l.b16 %v452
    %v989 = vunpack.c.h.b16 %v452
    %v990 = vunpack.c.l.b16 %v453
    %v991 = vunpack.c.h.b16 %v453
    %v992 = vunpack.c.l.b16 %v454
    %v993 = vunpack.c.h.b16 %v454
    %v994 = vunpack.c.l.b16 %v455
    %v995 = vunpack.c.h.b16 %v455
    %v996 = vunpack.c.l.b16 %v456
    %v997 = vunpack.c.h.b16 %v456
    %v998 = vunpack.c.l.b16 %v457
    %v999 = vunpack.c.h.b16 %v457
    %v1000 = vunpack.c.l.b16 %v458
    %v1001 = vunpack.c.h.b16 %v458
    %v1002 = vunpack.c.l.b16 %v459
    %v1003 = vunpack.c.h.b16 %v459
    %v1004 = vunpack.c.l.b16 %v460
    %v1005 = vunpack.c.h.b16 %v460
    %v1006 = vunpack.c.l.b16 %v461
    %v1007 = vunpack.c.h.b16 %v461
    %v1008 = vunpack.c.l.b16 %v462
    %v1009 = vunpack.c.h.b16 %v462
    %v1010 = vunpack.c.l.b16 %v463
    %v1011 = vunpack.c.h.b16 %v463
    %v1012 = vunpack.c.l.b16 %v464
    %v1013 = vunpack.c.h.b16 %v464
    %v1014 = vunpack.c.l.b16 %v465
    %v1015 = vunpack.c.h.b16 %v465
    %v1016 = vunpack.c.l.b16 %v466
    %v1017 = vunpack.c.h.b16 %v466
    %v1018 = vunpack.c.l.b16 %v467
    %v1019 = vunpack.c.h.b16 %v467
    %v1020 = vunpack.c.l.b16 %v468
    %v1021 = vunpack.c.h.b16 %v468
    %v1022 = vunpack.c.l.b16 %v469
    %v1023 = vunpack.c.h.b16 %v469
    %v1024 = vunpack.c.l.b16 %v470
    %v1025 = vunpack.c.h.b16 %v470
    %v1026 = vunpack.c.l.b16 %v471
    %v1027 = vunpack.c.h.b16 %v471
    %v1028 = vunpack.c.l.b16 %v472
    %v1029 = vunpack.c.h.b16 %v472
    %v1030 = vunpack.c.l.b16 %v473
    %v1031 = vunpack.c.h.b16 %v473
    %v1032 = vunpack.c.l.b16 %v474
    %v1033 = vunpack.c.h.b16 %v474
    %v1034 = vunpack.c.l.b16 %v475
    %v1035 = vunpack.c.h.b16 %v475
    %v1036 = vunpack.c.l.b16 %v476
    %v1037 = vunpack.c.h.b16 %v476
    %v1038 = vunpack.c.l.b16 %v477
    %v1039 = vunpack.c.h.b16 %v477
    %v1040 = vunpack.c.l.b16 %v478
    %v1041 = vunpack.c.h.b16 %v478
    %v1042 = vunpack.c.l.b16 %v479
    %v1043 = vunpack.c.h.b16 %v479
    %v1044 = vunpack.c.l.b16 %v480
    %v1045 = vunpack.c.h.b16 %v480
    %v1046 = vunpack.c.l.b16 %v481
    %v1047 = vunpack.c.h.b16 %v481
    %v1048 = vunpack.c.l.b16 %v482
    %v1049 = vunpack.c.h.b16 %v482
    %v1050 = vunpack.c.l.b16 %v483
    %v1051 = vunpack.c.h.b16 %v483
    %v1052 = vunpack.c.l.b16 %v484
    %v1053 = vunpack.c.h.b16 %v484
    %v1054 = vunpack.c.l.b16 %v485
    %v1055 = vunpack.c.h.b16 %v485
    %v1056 = vunpack.c.l.b16 %v486
    %v1057 = vunpack.c.h.b16 %v486
    %v1058 = vunpack.c.l.b16 %v487
    %v1059 = vunpack.c.h.b16 %v487
    %v1060 = vunpack.c.l.b16 %v488
    %v1061 = vunpack.c.h.b16 %v488
    %v1062 = vunpack.c.l.b16 %v489
    %v1063 = vunpack.c.h.b16 %v489
    %v1064 = vunpack.c.l.b16 %v490
    %v1065 = vunpack.c.h.b16 %v490
    %v1066 = vunpack.c.l.b16 %v491
    %v1067 = vunpack.c.h.b16 %v491
    %v1068 = vunpack.c.l.b16 %v492
    %v1069 = vunpack.c.h.b16 %v492
    %v1070 = vunpack.c.l.b16 %v493
    %v1071 = vunpack.c.h.b16 %v493
    %v1072 = vunpack.c.l.b16 %v494
    %v1073 = vunpack.c.h.b16 %v494
    %v1074 = vunpack.c.l.b16 %v495
    %v1075 = vunpack.c.h.b16 %v495
    %v1076 = vunpack.c.l.b16 %v496
    %v1077 = vunpack.c.h.b16 %v496
    %v1078 = vunpack.c.l.b16 %v497
    %v1079 = vunpack.c.h.b16 %v497
    %v1080 = vunpack.c.l.b16 %v498
    %v1081 = vunpack.c.h.b16 %v498
    %v1082 = vunpack.c.l.b16 %v499
    %v1083 = vunpack.c.h.b16 %v499
    %v1084 = vunpack.c.l.b16 %v500
    %v1085 = vunpack.c.h.b16 %v500
    %v1086 = vunpack.c.l.b16 %v501
    %v1087 = vunpack.c.h.b16 %v501
    %v1088 = vunpack.c.l.b16 %v502
    %v1089 = vunpack.c.h.b16 %v502
    %v1090 = vunpack.c.l.b16 %v503
    %v1091 = vunpack.c.h.b16 %v503
    %v1092 = vunpack.c.l.b16 %v504
    %v1093 = vunpack.c.h.b16 %v504
    %v1094 = vunpack.c.l.b16 %v505
    %v1095 = vunpack.c.h.b16 %v505
    %v1096 = vunpack.c.l.b16 %v506
    %v1097 = vunpack.c.h.b16 %v506
    %v1098 = vunpack.c.l.b16 %v507
    %v1099 = vunpack.c.h.b16 %v507
    %v1100 = vunpack.c.l.b16 %v508
    %v1101 = vunpack.c.h.b16 %v508
    %v1102 = vunpack.c.l.b16 %v509
    %v1103 = vunpack.c.h.b16 %v509
    %v1104 = vunpack.c.l.b16 %v510
    %v1105 = vunpack.c.h.b16 %v510
    %v1106 = vunpack.c.l.b16 %v511
    %v1107 = vunpack.c.h.b16 %v511
    %v1108 = vunpack.c.l.b16 %v512
    %v1109 = vunpack.c.h.b16 %v512
    %v1110 = vunpack.c.l.b16 %v513
    %v1111 = vunpack.c.h.b16 %v513
    %v1112 = vunpack.c.l.b16 %v514
    %v1113 = vunpack.c.h.b16 %v514
    %v1114 = vunpack.c.l.b16 %v515
    %v1115 = vunpack.c.h.b16 %v515
    %v1116 = vunpack.c.l.b16 %v516
    %v1117 = vunpack.c.h.b16 %v516
    %v1118 = vunpack.c.l.b16 %v517
    %v1119 = vunpack.c.h.b16 %v517
    %v1120 = vunpack.c.l.b16 %v518
    %v1121 = vunpack.c.h.b16 %v518
    %v1122 = vunpack.c.l.b16 %v519
    %v1123 = vunpack.c.h.b16 %v519
    %v1124 = vunpack.c.l.b16 %v520
    %v1125 = vunpack.c.h.b16 %v520
    %v1126 = vunpack.c.l.b16 %v521
    %v1127 = vunpack.c.h.b16 %v521
    %v1128 = vunpack.c.l.b16 %v522
    %v1129 = vunpack.c.h.b16 %v522
    %v1130 = vunpack.c.l.b16 %v523
    %v1131 = vunpack.c.h.b16 %v523
    %v1132 = vunpack.c.l.b16 %v524
    %v1133 = vunpack.c.h.b16 %v524
    %v1134 = vunpack.c.l.b16 %v525
    %v1135 = vunpack.c.h.b16 %v525
    %v1136 = vunpack.c.l.b16 %v526
    %v1137 = vunpack.c.h.b16 %v526
    %v1138 = vunpack.c.l.b16 %v527
    %v1139 = vunpack.c.h.b16 %v527
    %v1140 = vunpack.c.l.b16 %v528
    %v1141 = vunpack.c.h.b16 %v528
    %v1142 = vunpack.c.l.b16 %v529
    %v1143 = vunpack.c.h.b16 %v529
    %v1144 = vunpack.c.l.b16 %v530
    %v1145 = vunpack.c.h.b16 %v530
    %v1146 = vunpack.c.l.b16 %v531
    %v1147 = vunpack.c.h.b16 %v531
    %v1148 = vunpack.c.l.b16 %v532
    %v1149 = vunpack.c.h.b16 %v532
    %v1150 = vunpack.c.l.b16 %v533
    %v1151 = vunpack.c.h.b16 %v533
    %v1152 = vunpack.c.l.b16 %v534
    %v1153 = vunpack.c.h.b16 %v534
    %v1154 = vunpack.c.l.b16 %v535
    %v1155 = vunpack.c.h.b16 %v535
    %v1156 = vunpack.c.l.b16 %v536
    %v1157 = vunpack.c.h.b16 %v536
    %v1158 = vunpack.c.l.b16 %v537
    %v1159 = vunpack.c.h.b16 %v537
    %v1160 = vunpack.c.l.b16 %v538
    %v1161 = vunpack.c.h.b16 %v538
    %v1162 = vunpack.c.l.b16 %v539
    %v1163 = vunpack.c.h.b16 %v539
    %v1164 = vunpack.c.l.b16 %v540
    %v1165 = vunpack.c.h.b16 %v540
    %v1166 = vunpack.c.l.b16 %v541
    %v1167 = vunpack.c.h.b16 %v541
    %v1168 = vunpack.c.l.b16 %v542
    %v1169 = vunpack.c.h.b16 %v542
    %v1170 = vunpack.c.l.b16 %v543
    %v1171 = vunpack.c.h.b16 %v543
    %v1172 = vunpack.c.l.b16 %v544
    %v1173 = vunpack.c.h.b16 %v544
    %v1174 = vunpack.c.l.b16 %v545
    %v1175 = vunpack.c.h.b16 %v545
    %v1176 = vunpack.c.l.b16 %v546
    %v1177 = vunpack.c.h.b16 %v546
    %v1178 = vunpack.c.l.b16 %v547
    %v1179 = vunpack.c.h.b16 %v547
    %v1180 = vunpack.c.l.b16 %v548
    %v1181 = vunpack.c.h.b16 %v548
    %v1182 = vunpack.c.l.b16 %v549
    %v1183 = vunpack.c.h.b16 %v549
    %v1184 = vunpack.c.l.b16 %v550
    %v1185 = vunpack.c.h.b16 %v550
    %v1186 = vunpack.c.l.b16 %v551
    %v1187 = vunpack.c.h.b16 %v551
    %v1188 = vunpack.c.l.b16 %v552
    %v1189 = vunpack.c.h.b16 %v552
    %v1190 = vunpack.c.l.b16 %v553
    %v1191 = vunpack.c.h.b16 %v553
    %v1192 = vunpack.c.l.b16 %v554
    %v1193 = vunpack.c.h.b16 %v554
    %v1194 = vunpack.c.l.b16 %v555
    %v1195 = vunpack.c.h.b16 %v555
    %v1196 = vunpack.c.l.b16 %v556
    %v1197 = vunpack.c.h.b16 %v556
    %v1198 = vunpack.c.l.b16 %v557
    %v1199 = vunpack.c.h.b16 %v557
    %v1200 = vunpack.c.l.b16 %v558
    %v1201 = vunpack.c.h.b16 %v558
    %v1202 = vunpack.c.l.b16 %v559
    %v1203 = vunpack.c.h.b16 %v559
    %v1204 = vunpack.c.l.b16 %v560
    %v1205 = vunpack.c.h.b16 %v560
    %v1206 = vunpack.c.l.b16 %v561
    %v1207 = vunpack.c.h.b16 %v561
    %v1208 = vunpack.c.l.b16 %v562
    %v1209 = vunpack.c.h.b16 %v562
    %v1210 = vunpack.c.l.b16 %v563
    %v1211 = vunpack.c.h.b16 %v563
    %v1212 = vunpack.c.l.b16 %v564
    %v1213 = vunpack.c.h.b16 %v564
    %v1214 = vunpack.c.l.b16 %v565
    %v1215 = vunpack.c.h.b16 %v565
    %v1216 = vunpack.c.l.b16 %v566
    %v1217 = vunpack.c.h.b16 %v566
    %v1218 = vunpack.c.l.b16 %v567
    %v1219 = vunpack.c.h.b16 %v567
    %v1220 = vunpack.c.l.b16 %v568
    %v1221 = vunpack.c.h.b16 %v568
    %v1222 = vunpack.c.l.b16 %v569
    %v1223 = vunpack.c.h.b16 %v569
    %v1224 = vunpack.c.l.b16 %v570
    %v1225 = vunpack.c.h.b16 %v570
    %v1226 = vunpack.c.l.b16 %v571
    %v1227 = vunpack.c.h.b16 %v571
    %v1228 = vunpack.c.l.b16 %v572
    %v1229 = vunpack.c.h.b16 %v572
    %v1230 = vunpack.c.l.b16 %v573
    %v1231 = vunpack.c.h.b16 %v573
    %v1232 = vunpack.c.l.b16 %v574
    %v1233 = vunpack.c.h.b16 %v574
    %v1234 = vunpack.c.l.b16 %v575
    %v1235 = vunpack.c.h.b16 %v575
    %v1236 = vunpack.c.l.b16 %v576
    %v1237 = vunpack.c.h.b16 %v576
    %v1238 = vunpack.c.l.b16 %v577
    %v1239 = vunpack.c.h.b16 %v577
    %v1240 = vunpack.c.l.b16 %v578
    %v1241 = vunpack.c.h.b16 %v578
    %v1242 = vunpack.c.l.b16 %v579
    %v1243 = vunpack.c.h.b16 %v579
    %v1244 = vunpack.c.l.b16 %v580
    %v1245 = vunpack.c.h.b16 %v580
    %v1246 = vunpack.c.l.b16 %v581
    %v1247 = vunpack.c.h.b16 %v581
    %v1248 = vunpack.c.l.b16 %v582
    %v1249 = vunpack.c.h.b16 %v582
    %v1250 = vunpack.c.l.b16 %v583
    %v1251 = vunpack.c.h.b16 %v583
    %v1252 = vunpack.c.l.b16 %v584
    %v1253 = vunpack.c.h.b16 %v584
    %v1254 = vunpack.c.l.b16 %v585
    %v1255 = vunpack.c.h.b16 %v585
    %v1256 = vunpack.c.l.b16 %v586
    %v1257 = vunpack.c.h.b16 %v586
    %v1258 = vunpack.c.l.b16 %v587
    %v1259 = vunpack.c.h.b16 %v587
    %v1260 = vunpack.c.l.b16 %v588
    %v1261 = vunpack.c.h.b16 %v588
    %v1262 = vunpack.c.l.b16 %v589
    %v1263 = vunpack.c.h.b16 %v589
    %v1264 = vunpack.c.l.b16 %v590
    %v1265 = vunpack.c.h.b16 %v590
    %v1266 = vunpack.c.l.b16 %v591
    %v1267 = vunpack.c.h.b16 %v591
    %v1268 = vunpack.c.l.b16 %v592
    %v1269 = vunpack.c.h.b16 %v592
    %v1270 = vunpack.c.l.b16 %v593
    %v1271 = vunpack.c.h.b16 %v593
    %v1272 = vunpack.c.l.b16 %v594
    %v1273 = vunpack.c.h.b16 %v594
    %v1274 = vunpack.c.l.b16 %v595
    %v1275 = vunpack.c.h.b16 %v595
    %v1276 = vunpack.c.l.b16 %v596
    %v1277 = vunpack.c.h.b16 %v596
    %v1278 = vunpack.c.l.b16 %v597
    %v1279 = vunpack.c.h.b16 %v597
    %v1280 = vunpack.c.l.b16 %v598
    %v1281 = vunpack.c.h.b16 %v598
    %v1282 = vunpack.c.l.b16 %v599
    %v1283 = vunpack.c.h.b16 %v599
    %v1284 = vunpack.c.l.b16 %v600
    %v1285 = vunpack.c.h.b16 %v600
    %v1286 = vunpack.c.l.b16 %v601
    %v1287 = vunpack.c.h.b16 %v601
    %v1288 = vunpack.c.l.b16 %v602
    %v1289 = vunpack.c.h.b16 %v602
    %v1290 = vunpack.c.l.b16 %v603
    %v1291 = vunpack.c.h.b16 %v603
    %v1292 = vunpack.c.l.b16 %v604
    %v1293 = vunpack.c.h.b16 %v604
    %v1294 = vunpack.c.l.b16 %v605
    %v1295 = vunpack.c.h.b16 %v605
    %v1296 = vunpack.c.l.b16 %v606
    %v1297 = vunpack.c.h.b16 %v606
    %v1298 = vunpack.c.l.b16 %v607
    %v1299 = vunpack.c.h.b16 %v607
    %v1300 = vunpack.c.l.b16 %v608
    %v1301 = vunpack.c.h.b16 %v608
    %v1302 = vunpack.c.l.b16 %v609
    %v1303 = vunpack.c.h.b16 %v609
    %v1304 = vunpack.c.l.b16 %v610
    %v1305 = vunpack.c.h.b16 %v610
    %v1306 = vunpack.c.l.b16 %v611
    %v1307 = vunpack.c.h.b16 %v611
    %v1308 = vunpack.c.l.b16 %v612
    %v1309 = vunpack.c.h.b16 %v612
    %v1310 = vunpack.c.l.b16 %v613
    %v1311 = vunpack.c.h.b16 %v613
    %v1312 = vunpack.c.l.b16 %v614
    %v1313 = vunpack.c.h.b16 %v614
    %v1314 = vunpack.c.l.b16 %v615
    %v1315 = vunpack.c.h.b16 %v615
    %v1316 = vunpack.c.l.b16 %v616
    %v1317 = vunpack.c.h.b16 %v616
    %v1318 = vunpack.c.l.b16 %v617
    %v1319 = vunpack.c.h.b16 %v617
    %v1320 = vunpack.c.l.b16 %v618
    %v1321 = vunpack.c.h.b16 %v618
    %v1322 = vunpack.c.l.b16 %v619
    %v1323 = vunpack.c.h.b16 %v619
    %v1324 = vunpack.c.l.b16 %v620
    %v1325 = vunpack.c.h.b16 %v620
    %v1326 = vunpack.c.l.b16 %v621
    %v1327 = vunpack.c.h.b16 %v621
    %v1328 = vunpack.c.l.b16 %v622
    %v1329 = vunpack.c.h.b16 %v622
    %v1330 = vunpack.c.l.b16 %v623
    %v1331 = vunpack.c.h.b16 %v623
    %v1332 = vunpack.c.l.b16 %v624
    %v1333 = vunpack.c.h.b16 %v624
    %v1334 = vunpack.c.l.b16 %v625
    %v1335 = vunpack.c.h.b16 %v625
    %v1336 = vunpack.c.l.b16 %v626
    %v1337 = vunpack.c.h.b16 %v626
    %v1338 = vunpack.c.l.b16 %v627
    %v1339 = vunpack.c.h.b16 %v627
    %v1340 = vunpack.c.l.b16 %v628
    %v1341 = vunpack.c.h.b16 %v628
    %v1342 = vunpack.c.l.b16 %v629
    %v1343 = vunpack.c.h.b16 %v629
    %v1344 = vunpack.c.l.b16 %v630
    %v1345 = vunpack.c.h.b16 %v630
    %v1346 = vunpack.c.l.b16 %v631
    %v1347 = vunpack.c.h.b16 %v631
    %v1348 = vunpack.c.l.b16 %v632
    %v1349 = vunpack.c.h.b16 %v632
    %v1350 = vunpack.c.l.b16 %v633
    %v1351 = vunpack.c.h.b16 %v633
    %v1352 = vunpack.c.l.b16 %v634
    %v1353 = vunpack.c.h.b16 %v634
    %v1354 = vunpack.c.l.b16 %v635
    %v1355 = vunpack.c.h.b16 %v635
    %v1356 = vunpack.c.l.b16 %v636
    %v1357 = vunpack.c.h.b16 %v636
    %v1358 = vunpack.c.l.b16 %v637
    %v1359 = vunpack.c.h.b16 %v637
    %v1360 = vunpack.c.l.b16 %v638
    %v1361 = vunpack.c.h.b16 %v638
    %v1362 = vunpack.c.l.b16 %v639
    %v1363 = vunpack.c.h.b16 %v639
    %v1364 = vunpack.c.l.b16 %v640
    %v1365 = vunpack.c.h.b16 %v640
    %v1366 = vunpack.c.l.b16 %v641
    %v1367 = vunpack.c.h.b16 %v641
    %v1368 = vunpack.c.l.b16 %v642
    %v1369 = vunpack.c.h.b16 %v642
    %v1370 = vunpack.c.l.b16 %v643
    %v1371 = vunpack.c.h.b16 %v643
    %v1372 = vunpack.c.l.b16 %v644
    %v1373 = vunpack.c.h.b16 %v644
    %v1374 = vunpack.c.l.b16 %v645
    %v1375 = vunpack.c.h.b16 %v645
    %v1376 = vunpack.c.l.b16 %v646
    %v1377 = vunpack.c.h.b16 %v646
    %v1378 = vunpack.c.l.b16 %v647
    %v1379 = vunpack.c.h.b16 %v647
    %v1380 = vunpack.c.l.b16 %v648
    %v1381 = vunpack.c.h.b16 %v648
    %v1382 = vunpack.c.l.b16 %v649
    %v1383 = vunpack.c.h.b16 %v649
    %v1384 = vunpack.c.l.b16 %v650
    %v1385 = vunpack.c.h.b16 %v650
    %v1386 = vunpack.c.l.b16 %v651
    %v1387 = vunpack.c.h.b16 %v651
    %v1388 = vunpack.c.l.b16 %v652
    %v1389 = vunpack.c.h.b16 %v652
    %v1390 = vunpack.c.l.b16 %v653
    %v1391 = vunpack.c.h.b16 %v653
    %v1392 = vunpack.c.l.b16 %v654
    %v1393 = vunpack.c.h.b16 %v654
    %v1394 = vunpack.c.l.b16 %v655
    %v1395 = vunpack.c.h.b16 %v655
    %v1396 = vunpack.c.l.b16 %v656
    %v1397 = vunpack.c.h.b16 %v656
    %v1398 = vunpack.c.l.b16 %v657
    %v1399 = vunpack.c.h.b16 %v657
    %v1400 = vunpack.c.l.b16 %v658
    %v1401 = vunpack.c.h.b16 %v658
    %v1402 = vunpack.c.l.b16 %v659
    %v1403 = vunpack.c.h.b16 %v659
    %v1404 = vunpack.c.l.b16 %v660
    %v1405 = vunpack.c.h.b16 %v660
    %v1406 = vunpack.c.l.b16 %v661
    %v1407 = vunpack.c.h.b16 %v661
    %v1408 = vunpack.c.l.b16 %v662
    %v1409 = vunpack.c.h.b16 %v662
    %v1410 = vunpack.c.l.b16 %v663
    %v1411 = vunpack.c.h.b16 %v663
    %v1412 = vunpack.c.l.b16 %v664
    %v1413 = vunpack.c.h.b16 %v664
    %v1414 = vunpack.c.l.b16 %v665
    %v1415 = vunpack.c.h.b16 %v665
    %v1416 = vunpack.c.l.b16 %v666
    %v1417 = vunpack.c.h.b16 %v666
    %v1418 = vunpack.c.l.b16 %v667
    %v1419 = vunpack.c.h.b16 %v667
    %v1420 = vunpack.c.l.b16 %v668
    %v1421 = vunpack.c.h.b16 %v668
    %v1422 = vunpack.c.l.b16 %v669
    %v1423 = vunpack.c.h.b16 %v669
    %v1424 = vunpack.c.l.b16 %v670
    %v1425 = vunpack.c.h.b16 %v670
    %v1426 = vunpack.c.l.b16 %v671
    %v1427 = vunpack.c.h.b16 %v671
    %v1428 = vunpack.c.l.b16 %v672
    %v1429 = vunpack.c.h.b16 %v672
    %v1430 = vunpack.c.l.b16 %v673
    %v1431 = vunpack.c.h.b16 %v673
    %v1432 = vunpack.c.l.b16 %v674
    %v1433 = vunpack.c.h.b16 %v674
    %v1434 = vunpack.c.l.b16 %v675
    %v1435 = vunpack.c.h.b16 %v675
    %v1436 = vunpack.c.l.b16 %v676
    %v1437 = vunpack.c.h.b16 %v676
    %v1438 = vunpack.c.l.b16 %v677
    %v1439 = vunpack.c.h.b16 %v677
    %v1440 = vunpack.c.l.b16 %v678
    %v1441 = vunpack.c.h.b16 %v678
    %v1442 = vunpack.c.l.b16 %v679
    %v1443 = vunpack.c.h.b16 %v679
    %v1444 = vunpack.c.l.b16 %v680
    %v1445 = vunpack.c.h.b16 %v680
    %v1446 = vunpack.c.l.b16 %v681
    %v1447 = vunpack.c.h.b16 %v681
    %v1448 = vunpack.c.l.b16 %v682
    %v1449 = vunpack.c.h.b16 %v682
    %v1450 = vunpack.c.l.b16 %v683
    %v1451 = vunpack.c.h.b16 %v683
    %v1452 = vunpack.c.l.b16 %v684
    %v1453 = vunpack.c.h.b16 %v684
    %v1454 = vunpack.c.l.b16 %v685
    %v1455 = vunpack.c.h.b16 %v685
    %v1456 = vunpack.c.l.b16 %v686
    %v1457 = vunpack.c.h.b16 %v686
    %v1458 = vunpack.c.l.b16 %v687
    %v1459 = vunpack.c.h.b16 %v687
    %v1460 = vunpack.c.l.b16 %v688
    %v1461 = vunpack.c.h.b16 %v688
    %v1462 = vunpack.c.l.b16 %v689
    %v1463 = vunpack.c.h.b16 %v689
    %v1464 = vunpack.c.l.b16 %v690
    %v1465 = vunpack.c.h.b16 %v690
    %v1466 = vunpack.c.l.b16 %v691
    %v1467 = vunpack.c.h.b16 %v691
    %v1468 = vunpack.c.l.b16 %v692
    %v1469 = vunpack.c.h.b16 %v692
    %v1470 = vunpack.c.l.b16 %v693
    %v1471 = vunpack.c.h.b16 %v693
    %v1472 = vpack.c.b16 %v964, %v960
    %v1473 = vpack.c.b16 %v965, %v961
    %v1474 = vpack.c.b16 %v966, %v962
    %v1475 = vpack.c.b16 %v967, %v963
    %v1476 = vpack.c.b16 %v972, %v968
    %v1477 = vpack.c.b16 %v973, %v969
    %v1478 = vpack.c.b16 %v974, %v970
    %v1479 = vpack.c.b16 %v975, %v971
    %v1480 = vpack.c.b16 %v980, %v976
    %v1481 = vpack.c.b16 %v981, %v977
    %v1482 = vpack.c.b16 %v982, %v978
    %v1483 = vpack.c.b16 %v983, %v979
    %v1484 = vpack.c.b16 %v988, %v984
    %v1485 = vpack.c.b16 %v989, %v985
    %v1486 = vpack.c.b16 %v990, %v986
    %v1487 = vpack.c.b16 %v991, %v987
    %v1488 = vpack.c.b16 %v996, %v992
    %v1489 = vpack.c.b16 %v997, %v993
    %v1490 = vpack.c.b16 %v998, %v994
    %v1491 = vpack.c.b16 %v999, %v995
    %v1492 = vpack.c.b16 %v1004, %v1000
    %v1493 = vpack.c.b16 %v1005, %v1001
    %v1494 = vpack.c.b16 %v1006, %v1002
    %v1495 = vpack.c.b16 %v1007, %v1003
    %v1496 = vpack.c.b16 %v1012, %v1008
    %v1497 = vpack.c.b16 %v1013, %v1009
    %v1498 = vpack.c.b16 %v1014, %v1010
    %v1499 = vpack.c.b16 %v1015, %v1011
    %v1500 = vpack.c.b16 %v1020, %v1016
    %v1501 = vpack.c.b16 %v1021, %v1017
    %v1502 = vpack.c.b16 %v1022, %v1018
    %v1503 = vpack.c.b16 %v1023, %v1019
    %v1504 = vpack.c.b16 %v1028, %v1024
    %v1505 = vpack.c.b16 %v1029, %v1025
    %v1506 = vpack.c.b16 %v1030, %v1026
    %v1507 = vpack.c.b16 %v1031, %v1027
    %v1508 = vpack.c.b16 %v1036, %v1032
    %v1509 = vpack.c.b16 %v1037, %v1033
    %v1510 = vpack.c.b16 %v1038, %v1034
    %v1511 = vpack.c.b16 %v1039, %v1035
    %v1512 = vpack.c.b16 %v1044, %v1040
    %v1513 = vpack.c.b16 %v1045, %v1041
    %v1514 = vpack.c.b16 %v1046, %v1042
    %v1515 = vpack.c.b16 %v1047, %v1043
    %v1516 = vpack.c.b16 %v1052, %v1048
    %v1517 = vpack.c.b16 %v1053, %v1049
    %v1518 = vpack.c.b16 %v1054, %v1050
    %v1519 = vpack.c.b16 %v1055, %v1051
    %v1520 = vpack.c.b16 %v1060, %v1056
    %v1521 = vpack.c.b16 %v1061, %v1057
    %v1522 = vpack.c.b16 %v1062, %v1058
    %v1523 = vpack.c.b16 %v1063, %v1059
    %v1524 = vpack.c.b16 %v1068, %v1064
    %v1525 = vpack.c.b16 %v1069, %v1065
    %v1526 = vpack.c.b16 %v1070, %v1066
    %v1527 = vpack.c.b16 %v1071, %v1067
    %v1528 = vpack.c.b16 %v1076, %v1072
    %v1529 = vpack.c.b16 %v1077, %v1073
    %v1530 = vpack.c.b16 %v1078, %v1074
    %v1531 = vpack.c.b16 %v1079, %v1075
    %v1532 = vpack.c.b16 %v1084, %v1080
    %v1533 = vpack.c.b16 %v1085, %v1081
    %v1534 = vpack.c.b16 %v1086, %v1082
    %v1535 = vpack.c.b16 %v1087, %v1083
    %v1536 = vpack.c.b16 %v1092, %v1088
    %v1537 = vpack.c.b16 %v1093, %v1089
    %v1538 = vpack.c.b16 %v1094, %v1090
    %v1539 = vpack.c.b16 %v1095, %v1091
    %v1540 = vpack.c.b16 %v1100, %v1096
    %v1541 = vpack.c.b16 %v1101, %v1097
    %v1542 = vpack.c.b16 %v1102, %v1098
    %v1543 = vpack.c.b16 %v1103, %v1099
    %v1544 = vpack.c.b16 %v1108, %v1104
    %v1545 = vpack.c.b16 %v1109, %v1105
    %v1546 = vpack.c.b16 %v1110, %v1106
    %v1547 = vpack.c.b16 %v1111, %v1107
    %v1548 = vpack.c.b16 %v1116, %v1112
    %v1549 = vpack.c.b16 %v1117, %v1113
    %v1550 = vpack.c.b16 %v1118, %v1114
    %v1551 = vpack.c.b16 %v1119, %v1115
    %v1552 = vpack.c.b16 %v1124, %v1120
    %v1553 = vpack.c.b16 %v1125, %v1121
    %v1554 = vpack.c.b16 %v1126, %v1122
    %v1555 = vpack.c.b16 %v1127, %v1123
    %v1556 = vpack.c.b16 %v1132, %v1128
    %v1557 = vpack.c.b16 %v1133, %v1129
    %v1558 = vpack.c.b16 %v1134, %v1130
    %v1559 = vpack.c.b16 %v1135, %v1131
    %v1560 = vpack.c.b16 %v1140, %v1136
    %v1561 = vpack.c.b16 %v1141, %v1137
    %v1562 = vpack.c.b16 %v1142, %v1138
    %v1563 = vpack.c.b16 %v1143, %v1139
    %v1564 = vpack.c.b16 %v1148, %v1144
    %v1565 = vpack.c.b16 %v1149, %v1145
    %v1566 = vpack.c.b16 %v1150, %v1146
    %v1567 = vpack.c.b16 %v1151, %v1147
    %v1568 = vpack.c.b16 %v1156, %v1152
    %v1569 = vpack.c.b16 %v1157, %v1153
    %v1570 = vpack.c.b16 %v1158, %v1154
    %v1571 = vpack.c.b16 %v1159, %v1155
    %v1572 = vpack.c.b16 %v1164, %v1160
    %v1573 = vpack.c.b16 %v1165, %v1161
    %v1574 = vpack.c.b16 %v1166, %v1162
    %v1575 = vpack.c.b16 %v1167, %v1163
    %v1576 = vpack.c.b16 %v1172, %v1168
    %v1577 = vpack.c.b16 %v1173, %v1169
    %v1578 = vpack.c.b16 %v1174, %v1170
    %v1579 = vpack.c.b16 %v1175, %v1171
    %v1580 = vpack.c.b16 %v1180, %v1176
    %v1581 = vpack.c.b16 %v1181, %v1177
    %v1582 = vpack.c.b16 %v1182, %v1178
    %v1583 = vpack.c.b16 %v1183, %v1179
    %v1584 = vpack.c.b16 %v1188, %v1184
    %v1585 = vpack.c.b16 %v1189, %v1185
    %v1586 = vpack.c.b16 %v1190, %v1186
    %v1587 = vpack.c.b16 %v1191, %v1187
    %v1588 = vpack.c.b16 %v1196, %v1192
    %v1589 = vpack.c.b16 %v1197, %v1193
    %v1590 = vpack.c.b16 %v1198, %v1194
    %v1591 = vpack.c.b16 %v1199, %v1195
    %v1592 = vpack.c.b16 %v1204, %v1200
    %v1593 = vpack.c.b16 %v1205, %v1201
    %v1594 = vpack.c.b16 %v1206, %v1202
    %v1595 = vpack.c.b16 %v1207, %v1203
    %v1596 = vpack.c.b16 %v1212, %v1208
    %v1597 = vpack.c.b16 %v1213, %v1209
    %v1598 = vpack.c.b16 %v1214, %v1210
    %v1599 = vpack.c.b16 %v1215, %v1211
    %v1600 = vpack.c.b16 %v1220, %v1216
    %v1601 = vpack.c.b16 %v1221, %v1217
    %v1602 = vpack.c.b16 %v1222, %v1218
    %v1603 = vpack.c.b16 %v1223, %v1219
    %v1604 = vpack.c.b16 %v1228, %v1224
    %v1605 = vpack.c.b16 %v1229, %v1225
    %v1606 = vpack.c.b16 %v1230, %v1226
    %v1607 = vpack.c.b16 %v1231, %v1227
    %v1608 = vpack.c.b16 %v1236, %v1232
    %v1609 = vpack.c.b16 %v1237, %v1233
    %v1610 = vpack.c.b16 %v1238, %v1234
    %v1611 = vpack.c.b16 %v1239, %v1235
    %v1612 = vpack.c.b16 %v1244, %v1240
    %v1613 = vpack.c.b16 %v1245, %v1241
    %v1614 = vpack.c.b16 %v1246, %v1242
    %v1615 = vpack.c.b16 %v1247, %v1243
    %v1616 = vpack.c.b16 %v1252, %v1248
    %v1617 = vpack.c.b16 %v1253, %v1249
    %v1618 = vpack.c.b16 %v1254, %v1250
    %v1619 = vpack.c.b16 %v1255, %v1251
    %v1620 = vpack.c.b16 %v1260, %v1256
    %v1621 = vpack.c.b16 %v1261, %v1257
    %v1622 = vpack.c.b16 %v1262, %v1258
    %v1623 = vpack.c.b16 %v1263, %v1259
    %v1624 = vpack.c.b16 %v1268, %v1264
    %v1625 = vpack.c.b16 %v1269, %v1265
    %v1626 = vpack.c.b16 %v1270, %v1266
    %v1627 = vpack.c.b16 %v1271, %v1267
    %v1628 = vpack.c.b16 %v1276, %v1272
    %v1629 = vpack.c.b16 %v1277, %v1273
    %v1630 = vpack.c.b16 %v1278, %v1274
    %v1631 = vpack.c.b16 %v1279, %v1275
    %v1632 = vpack.c.b16 %v1284, %v1280
    %v1633 = vpack.c.b16 %v1285, %v1281
    %v1634 = vpack.c.b16 %v1286, %v1282
    %v1635 = vpack.c.b16 %v1287, %v1283
    %v1636 = vpack.c.b16 %v1292, %v1288
    %v1637 = vpack.c.b16 %v1293, %v1289
    %v1638 = vpack.c.b16 %v1294, %v1290
    %v1639 = vpack.c.b16 %v1295, %v1291
    %v1640 = vpack.c.b16 %v1300, %v1296
    %v1641 = vpack.c.b16 %v1301, %v1297
    %v1642 = vpack.c.b16 %v1302, %v1298
    %v1643 = vpack.c.b16 %v1303, %v1299
    %v1644 = vpack.c.b16 %v1308, %v1304
    %v1645 = vpack.c.b16 %v1309, %v1305
    %v1646 = vpack.c.b16 %v1310, %v1306
    %v1647 = vpack.c.b16 %v1311, %v1307
    %v1648 = vpack.c.b16 %v1316, %v1312
    %v1649 = vpack.c.b16 %v1317, %v1313
    %v1650 = vpack.c.b16 %v1318, %v1314
    %v1651 = vpack.c.b16 %v1319, %v1315
    %v1652 = vpack.c.b16 %v1324, %v1320
    %v1653 = vpack.c.b16 %v1325, %v1321
    %v1654 = vpack.c.b16 %v1326, %v1322
    %v1655 = vpack.c.b16 %v1327, %v1323
    %v1656 = vpack.c.b16 %v1332, %v1328
    %v1657 = vpack.c.b16 %v1333, %v1329
    %v1658 = vpack.c.b16 %v1334, %v1330
    %v1659 = vpack.c.b16 %v1335, %v1331
    %v1660 = vpack.c.b16 %v1340, %v1336
    %v1661 = vpack.c.b16 %v1341, %v1337
    %v1662 = vpack.c.b16 %v1342, %v1338
    %v1663 = vpack.c.b16 %v1343, %v1339
    %v1664 = vpack.c.b16 %v1348, %v1344
    %v1665 = vpack.c.b16 %v1349, %v1345
    %v1666 = vpack.c.b16 %v1350, %v1346
    %v1667 = vpack.c.b16 %v1351, %v1347
    %v1668 = vpack.c.b16 %v1356, %v1352
    %v1669 = vpack.c.b16 %v1357, %v1353
    %v1670 = vpack.c.b16 %v1358, %v1354
    %v1671 = vpack.c.b16 %v1359, %v1355
    %v1672 = vpack.c.b16 %v1364, %v1360
    %v1673 = vpack.c.b16 %v1365, %v1361
    %v1674 = vpack.c.b16 %v1366, %v1362
    %v1675 = vpack.c.b16 %v1367, %v1363
    %v1676 = vpack.c.b16 %v1372, %v1368
    %v1677 = vpack.c.b16 %v1373, %v1369
    %v1678 = vpack.c.b16 %v1374, %v1370
    %v1679 = vpack.c.b16 %v1375, %v1371
    %v1680 = vpack.c.b16 %v1380, %v1376
    %v1681 = vpack.c.b16 %v1381, %v1377
    %v1682 = vpack.c.b16 %v1382, %v1378
    %v1683 = vpack.c.b16 %v1383, %v1379
    %v1684 = vpack.c.b16 %v1388, %v1384
    %v1685 = vpack.c.b16 %v1389, %v1385
    %v1686 = vpack.c.b16 %v1390, %v1386
    %v1687 = vpack.c.b16 %v1391, %v1387
    %v1688 = vpack.c.b16 %v1396, %v1392
    %v1689 = vpack.c.b16 %v1397, %v1393
    %v1690 = vpack.c.b16 %v1398, %v1394
    %v1691 = vpack.c.b16 %v1399, %v1395
    %v1692 = vpack.c.b16 %v1404, %v1400
    %v1693 = vpack.c.b16 %v1405, %v1401
    %v1694 = vpack.c.b16 %v1406, %v1402
    %v1695 = vpack.c.b16 %v1407, %v1403
    %v1696 = vpack.c.b16 %v1412, %v1408
    %v1697 = vpack.c.b16 %v1413, %v1409
    %v1698 = vpack.c.b16 %v1414, %v1410
    %v1699 = vpack.c.b16 %v1415, %v1411
    %v1700 = vpack.c.b16 %v1420, %v1416
    %v1701 = vpack.c.b16 %v1421, %v1417
    %v1702 = vpack.c.b16 %v1422, %v1418
    %v1703 = vpack.c.b16 %v1423, %v1419
    %v1704 = vpack.c.b16 %v1428, %v1424
    %v1705 = vpack.c.b16 %v1429, %v1425
    %v1706 = vpack.c.b16 %v1430, %v1426
    %v1707 = vpack.c.b16 %v1431, %v1427
    %v1708 = vpack.c.b16 %v1436, %v1432
    %v1709 = vpack.c.b16 %v1437, %v1433
    %v1710 = vpack.c.b16 %v1438, %v1434
    %v1711 = vpack.c.b16 %v1439, %v1435
    %v1712 = vpack.c.b16 %v1444, %v1440
    %v1713 = vpack.c.b16 %v1445, %v1441
    %v1714 = vpack.c.b16 %v1446, %v1442
    %v1715 = vpack.c.b16 %v1447, %v1443
    %v1716 = vpack.c.b16 %v1452, %v1448
    %v1717 = vpack.c.b16 %v1453, %v1449
    %v1718 = vpack.c.b16 %v1454, %v1450
    %v1719 = vpack.c.b16 %v1455, %v1451
    %v1720 = vpack.c.b16 %v1460, %v1456
    %v1721 = vpack.c.b16 %v1461, %v1457
    %v1722 = vpack.c.b16 %v1462, %v1458
    %v1723 = vpack.c.b16 %v1463, %v1459
    %v1724 = vpack.c.b16 %v1468, %v1464
    %v1725 = vpack.c.b16 %v1469, %v1465
    %v1726 = vpack.c.b16 %v1470, %v1466
    %v1727 = vpack.c.b16 %v1471, %v1467
    %1984 = vmatpush.bf16.msra.mxu0 %v1500
    %1985 = vmatpush.bf16.msra.mxu0 %v1496
    %1986 = vmatpush.bf16.msra.mxu0 %v1492
    %1987 = vmatpush.bf16.msra.mxu0 %v1488
    %1988 = vmatpush.bf16.msra.mxu0 %v1484
    %1989 = vmatpush.bf16.msra.mxu0 %v1480
    %1990 = vmatpush.bf16.msra.mxu0 %v1476
    %1991 = vmatpush.bf16.msra.mxu0 %v1472
    %1992 = vmatmul.bf16.gmra.mxu0 %v430
    %v1993 = vpop.f32.mrf.mxu0
    %v1994 = vadd.f32 %v696, %v1993
    %v1995 = vpop.f32.mrf.mxu0
    %1996 = vdwg.mxu0
    %1997 = vmatpush.bf16.msra.mxu0 %v1532
    %1998 = vmatpush.bf16.msra.mxu0 %v1528
    %1999 = vmatpush.bf16.msra.mxu0 %v1524
    %2000 = vmatpush.bf16.msra.mxu0 %v1520
    %2001 = vmatpush.bf16.msra.mxu0 %v1516
    %2002 = vmatpush.bf16.msra.mxu0 %v1512
    %2003 = vmatpush.bf16.msra.mxu0 %v1508
    %2004 = vmatpush.bf16.msra.mxu0 %v1504
    %2005 = vmatmul.bf16.gmra.mxu0 %v431
    %v2006 = vpop.f32.mrf.mxu0
    %v2007 = vadd.f32 %v1994, %v2006
    %v2008 = vpop.f32.mrf.mxu0
    %2009 = vdwg.mxu0
    %2010 = vmatpush.bf16.msra.mxu0 %v1564
    %2011 = vmatpush.bf16.msra.mxu0 %v1560
    %2012 = vmatpush.bf16.msra.mxu0 %v1556
    %2013 = vmatpush.bf16.msra.mxu0 %v1552
    %2014 = vmatpush.bf16.msra.mxu0 %v1548
    %2015 = vmatpush.bf16.msra.mxu0 %v1544
    %2016 = vmatpush.bf16.msra.mxu0 %v1540
    %2017 = vmatpush.bf16.msra.mxu0 %v1536
    %2018 = vmatmul.bf16.gmra.mxu0 %v432
    %v2019 = vpop.f32.mrf.mxu0
    %v2020 = vadd.f32 %v2007, %v2019
    %v2021 = vpop.f32.mrf.mxu0
    %2022 = vdwg.mxu0
    %2023 = vmatpush.bf16.msra.mxu0 %v1596
    %2024 = vmatpush.bf16.msra.mxu0 %v1592
    %2025 = vmatpush.bf16.msra.mxu0 %v1588
    %2026 = vmatpush.bf16.msra.mxu0 %v1584
    %2027 = vmatpush.bf16.msra.mxu0 %v1580
    %2028 = vmatpush.bf16.msra.mxu0 %v1576
    %2029 = vmatpush.bf16.msra.mxu0 %v1572
    %2030 = vmatpush.bf16.msra.mxu0 %v1568
    %2031 = vmatmul.bf16.gmra.mxu0 %v433
    %v2032 = vpop.f32.mrf.mxu0
    %v2033 = vadd.f32 %v2020, %v2032
    %v2034 = vpop.f32.mrf.mxu0
    %2035 = vdwg.mxu0
    %2036 = vmatpush.bf16.msra.mxu0 %v1628
    %2037 = vmatpush.bf16.msra.mxu0 %v1624
    %2038 = vmatpush.bf16.msra.mxu0 %v1620
    %2039 = vmatpush.bf16.msra.mxu0 %v1616
    %2040 = vmatpush.bf16.msra.mxu0 %v1612
    %2041 = vmatpush.bf16.msra.mxu0 %v1608
    %2042 = vmatpush.bf16.msra.mxu0 %v1604
    %2043 = vmatpush.bf16.msra.mxu0 %v1600
    %2044 = vmatmul.bf16.gmra.mxu0 %v434
    %v2045 = vpop.f32.mrf.mxu0
    %v2046 = vadd.f32 %v2033, %v2045
    %v2047 = vpop.f32.mrf.mxu0
    %2048 = vdwg.mxu0
    %2049 = vmatpush.bf16.msra.mxu0 %v1660
    %2050 = vmatpush.bf16.msra.mxu0 %v1656
    %2051 = vmatpush.bf16.msra.mxu0 %v1652
    %2052 = vmatpush.bf16.msra.mxu0 %v1648
    %2053 = vmatpush.bf16.msra.mxu0 %v1644
    %2054 = vmatpush.bf16.msra.mxu0 %v1640
    %2055 = vmatpush.bf16.msra.mxu0 %v1636
    %2056 = vmatpush.bf16.msra.mxu0 %v1632
    %2057 = vmatmul.bf16.gmra.mxu0 %v435
    %v2058 = vpop.f32.mrf.mxu0
    %v2059 = vadd.f32 %v2046, %v2058
    %v2060 = vpop.f32.mrf.mxu0
    %2061 = vdwg.mxu0
    %2062 = vmatpush.bf16.msra.mxu0 %v1692
    %2063 = vmatpush.bf16.msra.mxu0 %v1688
    %2064 = vmatpush.bf16.msra.mxu0 %v1684
    %2065 = vmatpush.bf16.msra.mxu0 %v1680
    %2066 = vmatpush.bf16.msra.mxu0 %v1676
    %2067 = vmatpush.bf16.msra.mxu0 %v1672
    %2068 = vmatpush.bf16.msra.mxu0 %v1668
    %2069 = vmatpush.bf16.msra.mxu0 %v1664
    %2070 = vmatmul.bf16.gmra.mxu0 %v436
    %v2071 = vpop.f32.mrf.mxu0
    %v2072 = vadd.f32 %v2059, %v2071
    %v2073 = vpop.f32.mrf.mxu0
    %2074 = vdwg.mxu0
    %2075 = vmatpush.bf16.msra.mxu0 %v1724
    %2076 = vmatpush.bf16.msra.mxu0 %v1720
    %2077 = vmatpush.bf16.msra.mxu0 %v1716
    %2078 = vmatpush.bf16.msra.mxu0 %v1712
    %2079 = vmatpush.bf16.msra.mxu0 %v1708
    %2080 = vmatpush.bf16.msra.mxu0 %v1704
    %2081 = vmatpush.bf16.msra.mxu0 %v1700
    %2082 = vmatpush.bf16.msra.mxu0 %v1696
    %2083 = vmatmul.bf16.gmra.mxu0 %v437
    %v2084 = vpop.f32.mrf.mxu0
    %v2085 = vadd.f32 %v2072, %v2084
    %v2086 = vpop.f32.mrf.mxu0
    %2087 = vdwg.mxu0
    %2088 = vmatpush.bf16.msra.mxu0 %v1501
    %2089 = vmatpush.bf16.msra.mxu0 %v1497
    %2090 = vmatpush.bf16.msra.mxu0 %v1493
    %2091 = vmatpush.bf16.msra.mxu0 %v1489
    %2092 = vmatpush.bf16.msra.mxu0 %v1485
    %2093 = vmatpush.bf16.msra.mxu0 %v1481
    %2094 = vmatpush.bf16.msra.mxu0 %v1477
    %2095 = vmatpush.bf16.msra.mxu0 %v1473
    %2096 = vmatmul.bf16.gmra.mxu0 %v430
    %v2097 = vpop.f32.mrf.mxu0
    %v2098 = vadd.f32 %v697, %v2097
    %v2099 = vpop.f32.mrf.mxu0
    %2100 = vdwg.mxu0
    %2101 = vmatpush.bf16.msra.mxu0 %v1533
    %2102 = vmatpush.bf16.msra.mxu0 %v1529
    %2103 = vmatpush.bf16.msra.mxu0 %v1525
    %2104 = vmatpush.bf16.msra.mxu0 %v1521
    %2105 = vmatpush.bf16.msra.mxu0 %v1517
    %2106 = vmatpush.bf16.msra.mxu0 %v1513
    %2107 = vmatpush.bf16.msra.mxu0 %v1509
    %2108 = vmatpush.bf16.msra.mxu0 %v1505
    %2109 = vmatmul.bf16.gmra.mxu0 %v431
    %v2110 = vpop.f32.mrf.mxu0
    %v2111 = vadd.f32 %v2098, %v2110
    %v2112 = vpop.f32.mrf.mxu0
    %2113 = vdwg.mxu0
    %2114 = vmatpush.bf16.msra.mxu0 %v1565
    %2115 = vmatpush.bf16.msra.mxu0 %v1561
    %2116 = vmatpush.bf16.msra.mxu0 %v1557
    %2117 = vmatpush.bf16.msra.mxu0 %v1553
    %2118 = vmatpush.bf16.msra.mxu0 %v1549
    %2119 = vmatpush.bf16.msra.mxu0 %v1545
    %2120 = vmatpush.bf16.msra.mxu0 %v1541
    %2121 = vmatpush.bf16.msra.mxu0 %v1537
    %2122 = vmatmul.bf16.gmra.mxu0 %v432
    %v2123 = vpop.f32.mrf.mxu0
    %v2124 = vadd.f32 %v2111, %v2123
    %v2125 = vpop.f32.mrf.mxu0
    %2126 = vdwg.mxu0
    %2127 = vmatpush.bf16.msra.mxu0 %v1597
    %2128 = vmatpush.bf16.msra.mxu0 %v1593
    %2129 = vmatpush.bf16.msra.mxu0 %v1589
    %2130 = vmatpush.bf16.msra.mxu0 %v1585
    %2131 = vmatpush.bf16.msra.mxu0 %v1581
    %2132 = vmatpush.bf16.msra.mxu0 %v1577
    %2133 = vmatpush.bf16.msra.mxu0 %v1573
    %2134 = vmatpush.bf16.msra.mxu0 %v1569
    %2135 = vmatmul.bf16.gmra.mxu0 %v433
    %v2136 = vpop.f32.mrf.mxu0
    %v2137 = vadd.f32 %v2124, %v2136
    %v2138 = vpop.f32.mrf.mxu0
    %2139 = vdwg.mxu0
    %2140 = vmatpush.bf16.msra.mxu0 %v1629
    %2141 = vmatpush.bf16.msra.mxu0 %v1625
    %2142 = vmatpush.bf16.msra.mxu0 %v1621
    %2143 = vmatpush.bf16.msra.mxu0 %v1617
    %2144 = vmatpush.bf16.msra.mxu0 %v1613
    %2145 = vmatpush.bf16.msra.mxu0 %v1609
    %2146 = vmatpush.bf16.msra.mxu0 %v1605
    %2147 = vmatpush.bf16.msra.mxu0 %v1601
    %2148 = vmatmul.bf16.gmra.mxu0 %v434
    %v2149 = vpop.f32.mrf.mxu0
    %v2150 = vadd.f32 %v2137, %v2149
    %v2151 = vpop.f32.mrf.mxu0
    %2152 = vdwg.mxu0
    %2153 = vmatpush.bf16.msra.mxu0 %v1661
    %2154 = vmatpush.bf16.msra.mxu0 %v1657
    %2155 = vmatpush.bf16.msra.mxu0 %v1653
    %2156 = vmatpush.bf16.msra.mxu0 %v1649
    %2157 = vmatpush.bf16.msra.mxu0 %v1645
    %2158 = vmatpush.bf16.msra.mxu0 %v1641
    %2159 = vmatpush.bf16.msra.mxu0 %v1637
    %2160 = vmatpush.bf16.msra.mxu0 %v1633
    %2161 = vmatmul.bf16.gmra.mxu0 %v435
    %v2162 = vpop.f32.mrf.mxu0
    %v2163 = vadd.f32 %v2150, %v2162
    %v2164 = vpop.f32.mrf.mxu0
    %2165 = vdwg.mxu0
    %2166 = vmatpush.bf16.msra.mxu0 %v1693
    %2167 = vmatpush.bf16.msra.mxu0 %v1689
    %2168 = vmatpush.bf16.msra.mxu0 %v1685
    %2169 = vmatpush.bf16.msra.mxu0 %v1681
    %2170 = vmatpush.bf16.msra.mxu0 %v1677
    %2171 = vmatpush.bf16.msra.mxu0 %v1673
    %2172 = vmatpush.bf16.msra.mxu0 %v1669
    %2173 = vmatpush.bf16.msra.mxu0 %v1665
    %2174 = vmatmul.bf16.gmra.mxu0 %v436
    %v2175 = vpop.f32.mrf.mxu0
    %v2176 = vadd.f32 %v2163, %v2175
    %v2177 = vpop.f32.mrf.mxu0
    %2178 = vdwg.mxu0
    %2179 = vmatpush.bf16.msra.mxu0 %v1725
    %2180 = vmatpush.bf16.msra.mxu0 %v1721
    %2181 = vmatpush.bf16.msra.mxu0 %v1717
    %2182 = vmatpush.bf16.msra.mxu0 %v1713
    %2183 = vmatpush.bf16.msra.mxu0 %v1709
    %2184 = vmatpush.bf16.msra.mxu0 %v1705
    %2185 = vmatpush.bf16.msra.mxu0 %v1701
    %2186 = vmatpush.bf16.msra.mxu0 %v1697
    %2187 = vmatmul.bf16.gmra.mxu0 %v437
    %v2188 = vpop.f32.mrf.mxu0
    %v2189 = vadd.f32 %v2176, %v2188
    %v2190 = vpop.f32.mrf.mxu0
    %2191 = vdwg.mxu0
    %2192 = vmatpush.bf16.msra.mxu0 %v1502
    %2193 = vmatpush.bf16.msra.mxu0 %v1498
    %2194 = vmatpush.bf16.msra.mxu0 %v1494
    %2195 = vmatpush.bf16.msra.mxu0 %v1490
    %2196 = vmatpush.bf16.msra.mxu0 %v1486
    %2197 = vmatpush.bf16.msra.mxu0 %v1482
    %2198 = vmatpush.bf16.msra.mxu0 %v1478
    %2199 = vmatpush.bf16.msra.mxu0 %v1474
    %2200 = vmatmul.bf16.gmra.mxu0 %v430
    %v2201 = vpop.f32.mrf.mxu0
    %v2202 = vadd.f32 %v698, %v2201
    %v2203 = vpop.f32.mrf.mxu0
    %2204 = vdwg.mxu0
    %2205 = vmatpush.bf16.msra.mxu0 %v1534
    %2206 = vmatpush.bf16.msra.mxu0 %v1530
    %2207 = vmatpush.bf16.msra.mxu0 %v1526
    %2208 = vmatpush.bf16.msra.mxu0 %v1522
    %2209 = vmatpush.bf16.msra.mxu0 %v1518
    %2210 = vmatpush.bf16.msra.mxu0 %v1514
    %2211 = vmatpush.bf16.msra.mxu0 %v1510
    %2212 = vmatpush.bf16.msra.mxu0 %v1506
    %2213 = vmatmul.bf16.gmra.mxu0 %v431
    %v2214 = vpop.f32.mrf.mxu0
    %v2215 = vadd.f32 %v2202, %v2214
    %v2216 = vpop.f32.mrf.mxu0
    %2217 = vdwg.mxu0
    %2218 = vmatpush.bf16.msra.mxu0 %v1566
    %2219 = vmatpush.bf16.msra.mxu0 %v1562
    %2220 = vmatpush.bf16.msra.mxu0 %v1558
    %2221 = vmatpush.bf16.msra.mxu0 %v1554
    %2222 = vmatpush.bf16.msra.mxu0 %v1550
    %2223 = vmatpush.bf16.msra.mxu0 %v1546
    %2224 = vmatpush.bf16.msra.mxu0 %v1542
    %2225 = vmatpush.bf16.msra.mxu0 %v1538
    %2226 = vmatmul.bf16.gmra.mxu0 %v432
    %v2227 = vpop.f32.mrf.mxu0
    %v2228 = vadd.f32 %v2215, %v2227
    %v2229 = vpop.f32.mrf.mxu0
    %2230 = vdwg.mxu0
    %2231 = vmatpush.bf16.msra.mxu0 %v1598
    %2232 = vmatpush.bf16.msra.mxu0 %v1594
    %2233 = vmatpush.bf16.msra.mxu0 %v1590
    %2234 = vmatpush.bf16.msra.mxu0 %v1586
    %2235 = vmatpush.bf16.msra.mxu0 %v1582
    %2236 = vmatpush.bf16.msra.mxu0 %v1578
    %2237 = vmatpush.bf16.msra.mxu0 %v1574
    %2238 = vmatpush.bf16.msra.mxu0 %v1570
    %2239 = vmatmul.bf16.gmra.mxu0 %v433
    %v2240 = vpop.f32.mrf.mxu0
    %v2241 = vadd.f32 %v2228, %v2240
    %v2242 = vpop.f32.mrf.mxu0
    %2243 = vdwg.mxu0
    %2244 = vmatpush.bf16.msra.mxu0 %v1630
    %2245 = vmatpush.bf16.msra.mxu0 %v1626
    %2246 = vmatpush.bf16.msra.mxu0 %v1622
    %2247 = vmatpush.bf16.msra.mxu0 %v1618
    %2248 = vmatpush.bf16.msra.mxu0 %v1614
    %2249 = vmatpush.bf16.msra.mxu0 %v1610
    %2250 = vmatpush.bf16.msra.mxu0 %v1606
    %2251 = vmatpush.bf16.msra.mxu0 %v1602
    %2252 = vmatmul.bf16.gmra.mxu0 %v434
    %v2253 = vpop.f32.mrf.mxu0
    %v2254 = vadd.f32 %v2241, %v2253
    %v2255 = vpop.f32.mrf.mxu0
    %2256 = vdwg.mxu0
    %2257 = vmatpush.bf16.msra.mxu0 %v1662
    %2258 = vmatpush.bf16.msra.mxu0 %v1658
    %2259 = vmatpush.bf16.msra.mxu0 %v1654
    %2260 = vmatpush.bf16.msra.mxu0 %v1650
    %2261 = vmatpush.bf16.msra.mxu0 %v1646
    %2262 = vmatpush.bf16.msra.mxu0 %v1642
    %2263 = vmatpush.bf16.msra.mxu0 %v1638
    %2264 = vmatpush.bf16.msra.mxu0 %v1634
    %2265 = vmatmul.bf16.gmra.mxu0 %v435
    %v2266 = vpop.f32.mrf.mxu0
    %v2267 = vadd.f32 %v2254, %v2266
    %v2268 = vpop.f32.mrf.mxu0
    %2269 = vdwg.mxu0
    %2270 = vmatpush.bf16.msra.mxu0 %v1694
    %2271 = vmatpush.bf16.msra.mxu0 %v1690
    %2272 = vmatpush.bf16.msra.mxu0 %v1686
    %2273 = vmatpush.bf16.msra.mxu0 %v1682
    %2274 = vmatpush.bf16.msra.mxu0 %v1678
    %2275 = vmatpush.bf16.msra.mxu0 %v1674
    %2276 = vmatpush.bf16.msra.mxu0 %v1670
    %2277 = vmatpush.bf16.msra.mxu0 %v1666
    %2278 = vmatmul.bf16.gmra.mxu0 %v436
    %v2279 = vpop.f32.mrf.mxu0
    %v2280 = vadd.f32 %v2267, %v2279
    %v2281 = vpop.f32.mrf.mxu0
    %2282 = vdwg.mxu0
    %2283 = vmatpush.bf16.msra.mxu0 %v1726
    %2284 = vmatpush.bf16.msra.mxu0 %v1722
    %2285 = vmatpush.bf16.msra.mxu0 %v1718
    %2286 = vmatpush.bf16.msra.mxu0 %v1714
    %2287 = vmatpush.bf16.msra.mxu0 %v1710
    %2288 = vmatpush.bf16.msra.mxu0 %v1706
    %2289 = vmatpush.bf16.msra.mxu0 %v1702
    %2290 = vmatpush.bf16.msra.mxu0 %v1698
    %2291 = vmatmul.bf16.gmra.mxu0 %v437
    %v2292 = vpop.f32.mrf.mxu0
    %v2293 = vadd.f32 %v2280, %v2292
    %v2294 = vpop.f32.mrf.mxu0
    %2295 = vdwg.mxu0
    %2296 = vmatpush.bf16.msra.mxu0 %v1503
    %2297 = vmatpush.bf16.msra.mxu0 %v1499
    %2298 = vmatpush.bf16.msra.mxu0 %v1495
    %2299 = vmatpush.bf16.msra.mxu0 %v1491
    %2300 = vmatpush.bf16.msra.mxu0 %v1487
    %2301 = vmatpush.bf16.msra.mxu0 %v1483
    %2302 = vmatpush.bf16.msra.mxu0 %v1479
    %2303 = vmatpush.bf16.msra.mxu0 %v1475
    %2304 = vmatmul.bf16.gmra.mxu0 %v430
    %v2305 = vpop.f32.mrf.mxu0
    %v2306 = vadd.f32 %v699, %v2305
    %v2307 = vpop.f32.mrf.mxu0
    %2308 = vdwg.mxu0
    %2309 = vmatpush.bf16.msra.mxu0 %v1535
    %2310 = vmatpush.bf16.msra.mxu0 %v1531
    %2311 = vmatpush.bf16.msra.mxu0 %v1527
    %2312 = vmatpush.bf16.msra.mxu0 %v1523
    %2313 = vmatpush.bf16.msra.mxu0 %v1519
    %2314 = vmatpush.bf16.msra.mxu0 %v1515
    %2315 = vmatpush.bf16.msra.mxu0 %v1511
    %2316 = vmatpush.bf16.msra.mxu0 %v1507
    %2317 = vmatmul.bf16.gmra.mxu0 %v431
    %v2318 = vpop.f32.mrf.mxu0
    %v2319 = vadd.f32 %v2306, %v2318
    %v2320 = vpop.f32.mrf.mxu0
    %2321 = vdwg.mxu0
    %2322 = vmatpush.bf16.msra.mxu0 %v1567
    %2323 = vmatpush.bf16.msra.mxu0 %v1563
    %2324 = vmatpush.bf16.msra.mxu0 %v1559
    %2325 = vmatpush.bf16.msra.mxu0 %v1555
    %2326 = vmatpush.bf16.msra.mxu0 %v1551
    %2327 = vmatpush.bf16.msra.mxu0 %v1547
    %2328 = vmatpush.bf16.msra.mxu0 %v1543
    %2329 = vmatpush.bf16.msra.mxu0 %v1539
    %2330 = vmatmul.bf16.gmra.mxu0 %v432
    %v2331 = vpop.f32.mrf.mxu0
    %v2332 = vadd.f32 %v2319, %v2331
    %v2333 = vpop.f32.mrf.mxu0
    %2334 = vdwg.mxu0
    %2335 = vmatpush.bf16.msra.mxu0 %v1599
    %2336 = vmatpush.bf16.msra.mxu0 %v1595
    %2337 = vmatpush.bf16.msra.mxu0 %v1591
    %2338 = vmatpush.bf16.msra.mxu0 %v1587
    %2339 = vmatpush.bf16.msra.mxu0 %v1583
    %2340 = vmatpush.bf16.msra.mxu0 %v1579
    %2341 = vmatpush.bf16.msra.mxu0 %v1575
    %2342 = vmatpush.bf16.msra.mxu0 %v1571
    %2343 = vmatmul.bf16.gmra.mxu0 %v433
    %v2344 = vpop.f32.mrf.mxu0
    %v2345 = vadd.f32 %v2332, %v2344
    %v2346 = vpop.f32.mrf.mxu0
    %2347 = vdwg.mxu0
    %2348 = vmatpush.bf16.msra.mxu0 %v1631
    %2349 = vmatpush.bf16.msra.mxu0 %v1627
    %2350 = vmatpush.bf16.msra.mxu0 %v1623
    %2351 = vmatpush.bf16.msra.mxu0 %v1619
    %2352 = vmatpush.bf16.msra.mxu0 %v1615
    %2353 = vmatpush.bf16.msra.mxu0 %v1611
    %2354 = vmatpush.bf16.msra.mxu0 %v1607
    %2355 = vmatpush.bf16.msra.mxu0 %v1603
    %2356 = vmatmul.bf16.gmra.mxu0 %v434
    %v2357 = vpop.f32.mrf.mxu0
    %v2358 = vadd.f32 %v2345, %v2357
    %v2359 = vpop.f32.mrf.mxu0
    %2360 = vdwg.mxu0
    %2361 = vmatpush.bf16.msra.mxu0 %v1663
    %2362 = vmatpush.bf16.msra.mxu0 %v1659
    %2363 = vmatpush.bf16.msra.mxu0 %v1655
    %2364 = vmatpush.bf16.msra.mxu0 %v1651
    %2365 = vmatpush.bf16.msra.mxu0 %v1647
    %2366 = vmatpush.bf16.msra.mxu0 %v1643
    %2367 = vmatpush.bf16.msra.mxu0 %v1639
    %2368 = vmatpush.bf16.msra.mxu0 %v1635
    %2369 = vmatmul.bf16.gmra.mxu0 %v435
    %v2370 = vpop.f32.mrf.mxu0
    %v2371 = vadd.f32 %v2358, %v2370
    %v2372 = vpop.f32.mrf.mxu0
    %2373 = vdwg.mxu0
    %2374 = vmatpush.bf16.msra.mxu0 %v1695
    %2375 = vmatpush.bf16.msra.mxu0 %v1691
    %2376 = vmatpush.bf16.msra.mxu0 %v1687
    %2377 = vmatpush.bf16.msra.mxu0 %v1683
    %2378 = vmatpush.bf16.msra.mxu0 %v1679
    %2379 = vmatpush.bf16.msra.mxu0 %v1675
    %2380 = vmatpush.bf16.msra.mxu0 %v1671
    %2381 = vmatpush.bf16.msra.mxu0 %v1667
    %2382 = vmatmul.bf16.gmra.mxu0 %v436
    %v2383 = vpop.f32.mrf.mxu0
    %v2384 = vadd.f32 %v2371, %v2383
    %v2385 = vpop.f32.mrf.mxu0
    %2386 = vdwg.mxu0
    %2387 = vmatpush.bf16.msra.mxu0 %v1727
    %2388 = vmatpush.bf16.msra.mxu0 %v1723
    %2389 = vmatpush.bf16.msra.mxu0 %v1719
    %2390 = vmatpush.bf16.msra.mxu0 %v1715
    %2391 = vmatpush.bf16.msra.mxu0 %v1711
    %2392 = vmatpush.bf16.msra.mxu0 %v1707
    %2393 = vmatpush.bf16.msra.mxu0 %v1703
    %2394 = vmatpush.bf16.msra.mxu0 %v1699
    %2395 = vmatmul.bf16.gmra.mxu0 %v437
    %v2396 = vpop.f32.mrf.mxu0
    %v2397 = vadd.f32 %v2384, %v2396
    %v2398 = vpop.f32.mrf.mxu0
    %2399 = vdwg.mxu0
    %v2400 = vmax.f32 %v2085, 0.0
    %v2401 = vmax.f32 %v2189, 0.0
    %v2402 = vmax.f32 %v2293, 0.0
    %v2403 = vmax.f32 %v2397, 0.0
    %v2404 = vpack.c.bf16 %v2400, %v2400
    %v2405 = vpack.c.bf16 %v2401, %v2401
    %v2406 = vpack.c.bf16 %v2402, %v2402
    %v2407 = vpack.c.bf16 %v2403, %v2403
    %v2408 = vld [vmem:[#allocation11] sm:$0xff]
    %v2409 = vld [vmem:[#allocation11 + $0x8] sm:$0xff]
    %v2410 = vld [vmem:[#allocation11 + $0x10] sm:$0xf]
    %v2411 = vld [vmem:[#allocation11 + $0x14] sm:$0xff]
    %v2412 = vld [vmem:[#allocation11 + $0x1c] sm:$0xff]
    %v2413 = vld [vmem:[#allocation11 + $0x24] sm:$0xf]
    %v2414 = vld [vmem:[#allocation11 + $0x28] sm:$0xff]
    %v2415 = vld [vmem:[#allocation11 + $0x30] sm:$0xff]
    %v2416 = vld [vmem:[#allocation11 + $0x38] sm:$0xf]
    %v2417 = vld [vmem:[#allocation11 + $0x3c] sm:$0xff]
    %v2418 = vld [vmem:[#allocation11 + $0x44] sm:$0xff]
    %v2419 = vld [vmem:[#allocation11 + $0x4c] sm:$0xf]
    %v2420 = vld [vmem:[#allocation11 + $0x50] sm:$0xff]
    %v2421 = vld [vmem:[#allocation11 + $0x58] sm:$0xff]
    %v2422 = vld [vmem:[#allocation11 + $0x60] sm:$0xf]
    %v2423 = vld [vmem:[#allocation11 + $0x64] sm:$0xff]
    %v2424 = vld [vmem:[#allocation11 + $0x6c] sm:$0xff]
    %v2425 = vld [vmem:[#allocation11 + $0x74] sm:$0xf]
    %v2426 = vld [vmem:[#allocation11 + $0x78] sm:$0xff]
    %v2427 = vld [vmem:[#allocation11 + $0x80] sm:$0xff]
    %v2428 = vld [vmem:[#allocation11 + $0x88] sm:$0xf]
    %v2429 = vld [vmem:[#allocation11 + $0x8c] sm:$0xff]
    %v2430 = vld [vmem:[#allocation11 + $0x94] sm:$0xff]
    %v2431 = vld [vmem:[#allocation11 + $0x9c] sm:$0xf]
    %v2432 = vld [vmem:[#allocation11 + $0xa0] sm:$0xff]
    %v2433 = vld [vmem:[#allocation11 + $0xa8] sm:$0xff]
    %v2434 = vld [vmem:[#allocation11 + $0xb0] sm:$0xf]
    %v2435 = vld [vmem:[#allocation11 + $0xb4] sm:$0xff]
    %v2436 = vld [vmem:[#allocation11 + $0xbc] sm:$0xff]
    %v2437 = vld [vmem:[#allocation11 + $0xc4] sm:$0xf]
    %v2438 = vld [vmem:[#allocation11 + $0xc8] sm:$0xff]
    %v2439 = vld [vmem:[#allocation11 + $0xd0] sm:$0xff]
    %v2440 = vld [vmem:[#allocation11 + $0xd8] sm:$0xf]
    %v2441 = vld [vmem:[#allocation11 + $0xdc] sm:$0xff]
    %v2442 = vld [vmem:[#allocation11 + $0xe4] sm:$0xff]
    %v2443 = vld [vmem:[#allocation11 + $0xec] sm:$0xf]
    %v2444 = vld [vmem:[#allocation11 + $0xf0] sm:$0xff]
    %v2445 = vld [vmem:[#allocation11 + $0xf8] sm:$0xff]
    %v2446 = vld [vmem:[#allocation11 + $0x100] sm:$0xf]
    %v2447 = vld [vmem:[#allocation11 + $0x104] sm:$0xff]
    %v2448 = vld [vmem:[#allocation11 + $0x10c] sm:$0xff]
    %v2449 = vld [vmem:[#allocation11 + $0x114] sm:$0xf]
    %v2450 = vld [vmem:[#allocation11 + $0x118] sm:$0xff]
    %v2451 = vld [vmem:[#allocation11 + $0x120] sm:$0xff]
    %v2452 = vld [vmem:[#allocation11 + $0x128] sm:$0xf]
    %v2453 = vld [vmem:[#allocation11 + $0x12c] sm:$0xff]
    %v2454 = vld [vmem:[#allocation11 + $0x134] sm:$0xff]
    %v2455 = vld [vmem:[#allocation11 + $0x13c] sm:$0xf]
    %v2456 = vld [vmem:[#allocation11 + $0x140] sm:$0xff]
    %v2457 = vld [vmem:[#allocation11 + $0x148] sm:$0xff]
    %v2458 = vld [vmem:[#allocation11 + $0x150] sm:$0xf]
    %v2459 = vld [vmem:[#allocation11 + $0x154] sm:$0xff]
    %v2460 = vld [vmem:[#allocation11 + $0x15c] sm:$0xff]
    %v2461 = vld [vmem:[#allocation11 + $0x164] sm:$0xf]
    %v2462 = vld [vmem:[#allocation11 + $0x168] sm:$0xff]
    %v2463 = vld [vmem:[#allocation11 + $0x170] sm:$0xff]
    %v2464 = vld [vmem:[#allocation11 + $0x178] sm:$0xf]
    %v2465 = vld [vmem:[#allocation11 + $0x17c] sm:$0xff]
    %v2466 = vld [vmem:[#allocation11 + $0x184] sm:$0xff]
    %v2467 = vld [vmem:[#allocation11 + $0x18c] sm:$0xf]
    %v2468 = vld [vmem:[#allocation11 + $0x190] sm:$0xff]
    %v2469 = vld [vmem:[#allocation11 + $0x198] sm:$0xff]
    %v2470 = vld [vmem:[#allocation11 + $0x1a0] sm:$0xf]
    %v2471 = vld [vmem:[#allocation11 + $0x1a4] sm:$0xff]
    %v2472 = vld [vmem:[#allocation11 + $0x1ac] sm:$0xff]
    %v2473 = vld [vmem:[#allocation11 + $0x1b4] sm:$0xf]
    %v2474 = vld [vmem:[#allocation11 + $0x1b8] sm:$0xff]
    %v2475 = vld [vmem:[#allocation11 + $0x1c0] sm:$0xff]
    %v2476 = vld [vmem:[#allocation11 + $0x1c8] sm:$0xf]
    %v2477 = vld [vmem:[#allocation11 + $0x1cc] sm:$0xff]
    %v2478 = vld [vmem:[#allocation11 + $0x1d4] sm:$0xff]
    %v2479 = vld [vmem:[#allocation11 + $0x1dc] sm:$0xf]
    %v2480 = vld [vmem:[#allocation11 + $0x1e0] sm:$0xff]
    %v2481 = vld [vmem:[#allocation11 + $0x1e8] sm:$0xff]
    %v2482 = vld [vmem:[#allocation11 + $0x1f0] sm:$0xf]
    %v2483 = vld [vmem:[#allocation11 + $0x1f4] sm:$0xff]
    %v2484 = vld [vmem:[#allocation11 + $0x1fc] sm:$0xff]
    %v2485 = vld [vmem:[#allocation11 + $0x204] sm:$0xf]
    %v2486 = vld [vmem:[#allocation11 + $0x208] sm:$0xff]
    %v2487 = vld [vmem:[#allocation11 + $0x210] sm:$0xff]
    %v2488 = vld [vmem:[#allocation11 + $0x218] sm:$0xf]
    %v2489 = vld [vmem:[#allocation11 + $0x21c] sm:$0xff]
    %v2490 = vld [vmem:[#allocation11 + $0x224] sm:$0xff]
    %v2491 = vld [vmem:[#allocation11 + $0x22c] sm:$0xf]
    %v2492 = vld [vmem:[#allocation11 + $0x230] sm:$0xff]
    %v2493 = vld [vmem:[#allocation11 + $0x238] sm:$0xff]
    %v2494 = vld [vmem:[#allocation11 + $0x240] sm:$0xf]
    %v2495 = vld [vmem:[#allocation11 + $0x244] sm:$0xff]
    %v2496 = vld [vmem:[#allocation11 + $0x24c] sm:$0xff]
    %v2497 = vld [vmem:[#allocation11 + $0x254] sm:$0xf]
    %v2498 = vld [vmem:[#allocation11 + $0x258] sm:$0xff]
    %v2499 = vld [vmem:[#allocation11 + $0x260] sm:$0xff]
    %v2500 = vld [vmem:[#allocation11 + $0x268] sm:$0xf]
    %v2501 = vld [vmem:[#allocation11 + $0x26c] sm:$0xff]
    %v2502 = vld [vmem:[#allocation11 + $0x274] sm:$0xff]
    %v2503 = vld [vmem:[#allocation11 + $0x27c] sm:$0xf]
    %v2504 = vld [vmem:[#allocation11 + $0x280] sm:$0xff]
    %v2505 = vld [vmem:[#allocation11 + $0x288] sm:$0xff]
    %v2506 = vld [vmem:[#allocation11 + $0x290] sm:$0xf]
    %v2507 = vld [vmem:[#allocation11 + $0x294] sm:$0xff]
    %v2508 = vld [vmem:[#allocation11 + $0x29c] sm:$0xff]
    %v2509 = vld [vmem:[#allocation11 + $0x2a4] sm:$0xf]
    %v2510 = vld [vmem:[#allocation11 + $0x2a8] sm:$0xff]
    %v2511 = vld [vmem:[#allocation11 + $0x2b0] sm:$0xff]
    %v2512 = vld [vmem:[#allocation11 + $0x2b8] sm:$0xf]
    %v2513 = vld [vmem:[#allocation11 + $0x2bc] sm:$0xff]
    %v2514 = vld [vmem:[#allocation11 + $0x2c4] sm:$0xff]
    %v2515 = vld [vmem:[#allocation11 + $0x2cc] sm:$0xf]
    %v2516 = vld [vmem:[#allocation11 + $0x2d0] sm:$0xff]
    %v2517 = vld [vmem:[#allocation11 + $0x2d8] sm:$0xff]
    %v2518 = vld [vmem:[#allocation11 + $0x2e0] sm:$0xf]
    %v2519 = vld [vmem:[#allocation11 + $0x2e4] sm:$0xff]
    %v2520 = vld [vmem:[#allocation11 + $0x2ec] sm:$0xff]
    %v2521 = vld [vmem:[#allocation11 + $0x2f4] sm:$0xf]
    %v2522 = vld [vmem:[#allocation11 + $0x2f8] sm:$0xff]
    %v2523 = vld [vmem:[#allocation11 + $0x300] sm:$0xff]
    %v2524 = vld [vmem:[#allocation11 + $0x308] sm:$0xf]
    %v2525 = vld [vmem:[#allocation11 + $0x30c] sm:$0xff]
    %v2526 = vld [vmem:[#allocation11 + $0x314] sm:$0xff]
    %v2527 = vld [vmem:[#allocation11 + $0x31c] sm:$0xf]
    %v2528 = vld [vmem:[#allocation11 + $0x320] sm:$0xff]
    %v2529 = vld [vmem:[#allocation11 + $0x328] sm:$0xff]
    %v2530 = vld [vmem:[#allocation11 + $0x330] sm:$0xf]
    %v2531 = vld [vmem:[#allocation11 + $0x334] sm:$0xff]
    %v2532 = vld [vmem:[#allocation11 + $0x33c] sm:$0xff]
    %v2533 = vld [vmem:[#allocation11 + $0x344] sm:$0xf]
    %v2534 = vld [vmem:[#allocation11 + $0x348] sm:$0xff]
    %v2535 = vld [vmem:[#allocation11 + $0x350] sm:$0xff]
    %v2536 = vld [vmem:[#allocation11 + $0x358] sm:$0xf]
    %v2537 = vld [vmem:[#allocation11 + $0x35c] sm:$0xff]
    %v2538 = vld [vmem:[#allocation11 + $0x364] sm:$0xff]
    %v2539 = vld [vmem:[#allocation11 + $0x36c] sm:$0xf]
    %v2540 = vld [vmem:[#allocation11 + $0x370] sm:$0xff]
    %v2541 = vld [vmem:[#allocation11 + $0x378] sm:$0xff]
    %v2542 = vld [vmem:[#allocation11 + $0x380] sm:$0xf]
    %v2543 = vld [vmem:[#allocation11 + $0x384] sm:$0xff]
    %v2544 = vld [vmem:[#allocation11 + $0x38c] sm:$0xff]
    %v2545 = vld [vmem:[#allocation11 + $0x394] sm:$0xf]
    %v2546 = vld [vmem:[#allocation11 + $0x398] sm:$0xff]
    %v2547 = vld [vmem:[#allocation11 + $0x3a0] sm:$0xff]
    %v2548 = vld [vmem:[#allocation11 + $0x3a8] sm:$0xf]
    %v2549 = vld [vmem:[#allocation11 + $0x3ac] sm:$0xff]
    %v2550 = vld [vmem:[#allocation11 + $0x3b4] sm:$0xff]
    %v2551 = vld [vmem:[#allocation11 + $0x3bc] sm:$0xf]
    %v2552 = vld [vmem:[#allocation11 + $0x3c0] sm:$0xff]
    %v2553 = vld [vmem:[#allocation11 + $0x3c8] sm:$0xff]
    %v2554 = vld [vmem:[#allocation11 + $0x3d0] sm:$0xf]
    %v2555 = vld [vmem:[#allocation11 + $0x3d4] sm:$0xff]
    %v2556 = vld [vmem:[#allocation11 + $0x3dc] sm:$0xff]
    %v2557 = vld [vmem:[#allocation11 + $0x3e4] sm:$0xf]
    %v2558 = vld [vmem:[#allocation11 + $0x3e8] sm:$0xff]
    %v2559 = vld [vmem:[#allocation11 + $0x3f0] sm:$0xff]
    %v2560 = vld [vmem:[#allocation11 + $0x3f8] sm:$0xf]
    %v2561 = vld [vmem:[#allocation11 + $0x3fc] sm:$0xff]
    %v2562 = vld [vmem:[#allocation11 + $0x404] sm:$0xff]
    %v2563 = vld [vmem:[#allocation11 + $0x40c] sm:$0xf]
    %v2564 = vld [vmem:[#allocation11 + $0x410] sm:$0xff]
    %v2565 = vld [vmem:[#allocation11 + $0x418] sm:$0xff]
    %v2566 = vld [vmem:[#allocation11 + $0x420] sm:$0xf]
    %v2567 = vld [vmem:[#allocation11 + $0x424] sm:$0xff]
    %v2568 = vld [vmem:[#allocation11 + $0x42c] sm:$0xff]
    %v2569 = vld [vmem:[#allocation11 + $0x434] sm:$0xf]
    %v2570 = vld [vmem:[#allocation11 + $0x438] sm:$0xff]
    %v2571 = vld [vmem:[#allocation11 + $0x440] sm:$0xff]
    %v2572 = vld [vmem:[#allocation11 + $0x448] sm:$0xf]
    %v2573 = vld [vmem:[#allocation11 + $0x44c] sm:$0xff]
    %v2574 = vld [vmem:[#allocation11 + $0x454] sm:$0xff]
    %v2575 = vld [vmem:[#allocation11 + $0x45c] sm:$0xf]
    %v2576 = vld [vmem:[#allocation11 + $0x460] sm:$0xff]
    %v2577 = vld [vmem:[#allocation11 + $0x468] sm:$0xff]
    %v2578 = vld [vmem:[#allocation11 + $0x470] sm:$0xf]
    %v2579 = vld [vmem:[#allocation11 + $0x474] sm:$0xff]
    %v2580 = vld [vmem:[#allocation11 + $0x47c] sm:$0xff]
    %v2581 = vld [vmem:[#allocation11 + $0x484] sm:$0xf]
    %v2582 = vld [vmem:[#allocation11 + $0x488] sm:$0xff]
    %v2583 = vld [vmem:[#allocation11 + $0x490] sm:$0xff]
    %v2584 = vld [vmem:[#allocation11 + $0x498] sm:$0xf]
    %v2585 = vld [vmem:[#allocation11 + $0x49c] sm:$0xff]
    %v2586 = vld [vmem:[#allocation11 + $0x4a4] sm:$0xff]
    %v2587 = vld [vmem:[#allocation11 + $0x4ac] sm:$0xf]
    %v2588 = vld [vmem:[#allocation11 + $0x4b0] sm:$0xff]
    %v2589 = vld [vmem:[#allocation11 + $0x4b8] sm:$0xff]
    %v2590 = vld [vmem:[#allocation11 + $0x4c0] sm:$0xf]
    %v2591 = vld [vmem:[#allocation11 + $0x4c4] sm:$0xff]
    %v2592 = vld [vmem:[#allocation11 + $0x4cc] sm:$0xff]
    %v2593 = vld [vmem:[#allocation11 + $0x4d4] sm:$0xf]
    %v2594 = vld [vmem:[#allocation11 + $0x4d8] sm:$0xff]
    %v2595 = vld [vmem:[#allocation11 + $0x4e0] sm:$0xff]
    %v2596 = vld [vmem:[#allocation11 + $0x4e8] sm:$0xf]
    %v2597 = vld [vmem:[#allocation11 + $0x4ec] sm:$0xff]
    %v2598 = vld [vmem:[#allocation11 + $0x4f4] sm:$0xff]
    %v2599 = vld [vmem:[#allocation11 + $0x4fc] sm:$0xf]
    %v2600 = vld [vmem:[#allocation13] sm:$0x1f]
    %v2602 = vperm.slane %v2600, 0
    %v2603 = vperm.slane %v2600, 1
    %v2604 = vperm.slane %v2600, 2
    %v2605 = vperm.slane %v2600, 3
    %v2606 = vperm.slane %v2600, 4
    %v2804 = vunpack.c.l.b16 %v2408
    %v2805 = vunpack.c.h.b16 %v2408
    %v2806 = vunpack.c.l.b16 %v2409
    %v2807 = vunpack.c.h.b16 %v2409
    %v2808 = vunpack.c.l.b16 %v2410
    %v2809 = vunpack.c.l.b16 %v2411
    %v2810 = vunpack.c.h.b16 %v2411
    %v2811 = vunpack.c.l.b16 %v2412
    %v2812 = vunpack.c.h.b16 %v2412
    %v2813 = vunpack.c.l.b16 %v2413
    %v2814 = vunpack.c.l.b16 %v2414
    %v2815 = vunpack.c.h.b16 %v2414
    %v2816 = vunpack.c.l.b16 %v2415
    %v2817 = vunpack.c.h.b16 %v2415
    %v2818 = vunpack.c.l.b16 %v2416
    %v2819 = vunpack.c.l.b16 %v2417
    %v2820 = vunpack.c.h.b16 %v2417
    %v2821 = vunpack.c.l.b16 %v2418
    %v2822 = vunpack.c.h.b16 %v2418
    %v2823 = vunpack.c.l.b16 %v2419
    %v2824 = vunpack.c.l.b16 %v2420
    %v2825 = vunpack.c.h.b16 %v2420
    %v2826 = vunpack.c.l.b16 %v2421
    %v2827 = vunpack.c.h.b16 %v2421
    %v2828 = vunpack.c.l.b16 %v2422
    %v2829 = vunpack.c.l.b16 %v2423
    %v2830 = vunpack.c.h.b16 %v2423
    %v2831 = vunpack.c.l.b16 %v2424
    %v2832 = vunpack.c.h.b16 %v2424
    %v2833 = vunpack.c.l.b16 %v2425
    %v2834 = vunpack.c.l.b16 %v2426
    %v2835 = vunpack.c.h.b16 %v2426
    %v2836 = vunpack.c.l.b16 %v2427
    %v2837 = vunpack.c.h.b16 %v2427
    %v2838 = vunpack.c.l.b16 %v2428
    %v2839 = vunpack.c.l.b16 %v2429
    %v2840 = vunpack.c.h.b16 %v2429
    %v2841 = vunpack.c.l.b16 %v2430
    %v2842 = vunpack.c.h.b16 %v2430
    %v2843 = vunpack.c.l.b16 %v2431
    %v2844 = vunpack.c.l.b16 %v2432
    %v2845 = vunpack.c.h.b16 %v2432
    %v2846 = vunpack.c.l.b16 %v2433
    %v2847 = vunpack.c.h.b16 %v2433
    %v2848 = vunpack.c.l.b16 %v2434
    %v2849 = vunpack.c.l.b16 %v2435
    %v2850 = vunpack.c.h.b16 %v2435
    %v2851 = vunpack.c.l.b16 %v2436
    %v2852 = vunpack.c.h.b16 %v2436
    %v2853 = vunpack.c.l.b16 %v2437
    %v2854 = vunpack.c.l.b16 %v2438
    %v2855 = vunpack.c.h.b16 %v2438
    %v2856 = vunpack.c.l.b16 %v2439
    %v2857 = vunpack.c.h.b16 %v2439
    %v2858 = vunpack.c.l.b16 %v2440
    %v2859 = vunpack.c.l.b16 %v2441
    %v2860 = vunpack.c.h.b16 %v2441
    %v2861 = vunpack.c.l.b16 %v2442
    %v2862 = vunpack.c.h.b16 %v2442
    %v2863 = vunpack.c.l.b16 %v2443
    %v2864 = vunpack.c.l.b16 %v2444
    %v2865 = vunpack.c.h.b16 %v2444
    %v2866 = vunpack.c.l.b16 %v2445
    %v2867 = vunpack.c.h.b16 %v2445
    %v2868 = vunpack.c.l.b16 %v2446
    %v2869 = vunpack.c.l.b16 %v2447
    %v2870 = vunpack.c.h.b16 %v2447
    %v2871 = vunpack.c.l.b16 %v2448
    %v2872 = vunpack.c.h.b16 %v2448
    %v2873 = vunpack.c.l.b16 %v2449
    %v2874 = vunpack.c.l.b16 %v2450
    %v2875 = vunpack.c.h.b16 %v2450
    %v2876 = vunpack.c.l.b16 %v2451
    %v2877 = vunpack.c.h.b16 %v2451
    %v2878 = vunpack.c.l.b16 %v2452
    %v2879 = vunpack.c.l.b16 %v2453
    %v2880 = vunpack.c.h.b16 %v2453
    %v2881 = vunpack.c.l.b16 %v2454
    %v2882 = vunpack.c.h.b16 %v2454
    %v2883 = vunpack.c.l.b16 %v2455
    %v2884 = vunpack.c.l.b16 %v2456
    %v2885 = vunpack.c.h.b16 %v2456
    %v2886 = vunpack.c.l.b16 %v2457
    %v2887 = vunpack.c.h.b16 %v2457
    %v2888 = vunpack.c.l.b16 %v2458
    %v2889 = vunpack.c.l.b16 %v2459
    %v2890 = vunpack.c.h.b16 %v2459
    %v2891 = vunpack.c.l.b16 %v2460
    %v2892 = vunpack.c.h.b16 %v2460
    %v2893 = vunpack.c.l.b16 %v2461
    %v2894 = vunpack.c.l.b16 %v2462
    %v2895 = vunpack.c.h.b16 %v2462
    %v2896 = vunpack.c.l.b16 %v2463
    %v2897 = vunpack.c.h.b16 %v2463
    %v2898 = vunpack.c.l.b16 %v2464
    %v2899 = vunpack.c.l.b16 %v2465
    %v2900 = vunpack.c.h.b16 %v2465
    %v2901 = vunpack.c.l.b16 %v2466
    %v2902 = vunpack.c.h.b16 %v2466
    %v2903 = vunpack.c.l.b16 %v2467
    %v2904 = vunpack.c.l.b16 %v2468
    %v2905 = vunpack.c.h.b16 %v2468
    %v2906 = vunpack.c.l.b16 %v2469
    %v2907 = vunpack.c.h.b16 %v2469
    %v2908 = vunpack.c.l.b16 %v2470
    %v2909 = vunpack.c.l.b16 %v2471
    %v2910 = vunpack.c.h.b16 %v2471
    %v2911 = vunpack.c.l.b16 %v2472
    %v2912 = vunpack.c.h.b16 %v2472
    %v2913 = vunpack.c.l.b16 %v2473
    %v2914 = vunpack.c.l.b16 %v2474
    %v2915 = vunpack.c.h.b16 %v2474
    %v2916 = vunpack.c.l.b16 %v2475
    %v2917 = vunpack.c.h.b16 %v2475
    %v2918 = vunpack.c.l.b16 %v2476
    %v2919 = vunpack.c.l.b16 %v2477
    %v2920 = vunpack.c.h.b16 %v2477
    %v2921 = vunpack.c.l.b16 %v2478
    %v2922 = vunpack.c.h.b16 %v2478
    %v2923 = vunpack.c.l.b16 %v2479
    %v2924 = vunpack.c.l.b16 %v2480
    %v2925 = vunpack.c.h.b16 %v2480
    %v2926 = vunpack.c.l.b16 %v2481
    %v2927 = vunpack.c.h.b16 %v2481
    %v2928 = vunpack.c.l.b16 %v2482
    %v2929 = vunpack.c.l.b16 %v2483
    %v2930 = vunpack.c.h.b16 %v2483
    %v2931 = vunpack.c.l.b16 %v2484
    %v2932 = vunpack.c.h.b16 %v2484
    %v2933 = vunpack.c.l.b16 %v2485
    %v2934 = vunpack.c.l.b16 %v2486
    %v2935 = vunpack.c.h.b16 %v2486
    %v2936 = vunpack.c.l.b16 %v2487
    %v2937 = vunpack.c.h.b16 %v2487
    %v2938 = vunpack.c.l.b16 %v2488
    %v2939 = vunpack.c.l.b16 %v2489
    %v2940 = vunpack.c.h.b16 %v2489
    %v2941 = vunpack.c.l.b16 %v2490
    %v2942 = vunpack.c.h.b16 %v2490
    %v2943 = vunpack.c.l.b16 %v2491
    %v2944 = vunpack.c.l.b16 %v2492
    %v2945 = vunpack.c.h.b16 %v2492
    %v2946 = vunpack.c.l.b16 %v2493
    %v2947 = vunpack.c.h.b16 %v2493
    %v2948 = vunpack.c.l.b16 %v2494
    %v2949 = vunpack.c.l.b16 %v2495
    %v2950 = vunpack.c.h.b16 %v2495
    %v2951 = vunpack.c.l.b16 %v2496
    %v2952 = vunpack.c.h.b16 %v2496
    %v2953 = vunpack.c.l.b16 %v2497
    %v2954 = vunpack.c.l.b16 %v2498
    %v2955 = vunpack.c.h.b16 %v2498
    %v2956 = vunpack.c.l.b16 %v2499
    %v2957 = vunpack.c.h.b16 %v2499
    %v2958 = vunpack.c.l.b16 %v2500
    %v2959 = vunpack.c.l.b16 %v2501
    %v2960 = vunpack.c.h.b16 %v2501
    %v2961 = vunpack.c.l.b16 %v2502
    %v2962 = vunpack.c.h.b16 %v2502
    %v2963 = vunpack.c.l.b16 %v2503
    %v2964 = vunpack.c.l.b16 %v2504
    %v2965 = vunpack.c.h.b16 %v2504
    %v2966 = vunpack.c.l.b16 %v2505
    %v2967 = vunpack.c.h.b16 %v2505
    %v2968 = vunpack.c.l.b16 %v2506
    %v2969 = vunpack.c.l.b16 %v2507
    %v2970 = vunpack.c.h.b16 %v2507
    %v2971 = vunpack.c.l.b16 %v2508
    %v2972 = vunpack.c.h.b16 %v2508
    %v2973 = vunpack.c.l.b16 %v2509
    %v2974 = vunpack.c.l.b16 %v2510
    %v2975 = vunpack.c.h.b16 %v2510
    %v2976 = vunpack.c.l.b16 %v2511
    %v2977 = vunpack.c.h.b16 %v2511
    %v2978 = vunpack.c.l.b16 %v2512
    %v2979 = vunpack.c.l.b16 %v2513
    %v2980 = vunpack.c.h.b16 %v2513
    %v2981 = vunpack.c.l.b16 %v2514
    %v2982 = vunpack.c.h.b16 %v2514
    %v2983 = vunpack.c.l.b16 %v2515
    %v2984 = vunpack.c.l.b16 %v2516
    %v2985 = vunpack.c.h.b16 %v2516
    %v2986 = vunpack.c.l.b16 %v2517
    %v2987 = vunpack.c.h.b16 %v2517
    %v2988 = vunpack.c.l.b16 %v2518
    %v2989 = vunpack.c.l.b16 %v2519
    %v2990 = vunpack.c.h.b16 %v2519
    %v2991 = vunpack.c.l.b16 %v2520
    %v2992 = vunpack.c.h.b16 %v2520
    %v2993 = vunpack.c.l.b16 %v2521
    %v2994 = vunpack.c.l.b16 %v2522
    %v2995 = vunpack.c.h.b16 %v2522
    %v2996 = vunpack.c.l.b16 %v2523
    %v2997 = vunpack.c.h.b16 %v2523
    %v2998 = vunpack.c.l.b16 %v2524
    %v2999 = vunpack.c.l.b16 %v2525
    %v3000 = vunpack.c.h.b16 %v2525
    %v3001 = vunpack.c.l.b16 %v2526
    %v3002 = vunpack.c.h.b16 %v2526
    %v3003 = vunpack.c.l.b16 %v2527
    %v3004 = vunpack.c.l.b16 %v2528
    %v3005 = vunpack.c.h.b16 %v2528
    %v3006 = vunpack.c.l.b16 %v2529
    %v3007 = vunpack.c.h.b16 %v2529
    %v3008 = vunpack.c.l.b16 %v2530
    %v3009 = vunpack.c.l.b16 %v2531
    %v3010 = vunpack.c.h.b16 %v2531
    %v3011 = vunpack.c.l.b16 %v2532
    %v3012 = vunpack.c.h.b16 %v2532
    %v3013 = vunpack.c.l.b16 %v2533
    %v3014 = vunpack.c.l.b16 %v2534
    %v3015 = vunpack.c.h.b16 %v2534
    %v3016 = vunpack.c.l.b16 %v2535
    %v3017 = vunpack.c.h.b16 %v2535
    %v3018 = vunpack.c.l.b16 %v2536
    %v3019 = vunpack.c.l.b16 %v2537
    %v3020 = vunpack.c.h.b16 %v2537
    %v3021 = vunpack.c.l.b16 %v2538
    %v3022 = vunpack.c.h.b16 %v2538
    %v3023 = vunpack.c.l.b16 %v2539
    %v3024 = vunpack.c.l.b16 %v2540
    %v3025 = vunpack.c.h.b16 %v2540
    %v3026 = vunpack.c.l.b16 %v2541
    %v3027 = vunpack.c.h.b16 %v2541
    %v3028 = vunpack.c.l.b16 %v2542
    %v3029 = vunpack.c.l.b16 %v2543
    %v3030 = vunpack.c.h.b16 %v2543
    %v3031 = vunpack.c.l.b16 %v2544
    %v3032 = vunpack.c.h.b16 %v2544
    %v3033 = vunpack.c.l.b16 %v2545
    %v3034 = vunpack.c.l.b16 %v2546
    %v3035 = vunpack.c.h.b16 %v2546
    %v3036 = vunpack.c.l.b16 %v2547
    %v3037 = vunpack.c.h.b16 %v2547
    %v3038 = vunpack.c.l.b16 %v2548
    %v3039 = vunpack.c.l.b16 %v2549
    %v3040 = vunpack.c.h.b16 %v2549
    %v3041 = vunpack.c.l.b16 %v2550
    %v3042 = vunpack.c.h.b16 %v2550
    %v3043 = vunpack.c.l.b16 %v2551
    %v3044 = vunpack.c.l.b16 %v2552
    %v3045 = vunpack.c.h.b16 %v2552
    %v3046 = vunpack.c.l.b16 %v2553
    %v3047 = vunpack.c.h.b16 %v2553
    %v3048 = vunpack.c.l.b16 %v2554
    %v3049 = vunpack.c.l.b16 %v2555
    %v3050 = vunpack.c.h.b16 %v2555
    %v3051 = vunpack.c.l.b16 %v2556
    %v3052 = vunpack.c.h.b16 %v2556
    %v3053 = vunpack.c.l.b16 %v2557
    %v3054 = vunpack.c.l.b16 %v2558
    %v3055 = vunpack.c.h.b16 %v2558
    %v3056 = vunpack.c.l.b16 %v2559
    %v3057 = vunpack.c.h.b16 %v2559
    %v3058 = vunpack.c.l.b16 %v2560
    %v3059 = vunpack.c.l.b16 %v2561
    %v3060 = vunpack.c.h.b16 %v2561
    %v3061 = vunpack.c.l.b16 %v2562
    %v3062 = vunpack.c.h.b16 %v2562
    %v3063 = vunpack.c.l.b16 %v2563
    %v3064 = vunpack.c.l.b16 %v2564
    %v3065 = vunpack.c.h.b16 %v2564
    %v3066 = vunpack.c.l.b16 %v2565
    %v3067 = vunpack.c.h.b16 %v2565
    %v3068 = vunpack.c.l.b16 %v2566
    %v3069 = vunpack.c.l.b16 %v2567
    %v3070 = vunpack.c.h.b16 %v2567
    %v3071 = vunpack.c.l.b16 %v2568
    %v3072 = vunpack.c.h.b16 %v2568
    %v3073 = vunpack.c.l.b16 %v2569
    %v3074 = vunpack.c.l.b16 %v2570
    %v3075 = vunpack.c.h.b16 %v2570
    %v3076 = vunpack.c.l.b16 %v2571
    %v3077 = vunpack.c.h.b16 %v2571
    %v3078 = vunpack.c.l.b16 %v2572
    %v3079 = vunpack.c.l.b16 %v2573
    %v3080 = vunpack.c.h.b16 %v2573
    %v3081 = vunpack.c.l.b16 %v2574
    %v3082 = vunpack.c.h.b16 %v2574
    %v3083 = vunpack.c.l.b16 %v2575
    %v3084 = vunpack.c.l.b16 %v2576
    %v3085 = vunpack.c.h.b16 %v2576
    %v3086 = vunpack.c.l.b16 %v2577
    %v3087 = vunpack.c.h.b16 %v2577
    %v3088 = vunpack.c.l.b16 %v2578
    %v3089 = vunpack.c.l.b16 %v2579
    %v3090 = vunpack.c.h.b16 %v2579
    %v3091 = vunpack.c.l.b16 %v2580
    %v3092 = vunpack.c.h.b16 %v2580
    %v3093 = vunpack.c.l.b16 %v2581
    %v3094 = vunpack.c.l.b16 %v2582
    %v3095 = vunpack.c.h.b16 %v2582
    %v3096 = vunpack.c.l.b16 %v2583
    %v3097 = vunpack.c.h.b16 %v2583
    %v3098 = vunpack.c.l.b16 %v2584
    %v3099 = vunpack.c.l.b16 %v2585
    %v3100 = vunpack.c.h.b16 %v2585
    %v3101 = vunpack.c.l.b16 %v2586
    %v3102 = vunpack.c.h.b16 %v2586
    %v3103 = vunpack.c.l.b16 %v2587
    %v3104 = vunpack.c.l.b16 %v2588
    %v3105 = vunpack.c.h.b16 %v2588
    %v3106 = vunpack.c.l.b16 %v2589
    %v3107 = vunpack.c.h.b16 %v2589
    %v3108 = vunpack.c.l.b16 %v2590
    %v3109 = vunpack.c.l.b16 %v2591
    %v3110 = vunpack.c.h.b16 %v2591
    %v3111 = vunpack.c.l.b16 %v2592
    %v3112 = vunpack.c.h.b16 %v2592
    %v3113 = vunpack.c.l.b16 %v2593
    %v3114 = vunpack.c.l.b16 %v2594
    %v3115 = vunpack.c.h.b16 %v2594
    %v3116 = vunpack.c.l.b16 %v2595
    %v3117 = vunpack.c.h.b16 %v2595
    %v3118 = vunpack.c.l.b16 %v2596
    %v3119 = vunpack.c.l.b16 %v2597
    %v3120 = vunpack.c.h.b16 %v2597
    %v3121 = vunpack.c.l.b16 %v2598
    %v3122 = vunpack.c.h.b16 %v2598
    %v3123 = vunpack.c.l.b16 %v2599
    %v3124 = vpack.c.b16 %v2809, %v2804
    %v3125 = vpack.c.b16 %v2810, %v2805
    %v3126 = vpack.c.b16 %v2811, %v2806
    %v3127 = vpack.c.b16 %v2812, %v2807
    %v3128 = vpack.c.b16 %v2813, %v2808
    %v3129 = vpack.c.b16 %v2819, %v2814
    %v3130 = vpack.c.b16 %v2820, %v2815
    %v3131 = vpack.c.b16 %v2821, %v2816
    %v3132 = vpack.c.b16 %v2822, %v2817
    %v3133 = vpack.c.b16 %v2823, %v2818
    %v3134 = vpack.c.b16 %v2829, %v2824
    %v3135 = vpack.c.b16 %v2830, %v2825
    %v3136 = vpack.c.b16 %v2831, %v2826
    %v3137 = vpack.c.b16 %v2832, %v2827
    %v3138 = vpack.c.b16 %v2833, %v2828
    %v3139 = vpack.c.b16 %v2839, %v2834
    %v3140 = vpack.c.b16 %v2840, %v2835
    %v3141 = vpack.c.b16 %v2841, %v2836
    %v3142 = vpack.c.b16 %v2842, %v2837
    %v3143 = vpack.c.b16 %v2843, %v2838
    %v3144 = vpack.c.b16 %v2849, %v2844
    %v3145 = vpack.c.b16 %v2850, %v2845
    %v3146 = vpack.c.b16 %v2851, %v2846
    %v3147 = vpack.c.b16 %v2852, %v2847
    %v3148 = vpack.c.b16 %v2853, %v2848
    %v3149 = vpack.c.b16 %v2859, %v2854
    %v3150 = vpack.c.b16 %v2860, %v2855
    %v3151 = vpack.c.b16 %v2861, %v2856
    %v3152 = vpack.c.b16 %v2862, %v2857
    %v3153 = vpack.c.b16 %v2863, %v2858
    %v3154 = vpack.c.b16 %v2869, %v2864
    %v3155 = vpack.c.b16 %v2870, %v2865
    %v3156 = vpack.c.b16 %v2871, %v2866
    %v3157 = vpack.c.b16 %v2872, %v2867
    %v3158 = vpack.c.b16 %v2873, %v2868
    %v3159 = vpack.c.b16 %v2879, %v2874
    %v3160 = vpack.c.b16 %v2880, %v2875
    %v3161 = vpack.c.b16 %v2881, %v2876
    %v3162 = vpack.c.b16 %v2882, %v2877
    %v3163 = vpack.c.b16 %v2883, %v2878
    %v3164 = vpack.c.b16 %v2889, %v2884
    %v3165 = vpack.c.b16 %v2890, %v2885
    %v3166 = vpack.c.b16 %v2891, %v2886
    %v3167 = vpack.c.b16 %v2892, %v2887
    %v3168 = vpack.c.b16 %v2893, %v2888
    %v3169 = vpack.c.b16 %v2899, %v2894
    %v3170 = vpack.c.b16 %v2900, %v2895
    %v3171 = vpack.c.b16 %v2901, %v2896
    %v3172 = vpack.c.b16 %v2902, %v2897
    %v3173 = vpack.c.b16 %v2903, %v2898
    %v3174 = vpack.c.b16 %v2909, %v2904
    %v3175 = vpack.c.b16 %v2910, %v2905
    %v3176 = vpack.c.b16 %v2911, %v2906
    %v3177 = vpack.c.b16 %v2912, %v2907
    %v3178 = vpack.c.b16 %v2913, %v2908
    %v3179 = vpack.c.b16 %v2919, %v2914
    %v3180 = vpack.c.b16 %v2920, %v2915
    %v3181 = vpack.c.b16 %v2921, %v2916
    %v3182 = vpack.c.b16 %v2922, %v2917
    %v3183 = vpack.c.b16 %v2923, %v2918
    %v3184 = vpack.c.b16 %v2929, %v2924
    %v3185 = vpack.c.b16 %v2930, %v2925
    %v3186 = vpack.c.b16 %v2931, %v2926
    %v3187 = vpack.c.b16 %v2932, %v2927
    %v3188 = vpack.c.b16 %v2933, %v2928
    %v3189 = vpack.c.b16 %v2939, %v2934
    %v3190 = vpack.c.b16 %v2940, %v2935
    %v3191 = vpack.c.b16 %v2941, %v2936
    %v3192 = vpack.c.b16 %v2942, %v2937
    %v3193 = vpack.c.b16 %v2943, %v2938
    %v3194 = vpack.c.b16 %v2949, %v2944
    %v3195 = vpack.c.b16 %v2950, %v2945
    %v3196 = vpack.c.b16 %v2951, %v2946
    %v3197 = vpack.c.b16 %v2952, %v2947
    %v3198 = vpack.c.b16 %v2953, %v2948
    %v3199 = vpack.c.b16 %v2959, %v2954
    %v3200 = vpack.c.b16 %v2960, %v2955
    %v3201 = vpack.c.b16 %v2961, %v2956
    %v3202 = vpack.c.b16 %v2962, %v2957
    %v3203 = vpack.c.b16 %v2963, %v2958
    %v3204 = vpack.c.b16 %v2969, %v2964
    %v3205 = vpack.c.b16 %v2970, %v2965
    %v3206 = vpack.c.b16 %v2971, %v2966
    %v3207 = vpack.c.b16 %v2972, %v2967
    %v3208 = vpack.c.b16 %v2973, %v2968
    %v3209 = vpack.c.b16 %v2979, %v2974
    %v3210 = vpack.c.b16 %v2980, %v2975
    %v3211 = vpack.c.b16 %v2981, %v2976
    %v3212 = vpack.c.b16 %v2982, %v2977
    %v3213 = vpack.c.b16 %v2983, %v2978
    %v3214 = vpack.c.b16 %v2989, %v2984
    %v3215 = vpack.c.b16 %v2990, %v2985
    %v3216 = vpack.c.b16 %v2991, %v2986
    %v3217 = vpack.c.b16 %v2992, %v2987
    %v3218 = vpack.c.b16 %v2993, %v2988
    %v3219 = vpack.c.b16 %v2999, %v2994
    %v3220 = vpack.c.b16 %v3000, %v2995
    %v3221 = vpack.c.b16 %v3001, %v2996
    %v3222 = vpack.c.b16 %v3002, %v2997
    %v3223 = vpack.c.b16 %v3003, %v2998
    %v3224 = vpack.c.b16 %v3009, %v3004
    %v3225 = vpack.c.b16 %v3010, %v3005
    %v3226 = vpack.c.b16 %v3011, %v3006
    %v3227 = vpack.c.b16 %v3012, %v3007
    %v3228 = vpack.c.b16 %v3013, %v3008
    %v3229 = vpack.c.b16 %v3019, %v3014
    %v3230 = vpack.c.b16 %v3020, %v3015
    %v3231 = vpack.c.b16 %v3021, %v3016
    %v3232 = vpack.c.b16 %v3022, %v3017
    %v3233 = vpack.c.b16 %v3023, %v3018
    %v3234 = vpack.c.b16 %v3029, %v3024
    %v3235 = vpack.c.b16 %v3030, %v3025
    %v3236 = vpack.c.b16 %v3031, %v3026
    %v3237 = vpack.c.b16 %v3032, %v3027
    %v3238 = vpack.c.b16 %v3033, %v3028
    %v3239 = vpack.c.b16 %v3039, %v3034
    %v3240 = vpack.c.b16 %v3040, %v3035
    %v3241 = vpack.c.b16 %v3041, %v3036
    %v3242 = vpack.c.b16 %v3042, %v3037
    %v3243 = vpack.c.b16 %v3043, %v3038
    %v3244 = vpack.c.b16 %v3049, %v3044
    %v3245 = vpack.c.b16 %v3050, %v3045
    %v3246 = vpack.c.b16 %v3051, %v3046
    %v3247 = vpack.c.b16 %v3052, %v3047
    %v3248 = vpack.c.b16 %v3053, %v3048
    %v3249 = vpack.c.b16 %v3059, %v3054
    %v3250 = vpack.c.b16 %v3060, %v3055
    %v3251 = vpack.c.b16 %v3061, %v3056
    %v3252 = vpack.c.b16 %v3062, %v3057
    %v3253 = vpack.c.b16 %v3063, %v3058
    %v3254 = vpack.c.b16 %v3069, %v3064
    %v3255 = vpack.c.b16 %v3070, %v3065
    %v3256 = vpack.c.b16 %v3071, %v3066
    %v3257 = vpack.c.b16 %v3072, %v3067
    %v3258 = vpack.c.b16 %v3073, %v3068
    %v3259 = vpack.c.b16 %v3079, %v3074
    %v3260 = vpack.c.b16 %v3080, %v3075
    %v3261 = vpack.c.b16 %v3081, %v3076
    %v3262 = vpack.c.b16 %v3082, %v3077
    %v3263 = vpack.c.b16 %v3083, %v3078
    %v3264 = vpack.c.b16 %v3089, %v3084
    %v3265 = vpack.c.b16 %v3090, %v3085
    %v3266 = vpack.c.b16 %v3091, %v3086
    %v3267 = vpack.c.b16 %v3092, %v3087
    %v3268 = vpack.c.b16 %v3093, %v3088
    %v3269 = vpack.c.b16 %v3099, %v3094
    %v3270 = vpack.c.b16 %v3100, %v3095
    %v3271 = vpack.c.b16 %v3101, %v3096
    %v3272 = vpack.c.b16 %v3102, %v3097
    %v3273 = vpack.c.b16 %v3103, %v3098
    %v3274 = vpack.c.b16 %v3109, %v3104
    %v3275 = vpack.c.b16 %v3110, %v3105
    %v3276 = vpack.c.b16 %v3111, %v3106
    %v3277 = vpack.c.b16 %v3112, %v3107
    %v3278 = vpack.c.b16 %v3113, %v3108
    %v3279 = vpack.c.b16 %v3119, %v3114
    %v3280 = vpack.c.b16 %v3120, %v3115
    %v3281 = vpack.c.b16 %v3121, %v3116
    %v3282 = vpack.c.b16 %v3122, %v3117
    %v3283 = vpack.c.b16 %v3123, %v3118
    %3444 = vmatpush.bf16.msra.mxu0 %v3159
    %3445 = vmatpush.bf16.msra.mxu0 %v3154
    %3446 = vmatpush.bf16.msra.mxu0 %v3149
    %3447 = vmatpush.bf16.msra.mxu0 %v3144
    %3448 = vmatpush.bf16.msra.mxu0 %v3139
    %3449 = vmatpush.bf16.msra.mxu0 %v3134
    %3450 = vmatpush.bf16.msra.mxu0 %v3129
    %3451 = vmatpush.bf16.msra.mxu0 %v3124
    %3452 = vmatmul.bf16.gmra.mxu0 %v2404
    %v3453 = vpop.f32.mrf.mxu0
    %v3454 = vadd.f32 %v2602, %v3453
    %v3455 = vpop.f32.mrf.mxu0
    %3456 = vdwg.mxu0
    %3457 = vmatpush.bf16.msra.mxu0 %v3199
    %3458 = vmatpush.bf16.msra.mxu0 %v3194
    %3459 = vmatpush.bf16.msra.mxu0 %v3189
    %3460 = vmatpush.bf16.msra.mxu0 %v3184
    %3461 = vmatpush.bf16.msra.mxu0 %v3179
    %3462 = vmatpush.bf16.msra.mxu0 %v3174
    %3463 = vmatpush.bf16.msra.mxu0 %v3169
    %3464 = vmatpush.bf16.msra.mxu0 %v3164
    %3465 = vmatmul.bf16.gmra.mxu0 %v2405
    %v3466 = vpop.f32.mrf.mxu0
    %v3467 = vadd.f32 %v3454, %v3466
    %v3468 = vpop.f32.mrf.mxu0
    %3469 = vdwg.mxu0
    %3470 = vmatpush.bf16.msra.mxu0 %v3239
    %3471 = vmatpush.bf16.msra.mxu0 %v3234
    %3472 = vmatpush.bf16.msra.mxu0 %v3229
    %3473 = vmatpush.bf16.msra.mxu0 %v3224
    %3474 = vmatpush.bf16.msra.mxu0 %v3219
    %3475 = vmatpush.bf16.msra.mxu0 %v3214
    %3476 = vmatpush.bf16.msra.mxu0 %v3209
    %3477 = vmatpush.bf16.msra.mxu0 %v3204
    %3478 = vmatmul.bf16.gmra.mxu0 %v2406
    %v3479 = vpop.f32.mrf.mxu0
    %v3480 = vadd.f32 %v3467, %v3479
    %v3481 = vpop.f32.mrf.mxu0
    %3482 = vdwg.mxu0
    %3483 = vmatpush.bf16.msra.mxu0 %v3279
    %3484 = vmatpush.bf16.msra.mxu0 %v3274
    %3485 = vmatpush.bf16.msra.mxu0 %v3269
    %3486 = vmatpush.bf16.msra.mxu0 %v3264
    %3487 = vmatpush.bf16.msra.mxu0 %v3259
    %3488 = vmatpush.bf16.msra.mxu0 %v3254
    %3489 = vmatpush.bf16.msra.mxu0 %v3249
    %3490 = vmatpush.bf16.msra.mxu0 %v3244
    %3491 = vmatmul.bf16.gmra.mxu0 %v2407
    %v3492 = vpop.f32.mrf.mxu0
    %v3493 = vadd.f32 %v3480, %v3492
    %v3494 = vpop.f32.mrf.mxu0
    %3495 = vdwg.mxu0
    %3496 = vmatpush.bf16.msra.mxu0 %v3160
    %3497 = vmatpush.bf16.msra.mxu0 %v3155
    %3498 = vmatpush.bf16.msra.mxu0 %v3150
    %3499 = vmatpush.bf16.msra.mxu0 %v3145
    %3500 = vmatpush.bf16.msra.mxu0 %v3140
    %3501 = vmatpush.bf16.msra.mxu0 %v3135
    %3502 = vmatpush.bf16.msra.mxu0 %v3130
    %3503 = vmatpush.bf16.msra.mxu0 %v3125
    %3504 = vmatmul.bf16.gmra.mxu0 %v2404
    %v3505 = vpop.f32.mrf.mxu0
    %v3506 = vadd.f32 %v2603, %v3505
    %v3507 = vpop.f32.mrf.mxu0
    %3508 = vdwg.mxu0
    %3509 = vmatpush.bf16.msra.mxu0 %v3200
    %3510 = vmatpush.bf16.msra.mxu0 %v3195
    %3511 = vmatpush.bf16.msra.mxu0 %v3190
    %3512 = vmatpush.bf16.msra.mxu0 %v3185
    %3513 = vmatpush.bf16.msra.mxu0 %v3180
    %3514 = vmatpush.bf16.msra.mxu0 %v3175
    %3515 = vmatpush.bf16.msra.mxu0 %v3170
    %3516 = vmatpush.bf16.msra.mxu0 %v3165
    %3517 = vmatmul.bf16.gmra.mxu0 %v2405
    %v3518 = vpop.f32.mrf.mxu0
    %v3519 = vadd.f32 %v3506, %v3518
    %v3520 = vpop.f32.mrf.mxu0
    %3521 = vdwg.mxu0
    %3522 = vmatpush.bf16.msra.mxu0 %v3240
    %3523 = vmatpush.bf16.msra.mxu0 %v3235
    %3524 = vmatpush.bf16.msra.mxu0 %v3230
    %3525 = vmatpush.bf16.msra.mxu0 %v3225
    %3526 = vmatpush.bf16.msra.mxu0 %v3220
    %3527 = vmatpush.bf16.msra.mxu0 %v3215
    %3528 = vmatpush.bf16.msra.mxu0 %v3210
    %3529 = vmatpush.bf16.msra.mxu0 %v3205
    %3530 = vmatmul.bf16.gmra.mxu0 %v2406
    %v3531 = vpop.f32.mrf.mxu0
    %v3532 = vadd.f32 %v3519, %v3531
    %v3533 = vpop.f32.mrf.mxu0
    %3534 = vdwg.mxu0
    %3535 = vmatpush.bf16.msra.mxu0 %v3280
    %3536 = vmatpush.bf16.msra.mxu0 %v3275
    %3537 = vmatpush.bf16.msra.mxu0 %v3270
    %3538 = vmatpush.bf16.msra.mxu0 %v3265
    %3539 = vmatpush.bf16.msra.mxu0 %v3260
    %3540 = vmatpush.bf16.msra.mxu0 %v3255
    %3541 = vmatpush.bf16.msra.mxu0 %v3250
    %3542 = vmatpush.bf16.msra.mxu0 %v3245
    %3543 = vmatmul.bf16.gmra.mxu0 %v2407
    %v3544 = vpop.f32.mrf.mxu0
    %v3545 = vadd.f32 %v3532, %v3544
    %v3546 = vpop.f32.mrf.mxu0
    %3547 = vdwg.mxu0
    %3548 = vmatpush.bf16.msra.mxu0 %v3161
    %3549 = vmatpush.bf16.msra.mxu0 %v3156
    %3550 = vmatpush.bf16.msra.mxu0 %v3151
    %3551 = vmatpush.bf16.msra.mxu0 %v3146
    %3552 = vmatpush.bf16.msra.mxu0 %v3141
    %3553 = vmatpush.bf16.msra.mxu0 %v3136
    %3554 = vmatpush.bf16.msra.mxu0 %v3131
    %3555 = vmatpush.bf16.msra.mxu0 %v3126
    %3556 = vmatmul.bf16.gmra.mxu0 %v2404
    %v3557 = vpop.f32.mrf.mxu0
    %v3558 = vadd.f32 %v2604, %v3557
    %v3559 = vpop.f32.mrf.mxu0
    %3560 = vdwg.mxu0
    %3561 = vmatpush.bf16.msra.mxu0 %v3201
    %3562 = vmatpush.bf16.msra.mxu0 %v3196
    %3563 = vmatpush.bf16.msra.mxu0 %v3191
    %3564 = vmatpush.bf16.msra.mxu0 %v3186
    %3565 = vmatpush.bf16.msra.mxu0 %v3181
    %3566 = vmatpush.bf16.msra.mxu0 %v3176
    %3567 = vmatpush.bf16.msra.mxu0 %v3171
    %3568 = vmatpush.bf16.msra.mxu0 %v3166
    %3569 = vmatmul.bf16.gmra.mxu0 %v2405
    %v3570 = vpop.f32.mrf.mxu0
    %v3571 = vadd.f32 %v3558, %v3570
    %v3572 = vpop.f32.mrf.mxu0
    %3573 = vdwg.mxu0
    %3574 = vmatpush.bf16.msra.mxu0 %v3241
    %3575 = vmatpush.bf16.msra.mxu0 %v3236
    %3576 = vmatpush.bf16.msra.mxu0 %v3231
    %3577 = vmatpush.bf16.msra.mxu0 %v3226
    %3578 = vmatpush.bf16.msra.mxu0 %v3221
    %3579 = vmatpush.bf16.msra.mxu0 %v3216
    %3580 = vmatpush.bf16.msra.mxu0 %v3211
    %3581 = vmatpush.bf16.msra.mxu0 %v3206
    %3582 = vmatmul.bf16.gmra.mxu0 %v2406
    %v3583 = vpop.f32.mrf.mxu0
    %v3584 = vadd.f32 %v3571, %v3583
    %v3585 = vpop.f32.mrf.mxu0
    %3586 = vdwg.mxu0
    %3587 = vmatpush.bf16.msra.mxu0 %v3281
    %3588 = vmatpush.bf16.msra.mxu0 %v3276
    %3589 = vmatpush.bf16.msra.mxu0 %v3271
    %3590 = vmatpush.bf16.msra.mxu0 %v3266
    %3591 = vmatpush.bf16.msra.mxu0 %v3261
    %3592 = vmatpush.bf16.msra.mxu0 %v3256
    %3593 = vmatpush.bf16.msra.mxu0 %v3251
    %3594 = vmatpush.bf16.msra.mxu0 %v3246
    %3595 = vmatmul.bf16.gmra.mxu0 %v2407
    %v3596 = vpop.f32.mrf.mxu0
    %v3597 = vadd.f32 %v3584, %v3596
    %v3598 = vpop.f32.mrf.mxu0
    %3599 = vdwg.mxu0
    %3600 = vmatpush.bf16.msra.mxu0 %v3162
    %3601 = vmatpush.bf16.msra.mxu0 %v3157
    %3602 = vmatpush.bf16.msra.mxu0 %v3152
    %3603 = vmatpush.bf16.msra.mxu0 %v3147
    %3604 = vmatpush.bf16.msra.mxu0 %v3142
    %3605 = vmatpush.bf16.msra.mxu0 %v3137
    %3606 = vmatpush.bf16.msra.mxu0 %v3132
    %3607 = vmatpush.bf16.msra.mxu0 %v3127
    %3608 = vmatmul.bf16.gmra.mxu0 %v2404
    %v3609 = vpop.f32.mrf.mxu0
    %v3610 = vadd.f32 %v2605, %v3609
    %v3611 = vpop.f32.mrf.mxu0
    %3612 = vdwg.mxu0
    %3613 = vmatpush.bf16.msra.mxu0 %v3202
    %3614 = vmatpush.bf16.msra.mxu0 %v3197
    %3615 = vmatpush.bf16.msra.mxu0 %v3192
    %3616 = vmatpush.bf16.msra.mxu0 %v3187
    %3617 = vmatpush.bf16.msra.mxu0 %v3182
    %3618 = vmatpush.bf16.msra.mxu0 %v3177
    %3619 = vmatpush.bf16.msra.mxu0 %v3172
    %3620 = vmatpush.bf16.msra.mxu0 %v3167
    %3621 = vmatmul.bf16.gmra.mxu0 %v2405
    %v3622 = vpop.f32.mrf.mxu0
    %v3623 = vadd.f32 %v3610, %v3622
    %v3624 = vpop.f32.mrf.mxu0
    %3625 = vdwg.mxu0
    %3626 = vmatpush.bf16.msra.mxu0 %v3242
    %3627 = vmatpush.bf16.msra.mxu0 %v3237
    %3628 = vmatpush.bf16.msra.mxu0 %v3232
    %3629 = vmatpush.bf16.msra.mxu0 %v3227
    %3630 = vmatpush.bf16.msra.mxu0 %v3222
    %3631 = vmatpush.bf16.msra.mxu0 %v3217
    %3632 = vmatpush.bf16.msra.mxu0 %v3212
    %3633 = vmatpush.bf16.msra.mxu0 %v3207
    %3634 = vmatmul.bf16.gmra.mxu0 %v2406
    %v3635 = vpop.f32.mrf.mxu0
    %v3636 = vadd.f32 %v3623, %v3635
    %v3637 = vpop.f32.mrf.mxu0
    %3638 = vdwg.mxu0
    %3639 = vmatpush.bf16.msra.mxu0 %v3282
    %3640 = vmatpush.bf16.msra.mxu0 %v3277
    %3641 = vmatpush.bf16.msra.mxu0 %v3272
    %3642 = vmatpush.bf16.msra.mxu0 %v3267
    %3643 = vmatpush.bf16.msra.mxu0 %v3262
    %3644 = vmatpush.bf16.msra.mxu0 %v3257
    %3645 = vmatpush.bf16.msra.mxu0 %v3252
    %3646 = vmatpush.bf16.msra.mxu0 %v3247
    %3647 = vmatmul.bf16.gmra.mxu0 %v2407
    %v3648 = vpop.f32.mrf.mxu0
    %v3649 = vadd.f32 %v3636, %v3648
    %v3650 = vpop.f32.mrf.mxu0
    %3651 = vdwg.mxu0
    %3652 = vmatpush.bf16.msra.mxu0 %v3163
    %3653 = vmatpush.bf16.msra.mxu0 %v3158
    %3654 = vmatpush.bf16.msra.mxu0 %v3153
    %3655 = vmatpush.bf16.msra.mxu0 %v3148
    %3656 = vmatpush.bf16.msra.mxu0 %v3143
    %3657 = vmatpush.bf16.msra.mxu0 %v3138
    %3658 = vmatpush.bf16.msra.mxu0 %v3133
    %3659 = vmatpush.bf16.msra.mxu0 %v3128
    %3660 = vmatmul.bf16.gmra.mxu0 %v2404
    %v3661 = vpop.f32.mrf.mxu0
    %v3662 = vadd.f32 %v2606, %v3661
    %v3663 = vpop.f32.mrf.mxu0
    %3664 = vdwg.mxu0
    %3665 = vmatpush.bf16.msra.mxu0 %v3203
    %3666 = vmatpush.bf16.msra.mxu0 %v3198
    %3667 = vmatpush.bf16.msra.mxu0 %v3193
    %3668 = vmatpush.bf16.msra.mxu0 %v3188
    %3669 = vmatpush.bf16.msra.mxu0 %v3183
    %3670 = vmatpush.bf16.msra.mxu0 %v3178
    %3671 = vmatpush.bf16.msra.mxu0 %v3173
    %3672 = vmatpush.bf16.msra.mxu0 %v3168
    %3673 = vmatmul.bf16.gmra.mxu0 %v2405
    %v3674 = vpop.f32.mrf.mxu0
    %v3675 = vadd.f32 %v3662, %v3674
    %v3676 = vpop.f32.mrf.mxu0
    %3677 = vdwg.mxu0
    %3678 = vmatpush.bf16.msra.mxu0 %v3243
    %3679 = vmatpush.bf16.msra.mxu0 %v3238
    %3680 = vmatpush.bf16.msra.mxu0 %v3233
    %3681 = vmatpush.bf16.msra.mxu0 %v3228
    %3682 = vmatpush.bf16.msra.mxu0 %v3223
    %3683 = vmatpush.bf16.msra.mxu0 %v3218
    %3684 = vmatpush.bf16.msra.mxu0 %v3213
    %3685 = vmatpush.bf16.msra.mxu0 %v3208
    %3686 = vmatmul.bf16.gmra.mxu0 %v2406
    %v3687 = vpop.f32.mrf.mxu0
    %v3688 = vadd.f32 %v3675, %v3687
    %v3689 = vpop.f32.mrf.mxu0
    %3690 = vdwg.mxu0
    %3691 = vmatpush.bf16.msra.mxu0 %v3283
    %3692 = vmatpush.bf16.msra.mxu0 %v3278
    %3693 = vmatpush.bf16.msra.mxu0 %v3273
    %3694 = vmatpush.bf16.msra.mxu0 %v3268
    %3695 = vmatpush.bf16.msra.mxu0 %v3263
    %3696 = vmatpush.bf16.msra.mxu0 %v3258
    %3697 = vmatpush.bf16.msra.mxu0 %v3253
    %3698 = vmatpush.bf16.msra.mxu0 %v3248
    %3699 = vmatmul.bf16.gmra.mxu0 %v2407
    %v3700 = vpop.f32.mrf.mxu0
    %v3701 = vadd.f32 %v3688, %v3700
    %v3702 = vpop.f32.mrf.mxu0
    %3703 = vdwg.mxu0
    %v3704 = vmax.f32 %v3493, 0.0
    %v3705 = vmax.f32 %v3545, 0.0
    %v3706 = vmax.f32 %v3597, 0.0
    %v3707 = vmax.f32 %v3649, 0.0
    %v3708 = vmax.f32 %v3701, 0.0
    %v3709 = vpack.c.bf16 %v3704, %v3704
    %v3710 = vpack.c.bf16 %v3705, %v3705
    %v3711 = vpack.c.bf16 %v3706, %v3706
    %v3712 = vpack.c.bf16 %v3707, %v3707
    %v3713 = vpack.c.bf16 %v3708, %v3708
    %v3714 = vld [vmem:[#allocation14] sm:$0xff]
    %v3715 = vld [vmem:[#allocation14 + $0x8] sm:$0xff]
    %v3716 = vld [vmem:[#allocation14 + $0x10] sm:$0xff]
    %v3717 = vld [vmem:[#allocation14 + $0x18] sm:$0xf]
    %v3718 = vld [vmem:[#allocation14 + $0x1c] sm:$0xff]
    %v3719 = vld [vmem:[#allocation14 + $0x24] sm:$0xff]
    %v3720 = vld [vmem:[#allocation14 + $0x2c] sm:$0xff]
    %v3721 = vld [vmem:[#allocation14 + $0x34] sm:$0xf]
    %v3722 = vld [vmem:[#allocation14 + $0x38] sm:$0xff]
    %v3723 = vld [vmem:[#allocation14 + $0x40] sm:$0xff]
    %v3724 = vld [vmem:[#allocation14 + $0x48] sm:$0xff]
    %v3725 = vld [vmem:[#allocation14 + $0x50] sm:$0xf]
    %v3726 = vld [vmem:[#allocation14 + $0x54] sm:$0xff]
    %v3727 = vld [vmem:[#allocation14 + $0x5c] sm:$0xff]
    %v3728 = vld [vmem:[#allocation14 + $0x64] sm:$0xff]
    %v3729 = vld [vmem:[#allocation14 + $0x6c] sm:$0xf]
    %v3730 = vld [vmem:[#allocation14 + $0x70] sm:$0xff]
    %v3731 = vld [vmem:[#allocation14 + $0x78] sm:$0xff]
    %v3732 = vld [vmem:[#allocation14 + $0x80] sm:$0xff]
    %v3733 = vld [vmem:[#allocation14 + $0x88] sm:$0xf]
    %v3734 = vld [vmem:[#allocation14 + $0x8c] sm:$0xff]
    %v3735 = vld [vmem:[#allocation14 + $0x94] sm:$0xff]
    %v3736 = vld [vmem:[#allocation14 + $0x9c] sm:$0xff]
    %v3737 = vld [vmem:[#allocation14 + $0xa4] sm:$0xf]
    %v3738 = vld [vmem:[#allocation14 + $0xa8] sm:$0xff]
    %v3739 = vld [vmem:[#allocation14 + $0xb0] sm:$0xff]
    %v3740 = vld [vmem:[#allocation14 + $0xb8] sm:$0xff]
    %v3741 = vld [vmem:[#allocation14 + $0xc0] sm:$0xf]
    %v3742 = vld [vmem:[#allocation14 + $0xc4] sm:$0xff]
    %v3743 = vld [vmem:[#allocation14 + $0xcc] sm:$0xff]
    %v3744 = vld [vmem:[#allocation14 + $0xd4] sm:$0xff]
    %v3745 = vld [vmem:[#allocation14 + $0xdc] sm:$0xf]
    %v3746 = vld [vmem:[#allocation14 + $0xe0] sm:$0xff]
    %v3747 = vld [vmem:[#allocation14 + $0xe8] sm:$0xff]
    %v3748 = vld [vmem:[#allocation14 + $0xf0] sm:$0xff]
    %v3749 = vld [vmem:[#allocation14 + $0xf8] sm:$0xf]
    %v3750 = vld [vmem:[#allocation14 + $0xfc] sm:$0xff]
    %v3751 = vld [vmem:[#allocation14 + $0x104] sm:$0xff]
    %v3752 = vld [vmem:[#allocation14 + $0x10c] sm:$0xff]
    %v3753 = vld [vmem:[#allocation14 + $0x114] sm:$0xf]
    %v3754 = vld [vmem:[#allocation14 + $0x118] sm:$0xff]
    %v3755 = vld [vmem:[#allocation14 + $0x120] sm:$0xff]
    %v3756 = vld [vmem:[#allocation14 + $0x128] sm:$0xff]
    %v3757 = vld [vmem:[#allocation14 + $0x130] sm:$0xf]
    %v3758 = vld [vmem:[#allocation14 + $0x134] sm:$0xff]
    %v3759 = vld [vmem:[#allocation14 + $0x13c] sm:$0xff]
    %v3760 = vld [vmem:[#allocation14 + $0x144] sm:$0xff]
    %v3761 = vld [vmem:[#allocation14 + $0x14c] sm:$0xf]
    %v3762 = vld [vmem:[#allocation14 + $0x150] sm:$0xff]
    %v3763 = vld [vmem:[#allocation14 + $0x158] sm:$0xff]
    %v3764 = vld [vmem:[#allocation14 + $0x160] sm:$0xff]
    %v3765 = vld [vmem:[#allocation14 + $0x168] sm:$0xf]
    %v3766 = vld [vmem:[#allocation14 + $0x16c] sm:$0xff]
    %v3767 = vld [vmem:[#allocation14 + $0x174] sm:$0xff]
    %v3768 = vld [vmem:[#allocation14 + $0x17c] sm:$0xff]
    %v3769 = vld [vmem:[#allocation14 + $0x184] sm:$0xf]
    %v3770 = vld [vmem:[#allocation14 + $0x188] sm:$0xff]
    %v3771 = vld [vmem:[#allocation14 + $0x190] sm:$0xff]
    %v3772 = vld [vmem:[#allocation14 + $0x198] sm:$0xff]
    %v3773 = vld [vmem:[#allocation14 + $0x1a0] sm:$0xf]
    %v3774 = vld [vmem:[#allocation14 + $0x1a4] sm:$0xff]
    %v3775 = vld [vmem:[#allocation14 + $0x1ac] sm:$0xff]
    %v3776 = vld [vmem:[#allocation14 + $0x1b4] sm:$0xff]
    %v3777 = vld [vmem:[#allocation14 + $0x1bc] sm:$0xf]
    %v3778 = vld [vmem:[#allocation14 + $0x1c0] sm:$0xff]
    %v3779 = vld [vmem:[#allocation14 + $0x1c8] sm:$0xff]
    %v3780 = vld [vmem:[#allocation14 + $0x1d0] sm:$0xff]
    %v3781 = vld [vmem:[#allocation14 + $0x1d8] sm:$0xf]
    %v3782 = vld [vmem:[#allocation14 + $0x1dc] sm:$0xff]
    %v3783 = vld [vmem:[#allocation14 + $0x1e4] sm:$0xff]
    %v3784 = vld [vmem:[#allocation14 + $0x1ec] sm:$0xff]
    %v3785 = vld [vmem:[#allocation14 + $0x1f4] sm:$0xf]
    %v3786 = vld [vmem:[#allocation14 + $0x1f8] sm:$0xff]
    %v3787 = vld [vmem:[#allocation14 + $0x200] sm:$0xff]
    %v3788 = vld [vmem:[#allocation14 + $0x208] sm:$0xff]
    %v3789 = vld [vmem:[#allocation14 + $0x210] sm:$0xf]
    %v3790 = vld [vmem:[#allocation14 + $0x214] sm:$0xff]
    %v3791 = vld [vmem:[#allocation14 + $0x21c] sm:$0xff]
    %v3792 = vld [vmem:[#allocation14 + $0x224] sm:$0xff]
    %v3793 = vld [vmem:[#allocation14 + $0x22c] sm:$0xf]
    %v3794 = vld [vmem:[#allocation14 + $0x230] sm:$0xff]
    %v3795 = vld [vmem:[#allocation14 + $0x238] sm:$0xff]
    %v3796 = vld [vmem:[#allocation14 + $0x240] sm:$0xff]
    %v3797 = vld [vmem:[#allocation14 + $0x248] sm:$0xf]
    %v3798 = vld [vmem:[#allocation14 + $0x24c] sm:$0xff]
    %v3799 = vld [vmem:[#allocation14 + $0x254] sm:$0xff]
    %v3800 = vld [vmem:[#allocation14 + $0x25c] sm:$0xff]
    %v3801 = vld [vmem:[#allocation14 + $0x264] sm:$0xf]
    %v3802 = vld [vmem:[#allocation14 + $0x268] sm:$0xff]
    %v3803 = vld [vmem:[#allocation14 + $0x270] sm:$0xff]
    %v3804 = vld [vmem:[#allocation14 + $0x278] sm:$0xff]
    %v3805 = vld [vmem:[#allocation14 + $0x280] sm:$0xf]
    %v3806 = vld [vmem:[#allocation14 + $0x284] sm:$0xff]
    %v3807 = vld [vmem:[#allocation14 + $0x28c] sm:$0xff]
    %v3808 = vld [vmem:[#allocation14 + $0x294] sm:$0xff]
    %v3809 = vld [vmem:[#allocation14 + $0x29c] sm:$0xf]
    %v3810 = vld [vmem:[#allocation14 + $0x2a0] sm:$0xff]
    %v3811 = vld [vmem:[#allocation14 + $0x2a8] sm:$0xff]
    %v3812 = vld [vmem:[#allocation14 + $0x2b0] sm:$0xff]
    %v3813 = vld [vmem:[#allocation14 + $0x2b8] sm:$0xf]
    %v3814 = vld [vmem:[#allocation14 + $0x2bc] sm:$0xff]
    %v3815 = vld [vmem:[#allocation14 + $0x2c4] sm:$0xff]
    %v3816 = vld [vmem:[#allocation14 + $0x2cc] sm:$0xff]
    %v3817 = vld [vmem:[#allocation14 + $0x2d4] sm:$0xf]
    %v3818 = vld [vmem:[#allocation14 + $0x2d8] sm:$0xff]
    %v3819 = vld [vmem:[#allocation14 + $0x2e0] sm:$0xff]
    %v3820 = vld [vmem:[#allocation14 + $0x2e8] sm:$0xff]
    %v3821 = vld [vmem:[#allocation14 + $0x2f0] sm:$0xf]
    %v3822 = vld [vmem:[#allocation14 + $0x2f4] sm:$0xff]
    %v3823 = vld [vmem:[#allocation14 + $0x2fc] sm:$0xff]
    %v3824 = vld [vmem:[#allocation14 + $0x304] sm:$0xff]
    %v3825 = vld [vmem:[#allocation14 + $0x30c] sm:$0xf]
    %v3826 = vld [vmem:[#allocation14 + $0x310] sm:$0xff]
    %v3827 = vld [vmem:[#allocation14 + $0x318] sm:$0xff]
    %v3828 = vld [vmem:[#allocation14 + $0x320] sm:$0xff]
    %v3829 = vld [vmem:[#allocation14 + $0x328] sm:$0xf]
    %v3830 = vld [vmem:[#allocation14 + $0x32c] sm:$0xff]
    %v3831 = vld [vmem:[#allocation14 + $0x334] sm:$0xff]
    %v3832 = vld [vmem:[#allocation14 + $0x33c] sm:$0xff]
    %v3833 = vld [vmem:[#allocation14 + $0x344] sm:$0xf]
    %v3834 = vld [vmem:[#allocation14 + $0x348] sm:$0xff]
    %v3835 = vld [vmem:[#allocation14 + $0x350] sm:$0xff]
    %v3836 = vld [vmem:[#allocation14 + $0x358] sm:$0xff]
    %v3837 = vld [vmem:[#allocation14 + $0x360] sm:$0xf]
    %v3838 = vld [vmem:[#allocation14 + $0x364] sm:$0xff]
    %v3839 = vld [vmem:[#allocation14 + $0x36c] sm:$0xff]
    %v3840 = vld [vmem:[#allocation14 + $0x374] sm:$0xff]
    %v3841 = vld [vmem:[#allocation14 + $0x37c] sm:$0xf]
    %v3842 = vld [vmem:[#allocation14 + $0x380] sm:$0xff]
    %v3843 = vld [vmem:[#allocation14 + $0x388] sm:$0xff]
    %v3844 = vld [vmem:[#allocation14 + $0x390] sm:$0xff]
    %v3845 = vld [vmem:[#allocation14 + $0x398] sm:$0xf]
    %v3846 = vld [vmem:[#allocation14 + $0x39c] sm:$0xff]
    %v3847 = vld [vmem:[#allocation14 + $0x3a4] sm:$0xff]
    %v3848 = vld [vmem:[#allocation14 + $0x3ac] sm:$0xff]
    %v3849 = vld [vmem:[#allocation14 + $0x3b4] sm:$0xf]
    %v3850 = vld [vmem:[#allocation14 + $0x3b8] sm:$0xff]
    %v3851 = vld [vmem:[#allocation14 + $0x3c0] sm:$0xff]
    %v3852 = vld [vmem:[#allocation14 + $0x3c8] sm:$0xff]
    %v3853 = vld [vmem:[#allocation14 + $0x3d0] sm:$0xf]
    %v3854 = vld [vmem:[#allocation14 + $0x3d4] sm:$0xff]
    %v3855 = vld [vmem:[#allocation14 + $0x3dc] sm:$0xff]
    %v3856 = vld [vmem:[#allocation14 + $0x3e4] sm:$0xff]
    %v3857 = vld [vmem:[#allocation14 + $0x3ec] sm:$0xf]
    %v3858 = vld [vmem:[#allocation14 + $0x3f0] sm:$0xff]
    %v3859 = vld [vmem:[#allocation14 + $0x3f8] sm:$0xff]
    %v3860 = vld [vmem:[#allocation14 + $0x400] sm:$0xff]
    %v3861 = vld [vmem:[#allocation14 + $0x408] sm:$0xf]
    %v3862 = vld [vmem:[#allocation14 + $0x40c] sm:$0xff]
    %v3863 = vld [vmem:[#allocation14 + $0x414] sm:$0xff]
    %v3864 = vld [vmem:[#allocation14 + $0x41c] sm:$0xff]
    %v3865 = vld [vmem:[#allocation14 + $0x424] sm:$0xf]
    %v3866 = vld [vmem:[#allocation14 + $0x428] sm:$0xff]
    %v3867 = vld [vmem:[#allocation14 + $0x430] sm:$0xff]
    %v3868 = vld [vmem:[#allocation14 + $0x438] sm:$0xff]
    %v3869 = vld [vmem:[#allocation14 + $0x440] sm:$0xf]
    %v3870 = vld [vmem:[#allocation14 + $0x444] sm:$0xff]
    %v3871 = vld [vmem:[#allocation14 + $0x44c] sm:$0xff]
    %v3872 = vld [vmem:[#allocation14 + $0x454] sm:$0xff]
    %v3873 = vld [vmem:[#allocation14 + $0x45c] sm:$0xf]
    %v3874 = vld [vmem:[#allocation14 + $0x460] sm:$0xff]
    %v3875 = vld [vmem:[#allocation14 + $0x468] sm:$0xff]
    %v3876 = vld [vmem:[#allocation14 + $0x470] sm:$0xff]
    %v3877 = vld [vmem:[#allocation14 + $0x478] sm:$0xf]
    %v3878 = vld [vmem:[#allocation14 + $0x47c] sm:$0xff]
    %v3879 = vld [vmem:[#allocation14 + $0x484] sm:$0xff]
    %v3880 = vld [vmem:[#allocation14 + $0x48c] sm:$0xff]
    %v3881 = vld [vmem:[#allocation14 + $0x494] sm:$0xf]
    %v3882 = vld [vmem:[#allocation14 + $0x498] sm:$0xff]
    %v3883 = vld [vmem:[#allocation14 + $0x4a0] sm:$0xff]
    %v3884 = vld [vmem:[#allocation14 + $0x4a8] sm:$0xff]
    %v3885 = vld [vmem:[#allocation14 + $0x4b0] sm:$0xf]
    %v3886 = vld [vmem:[#allocation14 + $0x4b4] sm:$0xff]
    %v3887 = vld [vmem:[#allocation14 + $0x4bc] sm:$0xff]
    %v3888 = vld [vmem:[#allocation14 + $0x4c4] sm:$0xff]
    %v3889 = vld [vmem:[#allocation14 + $0x4cc] sm:$0xf]
    %v3890 = vld [vmem:[#allocation14 + $0x4d0] sm:$0xff]
    %v3891 = vld [vmem:[#allocation14 + $0x4d8] sm:$0xff]
    %v3892 = vld [vmem:[#allocation14 + $0x4e0] sm:$0xff]
    %v3893 = vld [vmem:[#allocation14 + $0x4e8] sm:$0xf]
    %v3894 = vld [vmem:[#allocation14 + $0x4ec] sm:$0xff]
    %v3895 = vld [vmem:[#allocation14 + $0x4f4] sm:$0xff]
    %v3896 = vld [vmem:[#allocation14 + $0x4fc] sm:$0xff]
    %v3897 = vld [vmem:[#allocation14 + $0x504] sm:$0xf]
    %v3898 = vld [vmem:[#allocation14 + $0x508] sm:$0xff]
    %v3899 = vld [vmem:[#allocation14 + $0x510] sm:$0xff]
    %v3900 = vld [vmem:[#allocation14 + $0x518] sm:$0xff]
    %v3901 = vld [vmem:[#allocation14 + $0x520] sm:$0xf]
    %v3902 = vld [vmem:[#allocation14 + $0x524] sm:$0xff]
    %v3903 = vld [vmem:[#allocation14 + $0x52c] sm:$0xff]
    %v3904 = vld [vmem:[#allocation14 + $0x534] sm:$0xff]
    %v3905 = vld [vmem:[#allocation14 + $0x53c] sm:$0xf]
    %v3906 = vld [vmem:[#allocation14 + $0x540] sm:$0xff]
    %v3907 = vld [vmem:[#allocation14 + $0x548] sm:$0xff]
    %v3908 = vld [vmem:[#allocation14 + $0x550] sm:$0xff]
    %v3909 = vld [vmem:[#allocation14 + $0x558] sm:$0xf]
    %v3910 = vld [vmem:[#allocation14 + $0x55c] sm:$0xff]
    %v3911 = vld [vmem:[#allocation14 + $0x564] sm:$0xff]
    %v3912 = vld [vmem:[#allocation14 + $0x56c] sm:$0xff]
    %v3913 = vld [vmem:[#allocation14 + $0x574] sm:$0xf]
    %v3914 = vld [vmem:[#allocation14 + $0x578] sm:$0xff]
    %v3915 = vld [vmem:[#allocation14 + $0x580] sm:$0xff]
    %v3916 = vld [vmem:[#allocation14 + $0x588] sm:$0xff]
    %v3917 = vld [vmem:[#allocation14 + $0x590] sm:$0xf]
    %v3918 = vld [vmem:[#allocation14 + $0x594] sm:$0xff]
    %v3919 = vld [vmem:[#allocation14 + $0x59c] sm:$0xff]
    %v3920 = vld [vmem:[#allocation14 + $0x5a4] sm:$0xff]
    %v3921 = vld [vmem:[#allocation14 + $0x5ac] sm:$0xf]
    %v3922 = vld [vmem:[#allocation14 + $0x5b0] sm:$0xff]
    %v3923 = vld [vmem:[#allocation14 + $0x5b8] sm:$0xff]
    %v3924 = vld [vmem:[#allocation14 + $0x5c0] sm:$0xff]
    %v3925 = vld [vmem:[#allocation14 + $0x5c8] sm:$0xf]
    %v3926 = vld [vmem:[#allocation14 + $0x5cc] sm:$0xff]
    %v3927 = vld [vmem:[#allocation14 + $0x5d4] sm:$0xff]
    %v3928 = vld [vmem:[#allocation14 + $0x5dc] sm:$0xff]
    %v3929 = vld [vmem:[#allocation14 + $0x5e4] sm:$0xf]
    %v3930 = vld [vmem:[#allocation14 + $0x5e8] sm:$0xff]
    %v3931 = vld [vmem:[#allocation14 + $0x5f0] sm:$0xff]
    %v3932 = vld [vmem:[#allocation14 + $0x5f8] sm:$0xff]
    %v3933 = vld [vmem:[#allocation14 + $0x600] sm:$0xf]
    %v3934 = vld [vmem:[#allocation14 + $0x604] sm:$0xff]
    %v3935 = vld [vmem:[#allocation14 + $0x60c] sm:$0xff]
    %v3936 = vld [vmem:[#allocation14 + $0x614] sm:$0xff]
    %v3937 = vld [vmem:[#allocation14 + $0x61c] sm:$0xf]
    %v3938 = vld [vmem:[#allocation14 + $0x620] sm:$0xff]
    %v3939 = vld [vmem:[#allocation14 + $0x628] sm:$0xff]
    %v3940 = vld [vmem:[#allocation14 + $0x630] sm:$0xff]
    %v3941 = vld [vmem:[#allocation14 + $0x638] sm:$0xf]
    %v3942 = vld [vmem:[#allocation14 + $0x63c] sm:$0xff]
    %v3943 = vld [vmem:[#allocation14 + $0x644] sm:$0xff]
    %v3944 = vld [vmem:[#allocation14 + $0x64c] sm:$0xff]
    %v3945 = vld [vmem:[#allocation14 + $0x654] sm:$0xf]
    %v3946 = vld [vmem:[#allocation14 + $0x658] sm:$0xff]
    %v3947 = vld [vmem:[#allocation14 + $0x660] sm:$0xff]
    %v3948 = vld [vmem:[#allocation14 + $0x668] sm:$0xff]
    %v3949 = vld [vmem:[#allocation14 + $0x670] sm:$0xf]
    %v3950 = vld [vmem:[#allocation14 + $0x674] sm:$0xff]
    %v3951 = vld [vmem:[#allocation14 + $0x67c] sm:$0xff]
    %v3952 = vld [vmem:[#allocation14 + $0x684] sm:$0xff]
    %v3953 = vld [vmem:[#allocation14 + $0x68c] sm:$0xf]
    %v3954 = vld [vmem:[#allocation14 + $0x690] sm:$0xff]
    %v3955 = vld [vmem:[#allocation14 + $0x698] sm:$0xff]
    %v3956 = vld [vmem:[#allocation14 + $0x6a0] sm:$0xff]
    %v3957 = vld [vmem:[#allocation14 + $0x6a8] sm:$0xf]
    %v3958 = vld [vmem:[#allocation14 + $0x6ac] sm:$0xff]
    %v3959 = vld [vmem:[#allocation14 + $0x6b4] sm:$0xff]
    %v3960 = vld [vmem:[#allocation14 + $0x6bc] sm:$0xff]
    %v3961 = vld [vmem:[#allocation14 + $0x6c4] sm:$0xf]
    %v3962 = vld [vmem:[#allocation14 + $0x6c8] sm:$0xff]
    %v3963 = vld [vmem:[#allocation14 + $0x6d0] sm:$0xff]
    %v3964 = vld [vmem:[#allocation14 + $0x6d8] sm:$0xff]
    %v3965 = vld [vmem:[#allocation14 + $0x6e0] sm:$0xf]
    %v3966 = vld [vmem:[#allocation14 + $0x6e4] sm:$0xff]
    %v3967 = vld [vmem:[#allocation14 + $0x6ec] sm:$0xff]
    %v3968 = vld [vmem:[#allocation14 + $0x6f4] sm:$0xff]
    %v3969 = vld [vmem:[#allocation14 + $0x6fc] sm:$0xf]
    %v3970 = vld [vmem:[#allocation14 + $0x700] sm:$0xff]
    %v3971 = vld [vmem:[#allocation14 + $0x708] sm:$0xff]
    %v3972 = vld [vmem:[#allocation14 + $0x710] sm:$0xff]
    %v3973 = vld [vmem:[#allocation14 + $0x718] sm:$0xf]
    %v3974 = vld [vmem:[#allocation14 + $0x71c] sm:$0xff]
    %v3975 = vld [vmem:[#allocation14 + $0x724] sm:$0xff]
    %v3976 = vld [vmem:[#allocation14 + $0x72c] sm:$0xff]
    %v3977 = vld [vmem:[#allocation14 + $0x734] sm:$0xf]
    %v3978 = vld [vmem:[#allocation14 + $0x738] sm:$0xff]
    %v3979 = vld [vmem:[#allocation14 + $0x740] sm:$0xff]
    %v3980 = vld [vmem:[#allocation14 + $0x748] sm:$0xff]
    %v3981 = vld [vmem:[#allocation14 + $0x750] sm:$0xf]
    %v3982 = vld [vmem:[#allocation14 + $0x754] sm:$0xff]
    %v3983 = vld [vmem:[#allocation14 + $0x75c] sm:$0xff]
    %v3984 = vld [vmem:[#allocation14 + $0x764] sm:$0xff]
    %v3985 = vld [vmem:[#allocation14 + $0x76c] sm:$0xf]
    %v3986 = vld [vmem:[#allocation14 + $0x770] sm:$0xff]
    %v3987 = vld [vmem:[#allocation14 + $0x778] sm:$0xff]
    %v3988 = vld [vmem:[#allocation14 + $0x780] sm:$0xff]
    %v3989 = vld [vmem:[#allocation14 + $0x788] sm:$0xf]
    %v3990 = vld [vmem:[#allocation14 + $0x78c] sm:$0xff]
    %v3991 = vld [vmem:[#allocation14 + $0x794] sm:$0xff]
    %v3992 = vld [vmem:[#allocation14 + $0x79c] sm:$0xff]
    %v3993 = vld [vmem:[#allocation14 + $0x7a4] sm:$0xf]
    %v3994 = vld [vmem:[#allocation14 + $0x7a8] sm:$0xff]
    %v3995 = vld [vmem:[#allocation14 + $0x7b0] sm:$0xff]
    %v3996 = vld [vmem:[#allocation14 + $0x7b8] sm:$0xff]
    %v3997 = vld [vmem:[#allocation14 + $0x7c0] sm:$0xf]
    %v3998 = vld [vmem:[#allocation14 + $0x7c4] sm:$0xff]
    %v3999 = vld [vmem:[#allocation14 + $0x7cc] sm:$0xff]
    %v4000 = vld [vmem:[#allocation14 + $0x7d4] sm:$0xff]
    %v4001 = vld [vmem:[#allocation14 + $0x7dc] sm:$0xf]
    %v4002 = vld [vmem:[#allocation14 + $0x7e0] sm:$0xff]
    %v4003 = vld [vmem:[#allocation14 + $0x7e8] sm:$0xff]
    %v4004 = vld [vmem:[#allocation14 + $0x7f0] sm:$0xff]
    %v4005 = vld [vmem:[#allocation14 + $0x7f8] sm:$0xf]
    %v4006 = vld [vmem:[#allocation14 + $0x7fc] sm:$0xff]
    %v4007 = vld [vmem:[#allocation14 + $0x804] sm:$0xff]
    %v4008 = vld [vmem:[#allocation14 + $0x80c] sm:$0xff]
    %v4009 = vld [vmem:[#allocation14 + $0x814] sm:$0xf]
    %v4010 = vld [vmem:[#allocation14 + $0x818] sm:$0xff]
    %v4011 = vld [vmem:[#allocation14 + $0x820] sm:$0xff]
    %v4012 = vld [vmem:[#allocation14 + $0x828] sm:$0xff]
    %v4013 = vld [vmem:[#allocation14 + $0x830] sm:$0xf]
    %v4014 = vld [vmem:[#allocation14 + $0x834] sm:$0xff]
    %v4015 = vld [vmem:[#allocation14 + $0x83c] sm:$0xff]
    %v4016 = vld [vmem:[#allocation14 + $0x844] sm:$0xff]
    %v4017 = vld [vmem:[#allocation14 + $0x84c] sm:$0xf]
    %v4018 = vld [vmem:[#allocation14 + $0x850] sm:$0xff]
    %v4019 = vld [vmem:[#allocation14 + $0x858] sm:$0xff]
    %v4020 = vld [vmem:[#allocation14 + $0x860] sm:$0xff]
    %v4021 = vld [vmem:[#allocation14 + $0x868] sm:$0xf]
    %v4022 = vld [vmem:[#allocation14 + $0x86c] sm:$0xff]
    %v4023 = vld [vmem:[#allocation14 + $0x874] sm:$0xff]
    %v4024 = vld [vmem:[#allocation14 + $0x87c] sm:$0xff]
    %v4025 = vld [vmem:[#allocation14 + $0x884] sm:$0xf]
    %v4026 = vld [vmem:[#allocation14 + $0x888] sm:$0xff]
    %v4027 = vld [vmem:[#allocation14 + $0x890] sm:$0xff]
    %v4028 = vld [vmem:[#allocation14 + $0x898] sm:$0xff]
    %v4029 = vld [vmem:[#allocation14 + $0x8a0] sm:$0xf]
    %v4030 = vld [vmem:[#allocation14 + $0x8a4] sm:$0xff]
    %v4031 = vld [vmem:[#allocation14 + $0x8ac] sm:$0xff]
    %v4032 = vld [vmem:[#allocation14 + $0x8b4] sm:$0xff]
    %v4033 = vld [vmem:[#allocation14 + $0x8bc] sm:$0xf]
    %v4034 = vld [vmem:[#allocation16] sm:$0xff]
    %v4036 = vperm.slane %v4034, 0
    %v4037 = vperm.slane %v4034, 1
    %v4038 = vperm.slane %v4034, 2
    %v4039 = vperm.slane %v4034, 3
    %v4040 = vperm.slane %v4034, 4
    %v4041 = vperm.slane %v4034, 5
    %v4042 = vperm.slane %v4034, 6
    %v4370 = vunpack.c.l.b16 %v3714
    %v4371 = vunpack.c.h.b16 %v3714
    %v4372 = vunpack.c.l.b16 %v3715
    %v4373 = vunpack.c.h.b16 %v3715
    %v4374 = vunpack.c.l.b16 %v3716
    %v4375 = vunpack.c.h.b16 %v3716
    %v4376 = vunpack.c.l.b16 %v3717
    %v4377 = vunpack.c.l.b16 %v3718
    %v4378 = vunpack.c.h.b16 %v3718
    %v4379 = vunpack.c.l.b16 %v3719
    %v4380 = vunpack.c.h.b16 %v3719
    %v4381 = vunpack.c.l.b16 %v3720
    %v4382 = vunpack.c.h.b16 %v3720
    %v4383 = vunpack.c.l.b16 %v3721
    %v4384 = vunpack.c.l.b16 %v3722
    %v4385 = vunpack.c.h.b16 %v3722
    %v4386 = vunpack.c.l.b16 %v3723
    %v4387 = vunpack.c.h.b16 %v3723
    %v4388 = vunpack.c.l.b16 %v3724
    %v4389 = vunpack.c.h.b16 %v3724
    %v4390 = vunpack.c.l.b16 %v3725
    %v4391 = vunpack.c.l.b16 %v3726
    %v4392 = vunpack.c.h.b16 %v3726
    %v4393 = vunpack.c.l.b16 %v3727
    %v4394 = vunpack.c.h.b16 %v3727
    %v4395 = vunpack.c.l.b16 %v3728
    %v4396 = vunpack.c.h.b16 %v3728
    %v4397 = vunpack.c.l.b16 %v3729
    %v4398 = vunpack.c.l.b16 %v3730
    %v4399 = vunpack.c.h.b16 %v3730
    %v4400 = vunpack.c.l.b16 %v3731
    %v4401 = vunpack.c.h.b16 %v3731
    %v4402 = vunpack.c.l.b16 %v3732
    %v4403 = vunpack.c.h.b16 %v3732
    %v4404 = vunpack.c.l.b16 %v3733
    %v4405 = vunpack.c.l.b16 %v3734
    %v4406 = vunpack.c.h.b16 %v3734
    %v4407 = vunpack.c.l.b16 %v3735
    %v4408 = vunpack.c.h.b16 %v3735
    %v4409 = vunpack.c.l.b16 %v3736
    %v4410 = vunpack.c.h.b16 %v3736
    %v4411 = vunpack.c.l.b16 %v3737
    %v4412 = vunpack.c.l.b16 %v3738
    %v4413 = vunpack.c.h.b16 %v3738
    %v4414 = vunpack.c.l.b16 %v3739
    %v4415 = vunpack.c.h.b16 %v3739
    %v4416 = vunpack.c.l.b16 %v3740
    %v4417 = vunpack.c.h.b16 %v3740
    %v4418 = vunpack.c.l.b16 %v3741
    %v4419 = vunpack.c.l.b16 %v3742
    %v4420 = vunpack.c.h.b16 %v3742
    %v4421 = vunpack.c.l.b16 %v3743
    %v4422 = vunpack.c.h.b16 %v3743
    %v4423 = vunpack.c.l.b16 %v3744
    %v4424 = vunpack.c.h.b16 %v3744
    %v4425 = vunpack.c.l.b16 %v3745
    %v4426 = vunpack.c.l.b16 %v3746
    %v4427 = vunpack.c.h.b16 %v3746
    %v4428 = vunpack.c.l.b16 %v3747
    %v4429 = vunpack.c.h.b16 %v3747
    %v4430 = vunpack.c.l.b16 %v3748
    %v4431 = vunpack.c.h.b16 %v3748
    %v4432 = vunpack.c.l.b16 %v3749
    %v4433 = vunpack.c.l.b16 %v3750
    %v4434 = vunpack.c.h.b16 %v3750
    %v4435 = vunpack.c.l.b16 %v3751
    %v4436 = vunpack.c.h.b16 %v3751
    %v4437 = vunpack.c.l.b16 %v3752
    %v4438 = vunpack.c.h.b16 %v3752
    %v4439 = vunpack.c.l.b16 %v3753
    %v4440 = vunpack.c.l.b16 %v3754
    %v4441 = vunpack.c.h.b16 %v3754
    %v4442 = vunpack.c.l.b16 %v3755
    %v4443 = vunpack.c.h.b16 %v3755
    %v4444 = vunpack.c.l.b16 %v3756
    %v4445 = vunpack.c.h.b16 %v3756
    %v4446 = vunpack.c.l.b16 %v3757
    %v4447 = vunpack.c.l.b16 %v3758
    %v4448 = vunpack.c.h.b16 %v3758
    %v4449 = vunpack.c.l.b16 %v3759
    %v4450 = vunpack.c.h.b16 %v3759
    %v4451 = vunpack.c.l.b16 %v3760
    %v4452 = vunpack.c.h.b16 %v3760
    %v4453 = vunpack.c.l.b16 %v3761
    %v4454 = vunpack.c.l.b16 %v3762
    %v4455 = vunpack.c.h.b16 %v3762
    %v4456 = vunpack.c.l.b16 %v3763
    %v4457 = vunpack.c.h.b16 %v3763
    %v4458 = vunpack.c.l.b16 %v3764
    %v4459 = vunpack.c.h.b16 %v3764
    %v4460 = vunpack.c.l.b16 %v3765
    %v4461 = vunpack.c.l.b16 %v3766
    %v4462 = vunpack.c.h.b16 %v3766
    %v4463 = vunpack.c.l.b16 %v3767
    %v4464 = vunpack.c.h.b16 %v3767
    %v4465 = vunpack.c.l.b16 %v3768
    %v4466 = vunpack.c.h.b16 %v3768
    %v4467 = vunpack.c.l.b16 %v3769
    %v4468 = vunpack.c.l.b16 %v3770
    %v4469 = vunpack.c.h.b16 %v3770
    %v4470 = vunpack.c.l.b16 %v3771
    %v4471 = vunpack.c.h.b16 %v3771
    %v4472 = vunpack.c.l.b16 %v3772
    %v4473 = vunpack.c.h.b16 %v3772
    %v4474 = vunpack.c.l.b16 %v3773
    %v4475 = vunpack.c.l.b16 %v3774
    %v4476 = vunpack.c.h.b16 %v3774
    %v4477 = vunpack.c.l.b16 %v3775
    %v4478 = vunpack.c.h.b16 %v3775
    %v4479 = vunpack.c.l.b16 %v3776
    %v4480 = vunpack.c.h.b16 %v3776
    %v4481 = vunpack.c.l.b16 %v3777
    %v4482 = vunpack.c.l.b16 %v3778
    %v4483 = vunpack.c.h.b16 %v3778
    %v4484 = vunpack.c.l.b16 %v3779
    %v4485 = vunpack.c.h.b16 %v3779
    %v4486 = vunpack.c.l.b16 %v3780
    %v4487 = vunpack.c.h.b16 %v3780
    %v4488 = vunpack.c.l.b16 %v3781
    %v4489 = vunpack.c.l.b16 %v3782
    %v4490 = vunpack.c.h.b16 %v3782
    %v4491 = vunpack.c.l.b16 %v3783
    %v4492 = vunpack.c.h.b16 %v3783
    %v4493 = vunpack.c.l.b16 %v3784
    %v4494 = vunpack.c.h.b16 %v3784
    %v4495 = vunpack.c.l.b16 %v3785
    %v4496 = vunpack.c.l.b16 %v3786
    %v4497 = vunpack.c.h.b16 %v3786
    %v4498 = vunpack.c.l.b16 %v3787
    %v4499 = vunpack.c.h.b16 %v3787
    %v4500 = vunpack.c.l.b16 %v3788
    %v4501 = vunpack.c.h.b16 %v3788
    %v4502 = vunpack.c.l.b16 %v3789
    %v4503 = vunpack.c.l.b16 %v3790
    %v4504 = vunpack.c.h.b16 %v3790
    %v4505 = vunpack.c.l.b16 %v3791
    %v4506 = vunpack.c.h.b16 %v3791
    %v4507 = vunpack.c.l.b16 %v3792
    %v4508 = vunpack.c.h.b16 %v3792
    %v4509 = vunpack.c.l.b16 %v3793
    %v4510 = vunpack.c.l.b16 %v3794
    %v4511 = vunpack.c.h.b16 %v3794
    %v4512 = vunpack.c.l.b16 %v3795
    %v4513 = vunpack.c.h.b16 %v3795
    %v4514 = vunpack.c.l.b16 %v3796
    %v4515 = vunpack.c.h.b16 %v3796
    %v4516 = vunpack.c.l.b16 %v3797
    %v4517 = vunpack.c.l.b16 %v3798
    %v4518 = vunpack.c.h.b16 %v3798
    %v4519 = vunpack.c.l.b16 %v3799
    %v4520 = vunpack.c.h.b16 %v3799
    %v4521 = vunpack.c.l.b16 %v3800
    %v4522 = vunpack.c.h.b16 %v3800
    %v4523 = vunpack.c.l.b16 %v3801
    %v4524 = vunpack.c.l.b16 %v3802
    %v4525 = vunpack.c.h.b16 %v3802
    %v4526 = vunpack.c.l.b16 %v3803
    %v4527 = vunpack.c.h.b16 %v3803
    %v4528 = vunpack.c.l.b16 %v3804
    %v4529 = vunpack.c.h.b16 %v3804
    %v4530 = vunpack.c.l.b16 %v3805
    %v4531 = vunpack.c.l.b16 %v3806
    %v4532 = vunpack.c.h.b16 %v3806
    %v4533 = vunpack.c.l.b16 %v3807
    %v4534 = vunpack.c.h.b16 %v3807
    %v4535 = vunpack.c.l.b16 %v3808
    %v4536 = vunpack.c.h.b16 %v3808
    %v4537 = vunpack.c.l.b16 %v3809
    %v4538 = vunpack.c.l.b16 %v3810
    %v4539 = vunpack.c.h.b16 %v3810
    %v4540 = vunpack.c.l.b16 %v3811
    %v4541 = vunpack.c.h.b16 %v3811
    %v4542 = vunpack.c.l.b16 %v3812
    %v4543 = vunpack.c.h.b16 %v3812
    %v4544 = vunpack.c.l.b16 %v3813
    %v4545 = vunpack.c.l.b16 %v3814
    %v4546 = vunpack.c.h.b16 %v3814
    %v4547 = vunpack.c.l.b16 %v3815
    %v4548 = vunpack.c.h.b16 %v3815
    %v4549 = vunpack.c.l.b16 %v3816
    %v4550 = vunpack.c.h.b16 %v3816
    %v4551 = vunpack.c.l.b16 %v3817
    %v4552 = vunpack.c.l.b16 %v3818
    %v4553 = vunpack.c.h.b16 %v3818
    %v4554 = vunpack.c.l.b16 %v3819
    %v4555 = vunpack.c.h.b16 %v3819
    %v4556 = vunpack.c.l.b16 %v3820
    %v4557 = vunpack.c.h.b16 %v3820
    %v4558 = vunpack.c.l.b16 %v3821
    %v4559 = vunpack.c.l.b16 %v3822
    %v4560 = vunpack.c.h.b16 %v3822
    %v4561 = vunpack.c.l.b16 %v3823
    %v4562 = vunpack.c.h.b16 %v3823
    %v4563 = vunpack.c.l.b16 %v3824
    %v4564 = vunpack.c.h.b16 %v3824
    %v4565 = vunpack.c.l.b16 %v3825
    %v4566 = vunpack.c.l.b16 %v3826
    %v4567 = vunpack.c.h.b16 %v3826
    %v4568 = vunpack.c.l.b16 %v3827
    %v4569 = vunpack.c.h.b16 %v3827
    %v4570 = vunpack.c.l.b16 %v3828
    %v4571 = vunpack.c.h.b16 %v3828
    %v4572 = vunpack.c.l.b16 %v3829
    %v4573 = vunpack.c.l.b16 %v3830
    %v4574 = vunpack.c.h.b16 %v3830
    %v4575 = vunpack.c.l.b16 %v3831
    %v4576 = vunpack.c.h.b16 %v3831
    %v4577 = vunpack.c.l.b16 %v3832
    %v4578 = vunpack.c.h.b16 %v3832
    %v4579 = vunpack.c.l.b16 %v3833
    %v4580 = vunpack.c.l.b16 %v3834
    %v4581 = vunpack.c.h.b16 %v3834
    %v4582 = vunpack.c.l.b16 %v3835
    %v4583 = vunpack.c.h.b16 %v3835
    %v4584 = vunpack.c.l.b16 %v3836
    %v4585 = vunpack.c.h.b16 %v3836
    %v4586 = vunpack.c.l.b16 %v3837
    %v4587 = vunpack.c.l.b16 %v3838
    %v4588 = vunpack.c.h.b16 %v3838
    %v4589 = vunpack.c.l.b16 %v3839
    %v4590 = vunpack.c.h.b16 %v3839
    %v4591 = vunpack.c.l.b16 %v3840
    %v4592 = vunpack.c.h.b16 %v3840
    %v4593 = vunpack.c.l.b16 %v3841
    %v4594 = vunpack.c.l.b16 %v3842
    %v4595 = vunpack.c.h.b16 %v3842
    %v4596 = vunpack.c.l.b16 %v3843
    %v4597 = vunpack.c.h.b16 %v3843
    %v4598 = vunpack.c.l.b16 %v3844
    %v4599 = vunpack.c.h.b16 %v3844
    %v4600 = vunpack.c.l.b16 %v3845
    %v4601 = vunpack.c.l.b16 %v3846
    %v4602 = vunpack.c.h.b16 %v3846
    %v4603 = vunpack.c.l.b16 %v3847
    %v4604 = vunpack.c.h.b16 %v3847
    %v4605 = vunpack.c.l.b16 %v3848
    %v4606 = vunpack.c.h.b16 %v3848
    %v4607 = vunpack.c.l.b16 %v3849
    %v4608 = vunpack.c.l.b16 %v3850
    %v4609 = vunpack.c.h.b16 %v3850
    %v4610 = vunpack.c.l.b16 %v3851
    %v4611 = vunpack.c.h.b16 %v3851
    %v4612 = vunpack.c.l.b16 %v3852
    %v4613 = vunpack.c.h.b16 %v3852
    %v4614 = vunpack.c.l.b16 %v3853
    %v4615 = vunpack.c.l.b16 %v3854
    %v4616 = vunpack.c.h.b16 %v3854
    %v4617 = vunpack.c.l.b16 %v3855
    %v4618 = vunpack.c.h.b16 %v3855
    %v4619 = vunpack.c.l.b16 %v3856
    %v4620 = vunpack.c.h.b16 %v3856
    %v4621 = vunpack.c.l.b16 %v3857
    %v4622 = vunpack.c.l.b16 %v3858
    %v4623 = vunpack.c.h.b16 %v3858
    %v4624 = vunpack.c.l.b16 %v3859
    %v4625 = vunpack.c.h.b16 %v3859
    %v4626 = vunpack.c.l.b16 %v3860
    %v4627 = vunpack.c.h.b16 %v3860
    %v4628 = vunpack.c.l.b16 %v3861
    %v4629 = vunpack.c.l.b16 %v3862
    %v4630 = vunpack.c.h.b16 %v3862
    %v4631 = vunpack.c.l.b16 %v3863
    %v4632 = vunpack.c.h.b16 %v3863
    %v4633 = vunpack.c.l.b16 %v3864
    %v4634 = vunpack.c.h.b16 %v3864
    %v4635 = vunpack.c.l.b16 %v3865
    %v4636 = vunpack.c.l.b16 %v3866
    %v4637 = vunpack.c.h.b16 %v3866
    %v4638 = vunpack.c.l.b16 %v3867
    %v4639 = vunpack.c.h.b16 %v3867
    %v4640 = vunpack.c.l.b16 %v3868
    %v4641 = vunpack.c.h.b16 %v3868
    %v4642 = vunpack.c.l.b16 %v3869
    %v4643 = vunpack.c.l.b16 %v3870
    %v4644 = vunpack.c.h.b16 %v3870
    %v4645 = vunpack.c.l.b16 %v3871
    %v4646 = vunpack.c.h.b16 %v3871
    %v4647 = vunpack.c.l.b16 %v3872
    %v4648 = vunpack.c.h.b16 %v3872
    %v4649 = vunpack.c.l.b16 %v3873
    %v4650 = vunpack.c.l.b16 %v3874
    %v4651 = vunpack.c.h.b16 %v3874
    %v4652 = vunpack.c.l.b16 %v3875
    %v4653 = vunpack.c.h.b16 %v3875
    %v4654 = vunpack.c.l.b16 %v3876
    %v4655 = vunpack.c.h.b16 %v3876
    %v4656 = vunpack.c.l.b16 %v3877
    %v4657 = vunpack.c.l.b16 %v3878
    %v4658 = vunpack.c.h.b16 %v3878
    %v4659 = vunpack.c.l.b16 %v3879
    %v4660 = vunpack.c.h.b16 %v3879
    %v4661 = vunpack.c.l.b16 %v3880
    %v4662 = vunpack.c.h.b16 %v3880
    %v4663 = vunpack.c.l.b16 %v3881
    %v4664 = vunpack.c.l.b16 %v3882
    %v4665 = vunpack.c.h.b16 %v3882
    %v4666 = vunpack.c.l.b16 %v3883
    %v4667 = vunpack.c.h.b16 %v3883
    %v4668 = vunpack.c.l.b16 %v3884
    %v4669 = vunpack.c.h.b16 %v3884
    %v4670 = vunpack.c.l.b16 %v3885
    %v4671 = vunpack.c.l.b16 %v3886
    %v4672 = vunpack.c.h.b16 %v3886
    %v4673 = vunpack.c.l.b16 %v3887
    %v4674 = vunpack.c.h.b16 %v3887
    %v4675 = vunpack.c.l.b16 %v3888
    %v4676 = vunpack.c.h.b16 %v3888
    %v4677 = vunpack.c.l.b16 %v3889
    %v4678 = vunpack.c.l.b16 %v3890
    %v4679 = vunpack.c.h.b16 %v3890
    %v4680 = vunpack.c.l.b16 %v3891
    %v4681 = vunpack.c.h.b16 %v3891
    %v4682 = vunpack.c.l.b16 %v3892
    %v4683 = vunpack.c.h.b16 %v3892
    %v4684 = vunpack.c.l.b16 %v3893
    %v4685 = vunpack.c.l.b16 %v3894
    %v4686 = vunpack.c.h.b16 %v3894
    %v4687 = vunpack.c.l.b16 %v3895
    %v4688 = vunpack.c.h.b16 %v3895
    %v4689 = vunpack.c.l.b16 %v3896
    %v4690 = vunpack.c.h.b16 %v3896
    %v4691 = vunpack.c.l.b16 %v3897
    %v4692 = vunpack.c.l.b16 %v3898
    %v4693 = vunpack.c.h.b16 %v3898
    %v4694 = vunpack.c.l.b16 %v3899
    %v4695 = vunpack.c.h.b16 %v3899
    %v4696 = vunpack.c.l.b16 %v3900
    %v4697 = vunpack.c.h.b16 %v3900
    %v4698 = vunpack.c.l.b16 %v3901
    %v4699 = vunpack.c.l.b16 %v3902
    %v4700 = vunpack.c.h.b16 %v3902
    %v4701 = vunpack.c.l.b16 %v3903
    %v4702 = vunpack.c.h.b16 %v3903
    %v4703 = vunpack.c.l.b16 %v3904
    %v4704 = vunpack.c.h.b16 %v3904
    %v4705 = vunpack.c.l.b16 %v3905
    %v4706 = vunpack.c.l.b16 %v3906
    %v4707 = vunpack.c.h.b16 %v3906
    %v4708 = vunpack.c.l.b16 %v3907
    %v4709 = vunpack.c.h.b16 %v3907
    %v4710 = vunpack.c.l.b16 %v3908
    %v4711 = vunpack.c.h.b16 %v3908
    %v4712 = vunpack.c.l.b16 %v3909
    %v4713 = vunpack.c.l.b16 %v3910
    %v4714 = vunpack.c.h.b16 %v3910
    %v4715 = vunpack.c.l.b16 %v3911
    %v4716 = vunpack.c.h.b16 %v3911
    %v4717 = vunpack.c.l.b16 %v3912
    %v4718 = vunpack.c.h.b16 %v3912
    %v4719 = vunpack.c.l.b16 %v3913
    %v4720 = vunpack.c.l.b16 %v3914
    %v4721 = vunpack.c.h.b16 %v3914
    %v4722 = vunpack.c.l.b16 %v3915
    %v4723 = vunpack.c.h.b16 %v3915
    %v4724 = vunpack.c.l.b16 %v3916
    %v4725 = vunpack.c.h.b16 %v3916
    %v4726 = vunpack.c.l.b16 %v3917
    %v4727 = vunpack.c.l.b16 %v3918
    %v4728 = vunpack.c.h.b16 %v3918
    %v4729 = vunpack.c.l.b16 %v3919
    %v4730 = vunpack.c.h.b16 %v3919
    %v4731 = vunpack.c.l.b16 %v3920
    %v4732 = vunpack.c.h.b16 %v3920
    %v4733 = vunpack.c.l.b16 %v3921
    %v4734 = vunpack.c.l.b16 %v3922
    %v4735 = vunpack.c.h.b16 %v3922
    %v4736 = vunpack.c.l.b16 %v3923
    %v4737 = vunpack.c.h.b16 %v3923
    %v4738 = vunpack.c.l.b16 %v3924
    %v4739 = vunpack.c.h.b16 %v3924
    %v4740 = vunpack.c.l.b16 %v3925
    %v4741 = vunpack.c.l.b16 %v3926
    %v4742 = vunpack.c.h.b16 %v3926
    %v4743 = vunpack.c.l.b16 %v3927
    %v4744 = vunpack.c.h.b16 %v3927
    %v4745 = vunpack.c.l.b16 %v3928
    %v4746 = vunpack.c.h.b16 %v3928
    %v4747 = vunpack.c.l.b16 %v3929
    %v4748 = vunpack.c.l.b16 %v3930
    %v4749 = vunpack.c.h.b16 %v3930
    %v4750 = vunpack.c.l.b16 %v3931
    %v4751 = vunpack.c.h.b16 %v3931
    %v4752 = vunpack.c.l.b16 %v3932
    %v4753 = vunpack.c.h.b16 %v3932
    %v4754 = vunpack.c.l.b16 %v3933
    %v4755 = vunpack.c.l.b16 %v3934
    %v4756 = vunpack.c.h.b16 %v3934
    %v4757 = vunpack.c.l.b16 %v3935
    %v4758 = vunpack.c.h.b16 %v3935
    %v4759 = vunpack.c.l.b16 %v3936
    %v4760 = vunpack.c.h.b16 %v3936
    %v4761 = vunpack.c.l.b16 %v3937
    %v4762 = vunpack.c.l.b16 %v3938
    %v4763 = vunpack.c.h.b16 %v3938
    %v4764 = vunpack.c.l.b16 %v3939
    %v4765 = vunpack.c.h.b16 %v3939
    %v4766 = vunpack.c.l.b16 %v3940
    %v4767 = vunpack.c.h.b16 %v3940
    %v4768 = vunpack.c.l.b16 %v3941
    %v4769 = vunpack.c.l.b16 %v3942
    %v4770 = vunpack.c.h.b16 %v3942
    %v4771 = vunpack.c.l.b16 %v3943
    %v4772 = vunpack.c.h.b16 %v3943
    %v4773 = vunpack.c.l.b16 %v3944
    %v4774 = vunpack.c.h.b16 %v3944
    %v4775 = vunpack.c.l.b16 %v3945
    %v4776 = vunpack.c.l.b16 %v3946
    %v4777 = vunpack.c.h.b16 %v3946
    %v4778 = vunpack.c.l.b16 %v3947
    %v4779 = vunpack.c.h.b16 %v3947
    %v4780 = vunpack.c.l.b16 %v3948
    %v4781 = vunpack.c.h.b16 %v3948
    %v4782 = vunpack.c.l.b16 %v3949
    %v4783 = vunpack.c.l.b16 %v3950
    %v4784 = vunpack.c.h.b16 %v3950
    %v4785 = vunpack.c.l.b16 %v3951
    %v4786 = vunpack.c.h.b16 %v3951
    %v4787 = vunpack.c.l.b16 %v3952
    %v4788 = vunpack.c.h.b16 %v3952
    %v4789 = vunpack.c.l.b16 %v3953
    %v4790 = vunpack.c.l.b16 %v3954
    %v4791 = vunpack.c.h.b16 %v3954
    %v4792 = vunpack.c.l.b16 %v3955
    %v4793 = vunpack.c.h.b16 %v3955
    %v4794 = vunpack.c.l.b16 %v3956
    %v4795 = vunpack.c.h.b16 %v3956
    %v4796 = vunpack.c.l.b16 %v3957
    %v4797 = vunpack.c.l.b16 %v3958
    %v4798 = vunpack.c.h.b16 %v3958
    %v4799 = vunpack.c.l.b16 %v3959
    %v4800 = vunpack.c.h.b16 %v3959
    %v4801 = vunpack.c.l.b16 %v3960
    %v4802 = vunpack.c.h.b16 %v3960
    %v4803 = vunpack.c.l.b16 %v3961
    %v4804 = vunpack.c.l.b16 %v3962
    %v4805 = vunpack.c.h.b16 %v3962
    %v4806 = vunpack.c.l.b16 %v3963
    %v4807 = vunpack.c.h.b16 %v3963
    %v4808 = vunpack.c.l.b16 %v3964
    %v4809 = vunpack.c.h.b16 %v3964
    %v4810 = vunpack.c.l.b16 %v3965
    %v4811 = vunpack.c.l.b16 %v3966
    %v4812 = vunpack.c.h.b16 %v3966
    %v4813 = vunpack.c.l.b16 %v3967
    %v4814 = vunpack.c.h.b16 %v3967
    %v4815 = vunpack.c.l.b16 %v3968
    %v4816 = vunpack.c.h.b16 %v3968
    %v4817 = vunpack.c.l.b16 %v3969
    %v4818 = vunpack.c.l.b16 %v3970
    %v4819 = vunpack.c.h.b16 %v3970
    %v4820 = vunpack.c.l.b16 %v3971
    %v4821 = vunpack.c.h.b16 %v3971
    %v4822 = vunpack.c.l.b16 %v3972
    %v4823 = vunpack.c.h.b16 %v3972
    %v4824 = vunpack.c.l.b16 %v3973
    %v4825 = vunpack.c.l.b16 %v3974
    %v4826 = vunpack.c.h.b16 %v3974
    %v4827 = vunpack.c.l.b16 %v3975
    %v4828 = vunpack.c.h.b16 %v3975
    %v4829 = vunpack.c.l.b16 %v3976
    %v4830 = vunpack.c.h.b16 %v3976
    %v4831 = vunpack.c.l.b16 %v3977
    %v4832 = vunpack.c.l.b16 %v3978
    %v4833 = vunpack.c.h.b16 %v3978
    %v4834 = vunpack.c.l.b16 %v3979
    %v4835 = vunpack.c.h.b16 %v3979
    %v4836 = vunpack.c.l.b16 %v3980
    %v4837 = vunpack.c.h.b16 %v3980
    %v4838 = vunpack.c.l.b16 %v3981
    %v4839 = vunpack.c.l.b16 %v3982
    %v4840 = vunpack.c.h.b16 %v3982
    %v4841 = vunpack.c.l.b16 %v3983
    %v4842 = vunpack.c.h.b16 %v3983
    %v4843 = vunpack.c.l.b16 %v3984
    %v4844 = vunpack.c.h.b16 %v3984
    %v4845 = vunpack.c.l.b16 %v3985
    %v4846 = vunpack.c.l.b16 %v3986
    %v4847 = vunpack.c.h.b16 %v3986
    %v4848 = vunpack.c.l.b16 %v3987
    %v4849 = vunpack.c.h.b16 %v3987
    %v4850 = vunpack.c.l.b16 %v3988
    %v4851 = vunpack.c.h.b16 %v3988
    %v4852 = vunpack.c.l.b16 %v3989
    %v4853 = vunpack.c.l.b16 %v3990
    %v4854 = vunpack.c.h.b16 %v3990
    %v4855 = vunpack.c.l.b16 %v3991
    %v4856 = vunpack.c.h.b16 %v3991
    %v4857 = vunpack.c.l.b16 %v3992
    %v4858 = vunpack.c.h.b16 %v3992
    %v4859 = vunpack.c.l.b16 %v3993
    %v4860 = vunpack.c.l.b16 %v3994
    %v4861 = vunpack.c.h.b16 %v3994
    %v4862 = vunpack.c.l.b16 %v3995
    %v4863 = vunpack.c.h.b16 %v3995
    %v4864 = vunpack.c.l.b16 %v3996
    %v4865 = vunpack.c.h.b16 %v3996
    %v4866 = vunpack.c.l.b16 %v3997
    %v4867 = vunpack.c.l.b16 %v3998
    %v4868 = vunpack.c.h.b16 %v3998
    %v4869 = vunpack.c.l.b16 %v3999
    %v4870 = vunpack.c.h.b16 %v3999
    %v4871 = vunpack.c.l.b16 %v4000
    %v4872 = vunpack.c.h.b16 %v4000
    %v4873 = vunpack.c.l.b16 %v4001
    %v4874 = vunpack.c.l.b16 %v4002
    %v4875 = vunpack.c.h.b16 %v4002
    %v4876 = vunpack.c.l.b16 %v4003
    %v4877 = vunpack.c.h.b16 %v4003
    %v4878 = vunpack.c.l.b16 %v4004
    %v4879 = vunpack.c.h.b16 %v4004
    %v4880 = vunpack.c.l.b16 %v4005
    %v4881 = vunpack.c.l.b16 %v4006
    %v4882 = vunpack.c.h.b16 %v4006
    %v4883 = vunpack.c.l.b16 %v4007
    %v4884 = vunpack.c.h.b16 %v4007
    %v4885 = vunpack.c.l.b16 %v4008
    %v4886 = vunpack.c.h.b16 %v4008
    %v4887 = vunpack.c.l.b16 %v4009
    %v4888 = vunpack.c.l.b16 %v4010
    %v4889 = vunpack.c.h.b16 %v4010
    %v4890 = vunpack.c.l.b16 %v4011
    %v4891 = vunpack.c.h.b16 %v4011
    %v4892 = vunpack.c.l.b16 %v4012
    %v4893 = vunpack.c.h.b16 %v4012
    %v4894 = vunpack.c.l.b16 %v4013
    %v4895 = vunpack.c.l.b16 %v4014
    %v4896 = vunpack.c.h.b16 %v4014
    %v4897 = vunpack.c.l.b16 %v4015
    %v4898 = vunpack.c.h.b16 %v4015
    %v4899 = vunpack.c.l.b16 %v4016
    %v4900 = vunpack.c.h.b16 %v4016
    %v4901 = vunpack.c.l.b16 %v4017
    %v4902 = vunpack.c.l.b16 %v4018
    %v4903 = vunpack.c.h.b16 %v4018
    %v4904 = vunpack.c.l.b16 %v4019
    %v4905 = vunpack.c.h.b16 %v4019
    %v4906 = vunpack.c.l.b16 %v4020
    %v4907 = vunpack.c.h.b16 %v4020
    %v4908 = vunpack.c.l.b16 %v4021
    %v4909 = vunpack.c.l.b16 %v4022
    %v4910 = vunpack.c.h.b16 %v4022
    %v4911 = vunpack.c.l.b16 %v4023
    %v4912 = vunpack.c.h.b16 %v4023
    %v4913 = vunpack.c.l.b16 %v4024
    %v4914 = vunpack.c.h.b16 %v4024
    %v4915 = vunpack.c.l.b16 %v4025
    %v4916 = vunpack.c.l.b16 %v4026
    %v4917 = vunpack.c.h.b16 %v4026
    %v4918 = vunpack.c.l.b16 %v4027
    %v4919 = vunpack.c.h.b16 %v4027
    %v4920 = vunpack.c.l.b16 %v4028
    %v4921 = vunpack.c.h.b16 %v4028
    %v4922 = vunpack.c.l.b16 %v4029
    %v4923 = vunpack.c.l.b16 %v4030
    %v4924 = vunpack.c.h.b16 %v4030
    %v4925 = vunpack.c.l.b16 %v4031
    %v4926 = vunpack.c.h.b16 %v4031
    %v4927 = vunpack.c.l.b16 %v4032
    %v4928 = vunpack.c.h.b16 %v4032
    %v4929 = vunpack.c.l.b16 %v4033
    %v4930 = vpack.c.b16 %v4377, %v4370
    %v4931 = vpack.c.b16 %v4378, %v4371
    %v4932 = vpack.c.b16 %v4379, %v4372
    %v4933 = vpack.c.b16 %v4380, %v4373
    %v4934 = vpack.c.b16 %v4381, %v4374
    %v4935 = vpack.c.b16 %v4382, %v4375
    %v4936 = vpack.c.b16 %v4383, %v4376
    %v4937 = vpack.c.b16 %v4391, %v4384
    %v4938 = vpack.c.b16 %v4392, %v4385
    %v4939 = vpack.c.b16 %v4393, %v4386
    %v4940 = vpack.c.b16 %v4394, %v4387
    %v4941 = vpack.c.b16 %v4395, %v4388
    %v4942 = vpack.c.b16 %v4396, %v4389
    %v4943 = vpack.c.b16 %v4397, %v4390
    %v4944 = vpack.c.b16 %v4405, %v4398
    %v4945 = vpack.c.b16 %v4406, %v4399
    %v4946 = vpack.c.b16 %v4407, %v4400
    %v4947 = vpack.c.b16 %v4408, %v4401
    %v4948 = vpack.c.b16 %v4409, %v4402
    %v4949 = vpack.c.b16 %v4410, %v4403
    %v4950 = vpack.c.b16 %v4411, %v4404
    %v4951 = vpack.c.b16 %v4419, %v4412
    %v4952 = vpack.c.b16 %v4420, %v4413
    %v4953 = vpack.c.b16 %v4421, %v4414
    %v4954 = vpack.c.b16 %v4422, %v4415
    %v4955 = vpack.c.b16 %v4423, %v4416
    %v4956 = vpack.c.b16 %v4424, %v4417
    %v4957 = vpack.c.b16 %v4425, %v4418
    %v4958 = vpack.c.b16 %v4433, %v4426
    %v4959 = vpack.c.b16 %v4434, %v4427
    %v4960 = vpack.c.b16 %v4435, %v4428
    %v4961 = vpack.c.b16 %v4436, %v4429
    %v4962 = vpack.c.b16 %v4437, %v4430
    %v4963 = vpack.c.b16 %v4438, %v4431
    %v4964 = vpack.c.b16 %v4439, %v4432
    %v4965 = vpack.c.b16 %v4447, %v4440
    %v4966 = vpack.c.b16 %v4448, %v4441
    %v4967 = vpack.c.b16 %v4449, %v4442
    %v4968 = vpack.c.b16 %v4450, %v4443
    %v4969 = vpack.c.b16 %v4451, %v4444
    %v4970 = vpack.c.b16 %v4452, %v4445
    %v4971 = vpack.c.b16 %v4453, %v4446
    %v4972 = vpack.c.b16 %v4461, %v4454
    %v4973 = vpack.c.b16 %v4462, %v4455
    %v4974 = vpack.c.b16 %v4463, %v4456
    %v4975 = vpack.c.b16 %v4464, %v4457
    %v4976 = vpack.c.b16 %v4465, %v4458
    %v4977 = vpack.c.b16 %v4466, %v4459
    %v4978 = vpack.c.b16 %v4467, %v4460
    %v4979 = vpack.c.b16 %v4475, %v4468
    %v4980 = vpack.c.b16 %v4476, %v4469
    %v4981 = vpack.c.b16 %v4477, %v4470
    %v4982 = vpack.c.b16 %v4478, %v4471
    %v4983 = vpack.c.b16 %v4479, %v4472
    %v4984 = vpack.c.b16 %v4480, %v4473
    %v4985 = vpack.c.b16 %v4481, %v4474
    %v4986 = vpack.c.b16 %v4489, %v4482
    %v4987 = vpack.c.b16 %v4490, %v4483
    %v4988 = vpack.c.b16 %v4491, %v4484
    %v4989 = vpack.c.b16 %v4492, %v4485
    %v4990 = vpack.c.b16 %v4493, %v4486
    %v4991 = vpack.c.b16 %v4494, %v4487
    %v4992 = vpack.c.b16 %v4495, %v4488
    %v4993 = vpack.c.b16 %v4503, %v4496
    %v4994 = vpack.c.b16 %v4504, %v4497
    %v4995 = vpack.c.b16 %v4505, %v4498
    %v4996 = vpack.c.b16 %v4506, %v4499
    %v4997 = vpack.c.b16 %v4507, %v4500
    %v4998 = vpack.c.b16 %v4508, %v4501
    %v4999 = vpack.c.b16 %v4509, %v4502
    %v5000 = vpack.c.b16 %v4517, %v4510
    %v5001 = vpack.c.b16 %v4518, %v4511
    %v5002 = vpack.c.b16 %v4519, %v4512
    %v5003 = vpack.c.b16 %v4520, %v4513
    %v5004 = vpack.c.b16 %v4521, %v4514
    %v5005 = vpack.c.b16 %v4522, %v4515
    %v5006 = vpack.c.b16 %v4523, %v4516
    %v5007 = vpack.c.b16 %v4531, %v4524
    %v5008 = vpack.c.b16 %v4532, %v4525
    %v5009 = vpack.c.b16 %v4533, %v4526
    %v5010 = vpack.c.b16 %v4534, %v4527
    %v5011 = vpack.c.b16 %v4535, %v4528
    %v5012 = vpack.c.b16 %v4536, %v4529
    %v5013 = vpack.c.b16 %v4537, %v4530
    %v5014 = vpack.c.b16 %v4545, %v4538
    %v5015 = vpack.c.b16 %v4546, %v4539
    %v5016 = vpack.c.b16 %v4547, %v4540
    %v5017 = vpack.c.b16 %v4548, %v4541
    %v5018 = vpack.c.b16 %v4549, %v4542
    %v5019 = vpack.c.b16 %v4550, %v4543
    %v5020 = vpack.c.b16 %v4551, %v4544
    %v5021 = vpack.c.b16 %v4559, %v4552
    %v5022 = vpack.c.b16 %v4560, %v4553
    %v5023 = vpack.c.b16 %v4561, %v4554
    %v5024 = vpack.c.b16 %v4562, %v4555
    %v5025 = vpack.c.b16 %v4563, %v4556
    %v5026 = vpack.c.b16 %v4564, %v4557
    %v5027 = vpack.c.b16 %v4565, %v4558
    %v5028 = vpack.c.b16 %v4573, %v4566
    %v5029 = vpack.c.b16 %v4574, %v4567
    %v5030 = vpack.c.b16 %v4575, %v4568
    %v5031 = vpack.c.b16 %v4576, %v4569
    %v5032 = vpack.c.b16 %v4577, %v4570
    %v5033 = vpack.c.b16 %v4578, %v4571
    %v5034 = vpack.c.b16 %v4579, %v4572
    %v5035 = vpack.c.b16 %v4587, %v4580
    %v5036 = vpack.c.b16 %v4588, %v4581
    %v5037 = vpack.c.b16 %v4589, %v4582
    %v5038 = vpack.c.b16 %v4590, %v4583
    %v5039 = vpack.c.b16 %v4591, %v4584
    %v5040 = vpack.c.b16 %v4592, %v4585
    %v5041 = vpack.c.b16 %v4593, %v4586
    %v5042 = vpack.c.b16 %v4601, %v4594
    %v5043 = vpack.c.b16 %v4602, %v4595
    %v5044 = vpack.c.b16 %v4603, %v4596
    %v5045 = vpack.c.b16 %v4604, %v4597
    %v5046 = vpack.c.b16 %v4605, %v4598
    %v5047 = vpack.c.b16 %v4606, %v4599
    %v5048 = vpack.c.b16 %v4607, %v4600
    %v5049 = vpack.c.b16 %v4615, %v4608
    %v5050 = vpack.c.b16 %v4616, %v4609
    %v5051 = vpack.c.b16 %v4617, %v4610
    %v5052 = vpack.c.b16 %v4618, %v4611
    %v5053 = vpack.c.b16 %v4619, %v4612
    %v5054 = vpack.c.b16 %v4620, %v4613
    %v5055 = vpack.c.b16 %v4621, %v4614
    %v5056 = vpack.c.b16 %v4629, %v4622
    %v5057 = vpack.c.b16 %v4630, %v4623
    %v5058 = vpack.c.b16 %v4631, %v4624
    %v5059 = vpack.c.b16 %v4632, %v4625
    %v5060 = vpack.c.b16 %v4633, %v4626
    %v5061 = vpack.c.b16 %v4634, %v4627
    %v5062 = vpack.c.b16 %v4635, %v4628
    %v5063 = vpack.c.b16 %v4643, %v4636
    %v5064 = vpack.c.b16 %v4644, %v4637
    %v5065 = vpack.c.b16 %v4645, %v4638
    %v5066 = vpack.c.b16 %v4646, %v4639
    %v5067 = vpack.c.b16 %v4647, %v4640
    %v5068 = vpack.c.b16 %v4648, %v4641
    %v5069 = vpack.c.b16 %v4649, %v4642
    %v5070 = vpack.c.b16 %v4657, %v4650
    %v5071 = vpack.c.b16 %v4658, %v4651
    %v5072 = vpack.c.b16 %v4659, %v4652
    %v5073 = vpack.c.b16 %v4660, %v4653
    %v5074 = vpack.c.b16 %v4661, %v4654
    %v5075 = vpack.c.b16 %v4662, %v4655
    %v5076 = vpack.c.b16 %v4663, %v4656
    %v5077 = vpack.c.b16 %v4671, %v4664
    %v5078 = vpack.c.b16 %v4672, %v4665
    %v5079 = vpack.c.b16 %v4673, %v4666
    %v5080 = vpack.c.b16 %v4674, %v4667
    %v5081 = vpack.c.b16 %v4675, %v4668
    %v5082 = vpack.c.b16 %v4676, %v4669
    %v5083 = vpack.c.b16 %v4677, %v4670
    %v5084 = vpack.c.b16 %v4685, %v4678
    %v5085 = vpack.c.b16 %v4686, %v4679
    %v5086 = vpack.c.b16 %v4687, %v4680
    %v5087 = vpack.c.b16 %v4688, %v4681
    %v5088 = vpack.c.b16 %v4689, %v4682
    %v5089 = vpack.c.b16 %v4690, %v4683
    %v5090 = vpack.c.b16 %v4691, %v4684
    %v5091 = vpack.c.b16 %v4699, %v4692
    %v5092 = vpack.c.b16 %v4700, %v4693
    %v5093 = vpack.c.b16 %v4701, %v4694
    %v5094 = vpack.c.b16 %v4702, %v4695
    %v5095 = vpack.c.b16 %v4703, %v4696
    %v5096 = vpack.c.b16 %v4704, %v4697
    %v5097 = vpack.c.b16 %v4705, %v4698
    %v5098 = vpack.c.b16 %v4713, %v4706
    %v5099 = vpack.c.b16 %v4714, %v4707
    %v5100 = vpack.c.b16 %v4715, %v4708
    %v5101 = vpack.c.b16 %v4716, %v4709
    %v5102 = vpack.c.b16 %v4717, %v4710
    %v5103 = vpack.c.b16 %v4718, %v4711
    %v5104 = vpack.c.b16 %v4719, %v4712
    %v5105 = vpack.c.b16 %v4727, %v4720
    %v5106 = vpack.c.b16 %v4728, %v4721
    %v5107 = vpack.c.b16 %v4729, %v4722
    %v5108 = vpack.c.b16 %v4730, %v4723
    %v5109 = vpack.c.b16 %v4731, %v4724
    %v5110 = vpack.c.b16 %v4732, %v4725
    %v5111 = vpack.c.b16 %v4733, %v4726
    %v5112 = vpack.c.b16 %v4741, %v4734
    %v5113 = vpack.c.b16 %v4742, %v4735
    %v5114 = vpack.c.b16 %v4743, %v4736
    %v5115 = vpack.c.b16 %v4744, %v4737
    %v5116 = vpack.c.b16 %v4745, %v4738
    %v5117 = vpack.c.b16 %v4746, %v4739
    %v5118 = vpack.c.b16 %v4747, %v4740
    %v5119 = vpack.c.b16 %v4755, %v4748
    %v5120 = vpack.c.b16 %v4756, %v4749
    %v5121 = vpack.c.b16 %v4757, %v4750
    %v5122 = vpack.c.b16 %v4758, %v4751
    %v5123 = vpack.c.b16 %v4759, %v4752
    %v5124 = vpack.c.b16 %v4760, %v4753
    %v5125 = vpack.c.b16 %v4761, %v4754
    %v5126 = vpack.c.b16 %v4769, %v4762
    %v5127 = vpack.c.b16 %v4770, %v4763
    %v5128 = vpack.c.b16 %v4771, %v4764
    %v5129 = vpack.c.b16 %v4772, %v4765
    %v5130 = vpack.c.b16 %v4773, %v4766
    %v5131 = vpack.c.b16 %v4774, %v4767
    %v5132 = vpack.c.b16 %v4775, %v4768
    %v5133 = vpack.c.b16 %v4783, %v4776
    %v5134 = vpack.c.b16 %v4784, %v4777
    %v5135 = vpack.c.b16 %v4785, %v4778
    %v5136 = vpack.c.b16 %v4786, %v4779
    %v5137 = vpack.c.b16 %v4787, %v4780
    %v5138 = vpack.c.b16 %v4788, %v4781
    %v5139 = vpack.c.b16 %v4789, %v4782
    %v5140 = vpack.c.b16 %v4797, %v4790
    %v5141 = vpack.c.b16 %v4798, %v4791
    %v5142 = vpack.c.b16 %v4799, %v4792
    %v5143 = vpack.c.b16 %v4800, %v4793
    %v5144 = vpack.c.b16 %v4801, %v4794
    %v5145 = vpack.c.b16 %v4802, %v4795
    %v5146 = vpack.c.b16 %v4803, %v4796
    %v5147 = vpack.c.b16 %v4811, %v4804
    %v5148 = vpack.c.b16 %v4812, %v4805
    %v5149 = vpack.c.b16 %v4813, %v4806
    %v5150 = vpack.c.b16 %v4814, %v4807
    %v5151 = vpack.c.b16 %v4815, %v4808
    %v5152 = vpack.c.b16 %v4816, %v4809
    %v5153 = vpack.c.b16 %v4817, %v4810
    %v5154 = vpack.c.b16 %v4825, %v4818
    %v5155 = vpack.c.b16 %v4826, %v4819
    %v5156 = vpack.c.b16 %v4827, %v4820
    %v5157 = vpack.c.b16 %v4828, %v4821
    %v5158 = vpack.c.b16 %v4829, %v4822
    %v5159 = vpack.c.b16 %v4830, %v4823
    %v5160 = vpack.c.b16 %v4831, %v4824
    %v5161 = vpack.c.b16 %v4839, %v4832
    %v5162 = vpack.c.b16 %v4840, %v4833
    %v5163 = vpack.c.b16 %v4841, %v4834
    %v5164 = vpack.c.b16 %v4842, %v4835
    %v5165 = vpack.c.b16 %v4843, %v4836
    %v5166 = vpack.c.b16 %v4844, %v4837
    %v5167 = vpack.c.b16 %v4845, %v4838
    %v5168 = vpack.c.b16 %v4853, %v4846
    %v5169 = vpack.c.b16 %v4854, %v4847
    %v5170 = vpack.c.b16 %v4855, %v4848
    %v5171 = vpack.c.b16 %v4856, %v4849
    %v5172 = vpack.c.b16 %v4857, %v4850
    %v5173 = vpack.c.b16 %v4858, %v4851
    %v5174 = vpack.c.b16 %v4859, %v4852
    %v5175 = vpack.c.b16 %v4867, %v4860
    %v5176 = vpack.c.b16 %v4868, %v4861
    %v5177 = vpack.c.b16 %v4869, %v4862
    %v5178 = vpack.c.b16 %v4870, %v4863
    %v5179 = vpack.c.b16 %v4871, %v4864
    %v5180 = vpack.c.b16 %v4872, %v4865
    %v5181 = vpack.c.b16 %v4873, %v4866
    %v5182 = vpack.c.b16 %v4881, %v4874
    %v5183 = vpack.c.b16 %v4882, %v4875
    %v5184 = vpack.c.b16 %v4883, %v4876
    %v5185 = vpack.c.b16 %v4884, %v4877
    %v5186 = vpack.c.b16 %v4885, %v4878
    %v5187 = vpack.c.b16 %v4886, %v4879
    %v5188 = vpack.c.b16 %v4887, %v4880
    %v5189 = vpack.c.b16 %v4895, %v4888
    %v5190 = vpack.c.b16 %v4896, %v4889
    %v5191 = vpack.c.b16 %v4897, %v4890
    %v5192 = vpack.c.b16 %v4898, %v4891
    %v5193 = vpack.c.b16 %v4899, %v4892
    %v5194 = vpack.c.b16 %v4900, %v4893
    %v5195 = vpack.c.b16 %v4901, %v4894
    %v5196 = vpack.c.b16 %v4909, %v4902
    %v5197 = vpack.c.b16 %v4910, %v4903
    %v5198 = vpack.c.b16 %v4911, %v4904
    %v5199 = vpack.c.b16 %v4912, %v4905
    %v5200 = vpack.c.b16 %v4913, %v4906
    %v5201 = vpack.c.b16 %v4914, %v4907
    %v5202 = vpack.c.b16 %v4915, %v4908
    %v5203 = vpack.c.b16 %v4923, %v4916
    %v5204 = vpack.c.b16 %v4924, %v4917
    %v5205 = vpack.c.b16 %v4925, %v4918
    %v5206 = vpack.c.b16 %v4926, %v4919
    %v5207 = vpack.c.b16 %v4927, %v4920
    %v5208 = vpack.c.b16 %v4928, %v4921
    %v5209 = vpack.c.b16 %v4929, %v4922
    %5490 = vmatpush.bf16.msra.mxu0 %v4979
    %5491 = vmatpush.bf16.msra.mxu0 %v4972
    %5492 = vmatpush.bf16.msra.mxu0 %v4965
    %5493 = vmatpush.bf16.msra.mxu0 %v4958
    %5494 = vmatpush.bf16.msra.mxu0 %v4951
    %5495 = vmatpush.bf16.msra.mxu0 %v4944
    %5496 = vmatpush.bf16.msra.mxu0 %v4937
    %5497 = vmatpush.bf16.msra.mxu0 %v4930
    %5498 = vmatmul.bf16.gmra.mxu0 %v3709
    %v5499 = vpop.f32.mrf.mxu0
    %v5500 = vadd.f32 %v4036, %v5499
    %v5501 = vpop.f32.mrf.mxu0
    %5502 = vdwg.mxu0
    %5503 = vmatpush.bf16.msra.mxu0 %v5035
    %5504 = vmatpush.bf16.msra.mxu0 %v5028
    %5505 = vmatpush.bf16.msra.mxu0 %v5021
    %5506 = vmatpush.bf16.msra.mxu0 %v5014
    %5507 = vmatpush.bf16.msra.mxu0 %v5007
    %5508 = vmatpush.bf16.msra.mxu0 %v5000
    %5509 = vmatpush.bf16.msra.mxu0 %v4993
    %5510 = vmatpush.bf16.msra.mxu0 %v4986
    %5511 = vmatmul.bf16.gmra.mxu0 %v3710
    %v5512 = vpop.f32.mrf.mxu0
    %v5513 = vadd.f32 %v5500, %v5512
    %v5514 = vpop.f32.mrf.mxu0
    %5515 = vdwg.mxu0
    %5516 = vmatpush.bf16.msra.mxu0 %v5091
    %5517 = vmatpush.bf16.msra.mxu0 %v5084
    %5518 = vmatpush.bf16.msra.mxu0 %v5077
    %5519 = vmatpush.bf16.msra.mxu0 %v5070
    %5520 = vmatpush.bf16.msra.mxu0 %v5063
    %5521 = vmatpush.bf16.msra.mxu0 %v5056
    %5522 = vmatpush.bf16.msra.mxu0 %v5049
    %5523 = vmatpush.bf16.msra.mxu0 %v5042
    %5524 = vmatmul.bf16.gmra.mxu0 %v3711
    %v5525 = vpop.f32.mrf.mxu0
    %v5526 = vadd.f32 %v5513, %v5525
    %v5527 = vpop.f32.mrf.mxu0
    %5528 = vdwg.mxu0
    %5529 = vmatpush.bf16.msra.mxu0 %v5147
    %5530 = vmatpush.bf16.msra.mxu0 %v5140
    %5531 = vmatpush.bf16.msra.mxu0 %v5133
    %5532 = vmatpush.bf16.msra.mxu0 %v5126
    %5533 = vmatpush.bf16.msra.mxu0 %v5119
    %5534 = vmatpush.bf16.msra.mxu0 %v5112
    %5535 = vmatpush.bf16.msra.mxu0 %v5105
    %5536 = vmatpush.bf16.msra.mxu0 %v5098
    %5537 = vmatmul.bf16.gmra.mxu0 %v3712
    %v5538 = vpop.f32.mrf.mxu0
    %v5539 = vadd.f32 %v5526, %v5538
    %v5540 = vpop.f32.mrf.mxu0
    %5541 = vdwg.mxu0
    %5542 = vmatpush.bf16.msra.mxu0 %v5203
    %5543 = vmatpush.bf16.msra.mxu0 %v5196
    %5544 = vmatpush.bf16.msra.mxu0 %v5189
    %5545 = vmatpush.bf16.msra.mxu0 %v5182
    %5546 = vmatpush.bf16.msra.mxu0 %v5175
    %5547 = vmatpush.bf16.msra.mxu0 %v5168
    %5548 = vmatpush.bf16.msra.mxu0 %v5161
    %5549 = vmatpush.bf16.msra.mxu0 %v5154
    %5550 = vmatmul.bf16.gmra.mxu0 %v3713
    %v5551 = vpop.f32.mrf.mxu0
    %v5552 = vadd.f32 %v5539, %v5551
    %v5553 = vpop.f32.mrf.mxu0
    %5554 = vdwg.mxu0
    %5555 = vmatpush.bf16.msra.mxu0 %v4980
    %5556 = vmatpush.bf16.msra.mxu0 %v4973
    %5557 = vmatpush.bf16.msra.mxu0 %v4966
    %5558 = vmatpush.bf16.msra.mxu0 %v4959
    %5559 = vmatpush.bf16.msra.mxu0 %v4952
    %5560 = vmatpush.bf16.msra.mxu0 %v4945
    %5561 = vmatpush.bf16.msra.mxu0 %v4938
    %5562 = vmatpush.bf16.msra.mxu0 %v4931
    %5563 = vmatmul.bf16.gmra.mxu0 %v3709
    %v5564 = vpop.f32.mrf.mxu0
    %v5565 = vadd.f32 %v4037, %v5564
    %v5566 = vpop.f32.mrf.mxu0
    %5567 = vdwg.mxu0
    %5568 = vmatpush.bf16.msra.mxu0 %v5036
    %5569 = vmatpush.bf16.msra.mxu0 %v5029
    %5570 = vmatpush.bf16.msra.mxu0 %v5022
    %5571 = vmatpush.bf16.msra.mxu0 %v5015
    %5572 = vmatpush.bf16.msra.mxu0 %v5008
    %5573 = vmatpush.bf16.msra.mxu0 %v5001
    %5574 = vmatpush.bf16.msra.mxu0 %v4994
    %5575 = vmatpush.bf16.msra.mxu0 %v4987
    %5576 = vmatmul.bf16.gmra.mxu0 %v3710
    %v5577 = vpop.f32.mrf.mxu0
    %v5578 = vadd.f32 %v5565, %v5577
    %v5579 = vpop.f32.mrf.mxu0
    %5580 = vdwg.mxu0
    %5581 = vmatpush.bf16.msra.mxu0 %v5092
    %5582 = vmatpush.bf16.msra.mxu0 %v5085
    %5583 = vmatpush.bf16.msra.mxu0 %v5078
    %5584 = vmatpush.bf16.msra.mxu0 %v5071
    %5585 = vmatpush.bf16.msra.mxu0 %v5064
    %5586 = vmatpush.bf16.msra.mxu0 %v5057
    %5587 = vmatpush.bf16.msra.mxu0 %v5050
    %5588 = vmatpush.bf16.msra.mxu0 %v5043
    %5589 = vmatmul.bf16.gmra.mxu0 %v3711
    %v5590 = vpop.f32.mrf.mxu0
    %v5591 = vadd.f32 %v5578, %v5590
    %v5592 = vpop.f32.mrf.mxu0
    %5593 = vdwg.mxu0
    %5594 = vmatpush.bf16.msra.mxu0 %v5148
    %5595 = vmatpush.bf16.msra.mxu0 %v5141
    %5596 = vmatpush.bf16.msra.mxu0 %v5134
    %5597 = vmatpush.bf16.msra.mxu0 %v5127
    %5598 = vmatpush.bf16.msra.mxu0 %v5120
    %5599 = vmatpush.bf16.msra.mxu0 %v5113
    %5600 = vmatpush.bf16.msra.mxu0 %v5106
    %5601 = vmatpush.bf16.msra.mxu0 %v5099
    %5602 = vmatmul.bf16.gmra.mxu0 %v3712
    %v5603 = vpop.f32.mrf.mxu0
    %v5604 = vadd.f32 %v5591, %v5603
    %v5605 = vpop.f32.mrf.mxu0
    %5606 = vdwg.mxu0
    %5607 = vmatpush.bf16.msra.mxu0 %v5204
    %5608 = vmatpush.bf16.msra.mxu0 %v5197
    %5609 = vmatpush.bf16.msra.mxu0 %v5190
    %5610 = vmatpush.bf16.msra.mxu0 %v5183
    %5611 = vmatpush.bf16.msra.mxu0 %v5176
    %5612 = vmatpush.bf16.msra.mxu0 %v5169
    %5613 = vmatpush.bf16.msra.mxu0 %v5162
    %5614 = vmatpush.bf16.msra.mxu0 %v5155
    %5615 = vmatmul.bf16.gmra.mxu0 %v3713
    %v5616 = vpop.f32.mrf.mxu0
    %v5617 = vadd.f32 %v5604, %v5616
    %v5618 = vpop.f32.mrf.mxu0
    %5619 = vdwg.mxu0
    %5620 = vmatpush.bf16.msra.mxu0 %v4981
    %5621 = vmatpush.bf16.msra.mxu0 %v4974
    %5622 = vmatpush.bf16.msra.mxu0 %v4967
    %5623 = vmatpush.bf16.msra.mxu0 %v4960
    %5624 = vmatpush.bf16.msra.mxu0 %v4953
    %5625 = vmatpush.bf16.msra.mxu0 %v4946
    %5626 = vmatpush.bf16.msra.mxu0 %v4939
    %5627 = vmatpush.bf16.msra.mxu0 %v4932
    %5628 = vmatmul.bf16.gmra.mxu0 %v3709
    %v5629 = vpop.f32.mrf.mxu0
    %v5630 = vadd.f32 %v4038, %v5629
    %v5631 = vpop.f32.mrf.mxu0
    %5632 = vdwg.mxu0
    %5633 = vmatpush.bf16.msra.mxu0 %v5037
    %5634 = vmatpush.bf16.msra.mxu0 %v5030
    %5635 = vmatpush.bf16.msra.mxu0 %v5023
    %5636 = vmatpush.bf16.msra.mxu0 %v5016
    %5637 = vmatpush.bf16.msra.mxu0 %v5009
    %5638 = vmatpush.bf16.msra.mxu0 %v5002
    %5639 = vmatpush.bf16.msra.mxu0 %v4995
    %5640 = vmatpush.bf16.msra.mxu0 %v4988
    %5641 = vmatmul.bf16.gmra.mxu0 %v3710
    %v5642 = vpop.f32.mrf.mxu0
    %v5643 = vadd.f32 %v5630, %v5642
    %v5644 = vpop.f32.mrf.mxu0
    %5645 = vdwg.mxu0
    %5646 = vmatpush.bf16.msra.mxu0 %v5093
    %5647 = vmatpush.bf16.msra.mxu0 %v5086
    %5648 = vmatpush.bf16.msra.mxu0 %v5079
    %5649 = vmatpush.bf16.msra.mxu0 %v5072
    %5650 = vmatpush.bf16.msra.mxu0 %v5065
    %5651 = vmatpush.bf16.msra.mxu0 %v5058
    %5652 = vmatpush.bf16.msra.mxu0 %v5051
    %5653 = vmatpush.bf16.msra.mxu0 %v5044
    %5654 = vmatmul.bf16.gmra.mxu0 %v3711
    %v5655 = vpop.f32.mrf.mxu0
    %v5656 = vadd.f32 %v5643, %v5655
    %v5657 = vpop.f32.mrf.mxu0
    %5658 = vdwg.mxu0
    %5659 = vmatpush.bf16.msra.mxu0 %v5149
    %5660 = vmatpush.bf16.msra.mxu0 %v5142
    %5661 = vmatpush.bf16.msra.mxu0 %v5135
    %5662 = vmatpush.bf16.msra.mxu0 %v5128
    %5663 = vmatpush.bf16.msra.mxu0 %v5121
    %5664 = vmatpush.bf16.msra.mxu0 %v5114
    %5665 = vmatpush.bf16.msra.mxu0 %v5107
    %5666 = vmatpush.bf16.msra.mxu0 %v5100
    %5667 = vmatmul.bf16.gmra.mxu0 %v3712
    %v5668 = vpop.f32.mrf.mxu0
    %v5669 = vadd.f32 %v5656, %v5668
    %v5670 = vpop.f32.mrf.mxu0
    %5671 = vdwg.mxu0
    %5672 = vmatpush.bf16.msra.mxu0 %v5205
    %5673 = vmatpush.bf16.msra.mxu0 %v5198
    %5674 = vmatpush.bf16.msra.mxu0 %v5191
    %5675 = vmatpush.bf16.msra.mxu0 %v5184
    %5676 = vmatpush.bf16.msra.mxu0 %v5177
    %5677 = vmatpush.bf16.msra.mxu0 %v5170
    %5678 = vmatpush.bf16.msra.mxu0 %v5163
    %5679 = vmatpush.bf16.msra.mxu0 %v5156
    %5680 = vmatmul.bf16.gmra.mxu0 %v3713
    %v5681 = vpop.f32.mrf.mxu0
    %v5682 = vadd.f32 %v5669, %v5681
    %v5683 = vpop.f32.mrf.mxu0
    %5684 = vdwg.mxu0
    %5685 = vmatpush.bf16.msra.mxu0 %v4982
    %5686 = vmatpush.bf16.msra.mxu0 %v4975
    %5687 = vmatpush.bf16.msra.mxu0 %v4968
    %5688 = vmatpush.bf16.msra.mxu0 %v4961
    %5689 = vmatpush.bf16.msra.mxu0 %v4954
    %5690 = vmatpush.bf16.msra.mxu0 %v4947
    %5691 = vmatpush.bf16.msra.mxu0 %v4940
    %5692 = vmatpush.bf16.msra.mxu0 %v4933
    %5693 = vmatmul.bf16.gmra.mxu0 %v3709
    %v5694 = vpop.f32.mrf.mxu0
    %v5695 = vadd.f32 %v4039, %v5694
    %v5696 = vpop.f32.mrf.mxu0
    %5697 = vdwg.mxu0
    %5698 = vmatpush.bf16.msra.mxu0 %v5038
    %5699 = vmatpush.bf16.msra.mxu0 %v5031
    %5700 = vmatpush.bf16.msra.mxu0 %v5024
    %5701 = vmatpush.bf16.msra.mxu0 %v5017
    %5702 = vmatpush.bf16.msra.mxu0 %v5010
    %5703 = vmatpush.bf16.msra.mxu0 %v5003
    %5704 = vmatpush.bf16.msra.mxu0 %v4996
    %5705 = vmatpush.bf16.msra.mxu0 %v4989
    %5706 = vmatmul.bf16.gmra.mxu0 %v3710
    %v5707 = vpop.f32.mrf.mxu0
    %v5708 = vadd.f32 %v5695, %v5707
    %v5709 = vpop.f32.mrf.mxu0
    %5710 = vdwg.mxu0
    %5711 = vmatpush.bf16.msra.mxu0 %v5094
    %5712 = vmatpush.bf16.msra.mxu0 %v5087
    %5713 = vmatpush.bf16.msra.mxu0 %v5080
    %5714 = vmatpush.bf16.msra.mxu0 %v5073
    %5715 = vmatpush.bf16.msra.mxu0 %v5066
    %5716 = vmatpush.bf16.msra.mxu0 %v5059
    %5717 = vmatpush.bf16.msra.mxu0 %v5052
    %5718 = vmatpush.bf16.msra.mxu0 %v5045
    %5719 = vmatmul.bf16.gmra.mxu0 %v3711
    %v5720 = vpop.f32.mrf.mxu0
    %v5721 = vadd.f32 %v5708, %v5720
    %v5722 = vpop.f32.mrf.mxu0
    %5723 = vdwg.mxu0
    %5724 = vmatpush.bf16.msra.mxu0 %v5150
    %5725 = vmatpush.bf16.msra.mxu0 %v5143
    %5726 = vmatpush.bf16.msra.mxu0 %v5136
    %5727 = vmatpush.bf16.msra.mxu0 %v5129
    %5728 = vmatpush.bf16.msra.mxu0 %v5122
    %5729 = vmatpush.bf16.msra.mxu0 %v5115
    %5730 = vmatpush.bf16.msra.mxu0 %v5108
    %5731 = vmatpush.bf16.msra.mxu0 %v5101
    %5732 = vmatmul.bf16.gmra.mxu0 %v3712
    %v5733 = vpop.f32.mrf.mxu0
    %v5734 = vadd.f32 %v5721, %v5733
    %v5735 = vpop.f32.mrf.mxu0
    %5736 = vdwg.mxu0
    %5737 = vmatpush.bf16.msra.mxu0 %v5206
    %5738 = vmatpush.bf16.msra.mxu0 %v5199
    %5739 = vmatpush.bf16.msra.mxu0 %v5192
    %5740 = vmatpush.bf16.msra.mxu0 %v5185
    %5741 = vmatpush.bf16.msra.mxu0 %v5178
    %5742 = vmatpush.bf16.msra.mxu0 %v5171
    %5743 = vmatpush.bf16.msra.mxu0 %v5164
    %5744 = vmatpush.bf16.msra.mxu0 %v5157
    %5745 = vmatmul.bf16.gmra.mxu0 %v3713
    %v5746 = vpop.f32.mrf.mxu0
    %v5747 = vadd.f32 %v5734, %v5746
    %v5748 = vpop.f32.mrf.mxu0
    %5749 = vdwg.mxu0
    %5750 = vmatpush.bf16.msra.mxu0 %v4983
    %5751 = vmatpush.bf16.msra.mxu0 %v4976
    %5752 = vmatpush.bf16.msra.mxu0 %v4969
    %5753 = vmatpush.bf16.msra.mxu0 %v4962
    %5754 = vmatpush.bf16.msra.mxu0 %v4955
    %5755 = vmatpush.bf16.msra.mxu0 %v4948
    %5756 = vmatpush.bf16.msra.mxu0 %v4941
    %5757 = vmatpush.bf16.msra.mxu0 %v4934
    %5758 = vmatmul.bf16.gmra.mxu0 %v3709
    %v5759 = vpop.f32.mrf.mxu0
    %v5760 = vadd.f32 %v4040, %v5759
    %v5761 = vpop.f32.mrf.mxu0
    %5762 = vdwg.mxu0
    %5763 = vmatpush.bf16.msra.mxu0 %v5039
    %5764 = vmatpush.bf16.msra.mxu0 %v5032
    %5765 = vmatpush.bf16.msra.mxu0 %v5025
    %5766 = vmatpush.bf16.msra.mxu0 %v5018
    %5767 = vmatpush.bf16.msra.mxu0 %v5011
    %5768 = vmatpush.bf16.msra.mxu0 %v5004
    %5769 = vmatpush.bf16.msra.mxu0 %v4997
    %5770 = vmatpush.bf16.msra.mxu0 %v4990
    %5771 = vmatmul.bf16.gmra.mxu0 %v3710
    %v5772 = vpop.f32.mrf.mxu0
    %v5773 = vadd.f32 %v5760, %v5772
    %v5774 = vpop.f32.mrf.mxu0
    %5775 = vdwg.mxu0
    %5776 = vmatpush.bf16.msra.mxu0 %v5095
    %5777 = vmatpush.bf16.msra.mxu0 %v5088
    %5778 = vmatpush.bf16.msra.mxu0 %v5081
    %5779 = vmatpush.bf16.msra.mxu0 %v5074
    %5780 = vmatpush.bf16.msra.mxu0 %v5067
    %5781 = vmatpush.bf16.msra.mxu0 %v5060
    %5782 = vmatpush.bf16.msra.mxu0 %v5053
    %5783 = vmatpush.bf16.msra.mxu0 %v5046
    %5784 = vmatmul.bf16.gmra.mxu0 %v3711
    %v5785 = vpop.f32.mrf.mxu0
    %v5786 = vadd.f32 %v5773, %v5785
    %v5787 = vpop.f32.mrf.mxu0
    %5788 = vdwg.mxu0
    %5789 = vmatpush.bf16.msra.mxu0 %v5151
    %5790 = vmatpush.bf16.msra.mxu0 %v5144
    %5791 = vmatpush.bf16.msra.mxu0 %v5137
    %5792 = vmatpush.bf16.msra.mxu0 %v5130
    %5793 = vmatpush.bf16.msra.mxu0 %v5123
    %5794 = vmatpush.bf16.msra.mxu0 %v5116
    %5795 = vmatpush.bf16.msra.mxu0 %v5109
    %5796 = vmatpush.bf16.msra.mxu0 %v5102
    %5797 = vmatmul.bf16.gmra.mxu0 %v3712
    %v5798 = vpop.f32.mrf.mxu0
    %v5799 = vadd.f32 %v5786, %v5798
    %v5800 = vpop.f32.mrf.mxu0
    %5801 = vdwg.mxu0
    %5802 = vmatpush.bf16.msra.mxu0 %v5207
    %5803 = vmatpush.bf16.msra.mxu0 %v5200
    %5804 = vmatpush.bf16.msra.mxu0 %v5193
    %5805 = vmatpush.bf16.msra.mxu0 %v5186
    %5806 = vmatpush.bf16.msra.mxu0 %v5179
    %5807 = vmatpush.bf16.msra.mxu0 %v5172
    %5808 = vmatpush.bf16.msra.mxu0 %v5165
    %5809 = vmatpush.bf16.msra.mxu0 %v5158
    %5810 = vmatmul.bf16.gmra.mxu0 %v3713
    %v5811 = vpop.f32.mrf.mxu0
    %v5812 = vadd.f32 %v5799, %v5811
    %v5813 = vpop.f32.mrf.mxu0
    %5814 = vdwg.mxu0
    %5815 = vmatpush.bf16.msra.mxu0 %v4984
    %5816 = vmatpush.bf16.msra.mxu0 %v4977
    %5817 = vmatpush.bf16.msra.mxu0 %v4970
    %5818 = vmatpush.bf16.msra.mxu0 %v4963
    %5819 = vmatpush.bf16.msra.mxu0 %v4956
    %5820 = vmatpush.bf16.msra.mxu0 %v4949
    %5821 = vmatpush.bf16.msra.mxu0 %v4942
    %5822 = vmatpush.bf16.msra.mxu0 %v4935
    %5823 = vmatmul.bf16.gmra.mxu0 %v3709
    %v5824 = vpop.f32.mrf.mxu0
    %v5825 = vadd.f32 %v4041, %v5824
    %v5826 = vpop.f32.mrf.mxu0
    %5827 = vdwg.mxu0
    %5828 = vmatpush.bf16.msra.mxu0 %v5040
    %5829 = vmatpush.bf16.msra.mxu0 %v5033
    %5830 = vmatpush.bf16.msra.mxu0 %v5026
    %5831 = vmatpush.bf16.msra.mxu0 %v5019
    %5832 = vmatpush.bf16.msra.mxu0 %v5012
    %5833 = vmatpush.bf16.msra.mxu0 %v5005
    %5834 = vmatpush.bf16.msra.mxu0 %v4998
    %5835 = vmatpush.bf16.msra.mxu0 %v4991
    %5836 = vmatmul.bf16.gmra.mxu0 %v3710
    %v5837 = vpop.f32.mrf.mxu0
    %v5838 = vadd.f32 %v5825, %v5837
    %v5839 = vpop.f32.mrf.mxu0
    %5840 = vdwg.mxu0
    %5841 = vmatpush.bf16.msra.mxu0 %v5096
    %5842 = vmatpush.bf16.msra.mxu0 %v5089
    %5843 = vmatpush.bf16.msra.mxu0 %v5082
    %5844 = vmatpush.bf16.msra.mxu0 %v5075
    %5845 = vmatpush.bf16.msra.mxu0 %v5068
    %5846 = vmatpush.bf16.msra.mxu0 %v5061
    %5847 = vmatpush.bf16.msra.mxu0 %v5054
    %5848 = vmatpush.bf16.msra.mxu0 %v5047
    %5849 = vmatmul.bf16.gmra.mxu0 %v3711
    %v5850 = vpop.f32.mrf.mxu0
    %v5851 = vadd.f32 %v5838, %v5850
    %v5852 = vpop.f32.mrf.mxu0
    %5853 = vdwg.mxu0
    %5854 = vmatpush.bf16.msra.mxu0 %v5152
    %5855 = vmatpush.bf16.msra.mxu0 %v5145
    %5856 = vmatpush.bf16.msra.mxu0 %v5138
    %5857 = vmatpush.bf16.msra.mxu0 %v5131
    %5858 = vmatpush.bf16.msra.mxu0 %v5124
    %5859 = vmatpush.bf16.msra.mxu0 %v5117
    %5860 = vmatpush.bf16.msra.mxu0 %v5110
    %5861 = vmatpush.bf16.msra.mxu0 %v5103
    %5862 = vmatmul.bf16.gmra.mxu0 %v3712
    %v5863 = vpop.f32.mrf.mxu0
    %v5864 = vadd.f32 %v5851, %v5863
    %v5865 = vpop.f32.mrf.mxu0
    %5866 = vdwg.mxu0
    %5867 = vmatpush.bf16.msra.mxu0 %v5208
    %5868 = vmatpush.bf16.msra.mxu0 %v5201
    %5869 = vmatpush.bf16.msra.mxu0 %v5194
    %5870 = vmatpush.bf16.msra.mxu0 %v5187
    %5871 = vmatpush.bf16.msra.mxu0 %v5180
    %5872 = vmatpush.bf16.msra.mxu0 %v5173
    %5873 = vmatpush.bf16.msra.mxu0 %v5166
    %5874 = vmatpush.bf16.msra.mxu0 %v5159
    %5875 = vmatmul.bf16.gmra.mxu0 %v3713
    %v5876 = vpop.f32.mrf.mxu0
    %v5877 = vadd.f32 %v5864, %v5876
    %v5878 = vpop.f32.mrf.mxu0
    %5879 = vdwg.mxu0
    %5880 = vmatpush.bf16.msra.mxu0 %v4985
    %5881 = vmatpush.bf16.msra.mxu0 %v4978
    %5882 = vmatpush.bf16.msra.mxu0 %v4971
    %5883 = vmatpush.bf16.msra.mxu0 %v4964
    %5884 = vmatpush.bf16.msra.mxu0 %v4957
    %5885 = vmatpush.bf16.msra.mxu0 %v4950
    %5886 = vmatpush.bf16.msra.mxu0 %v4943
    %5887 = vmatpush.bf16.msra.mxu0 %v4936
    %5888 = vmatmul.bf16.gmra.mxu0 %v3709
    %v5889 = vpop.f32.mrf.mxu0
    %v5890 = vadd.f32 %v4042, %v5889
    %v5891 = vpop.f32.mrf.mxu0
    %5892 = vdwg.mxu0
    %5893 = vmatpush.bf16.msra.mxu0 %v5041
    %5894 = vmatpush.bf16.msra.mxu0 %v5034
    %5895 = vmatpush.bf16.msra.mxu0 %v5027
    %5896 = vmatpush.bf16.msra.mxu0 %v5020
    %5897 = vmatpush.bf16.msra.mxu0 %v5013
    %5898 = vmatpush.bf16.msra.mxu0 %v5006
    %5899 = vmatpush.bf16.msra.mxu0 %v4999
    %5900 = vmatpush.bf16.msra.mxu0 %v4992
    %5901 = vmatmul.bf16.gmra.mxu0 %v3710
    %v5902 = vpop.f32.mrf.mxu0
    %v5903 = vadd.f32 %v5890, %v5902
    %v5904 = vpop.f32.mrf.mxu0
    %5905 = vdwg.mxu0
    %5906 = vmatpush.bf16.msra.mxu0 %v5097
    %5907 = vmatpush.bf16.msra.mxu0 %v5090
    %5908 = vmatpush.bf16.msra.mxu0 %v5083
    %5909 = vmatpush.bf16.msra.mxu0 %v5076
    %5910 = vmatpush.bf16.msra.mxu0 %v5069
    %5911 = vmatpush.bf16.msra.mxu0 %v5062
    %5912 = vmatpush.bf16.msra.mxu0 %v5055
    %5913 = vmatpush.bf16.msra.mxu0 %v5048
    %5914 = vmatmul.bf16.gmra.mxu0 %v3711
    %v5915 = vpop.f32.mrf.mxu0
    %v5916 = vadd.f32 %v5903, %v5915
    %v5917 = vpop.f32.mrf.mxu0
    %5918 = vdwg.mxu0
    %5919 = vmatpush.bf16.msra.mxu0 %v5153
    %5920 = vmatpush.bf16.msra.mxu0 %v5146
    %5921 = vmatpush.bf16.msra.mxu0 %v5139
    %5922 = vmatpush.bf16.msra.mxu0 %v5132
    %5923 = vmatpush.bf16.msra.mxu0 %v5125
    %5924 = vmatpush.bf16.msra.mxu0 %v5118
    %5925 = vmatpush.bf16.msra.mxu0 %v5111
    %5926 = vmatpush.bf16.msra.mxu0 %v5104
    %5927 = vmatmul.bf16.gmra.mxu0 %v3712
    %v5928 = vpop.f32.mrf.mxu0
    %v5929 = vadd.f32 %v5916, %v5928
    %v5930 = vpop.f32.mrf.mxu0
    %5931 = vdwg.mxu0
    %5932 = vmatpush.bf16.msra.mxu0 %v5209
    %5933 = vmatpush.bf16.msra.mxu0 %v5202
    %5934 = vmatpush.bf16.msra.mxu0 %v5195
    %5935 = vmatpush.bf16.msra.mxu0 %v5188
    %5936 = vmatpush.bf16.msra.mxu0 %v5181
    %5937 = vmatpush.bf16.msra.mxu0 %v5174
    %5938 = vmatpush.bf16.msra.mxu0 %v5167
    %5939 = vmatpush.bf16.msra.mxu0 %v5160
    %5940 = vmatmul.bf16.gmra.mxu0 %v3713
    %v5941 = vpop.f32.mrf.mxu0
    %v5942 = vadd.f32 %v5929, %v5941
    %v5943 = vpop.f32.mrf.mxu0
    %5944 = vdwg.mxu0
    %v5945 = vmax.f32 %v5552, 0.0
    %v5946 = vmax.f32 %v5617, 0.0
    %v5947 = vmax.f32 %v5682, 0.0
    %v5948 = vmax.f32 %v5747, 0.0
    %v5949 = vmax.f32 %v5812, 0.0
    %v5950 = vmax.f32 %v5877, 0.0
    %v5951 = vmax.f32 %v5942, 0.0
    %v5952 = vpack.c.bf16 %v5945, %v5945
    %v5953 = vpack.c.bf16 %v5946, %v5946
    %v5954 = vpack.c.bf16 %v5947, %v5947
    %v5955 = vpack.c.bf16 %v5948, %v5948
    %v5956 = vpack.c.bf16 %v5949, %v5949
    %v5957 = vpack.c.bf16 %v5950, %v5950
    %v5958 = vpack.c.bf16 %v5951, %v5951
    %v5959 = vld [vmem:[#allocation17] sm:$0xf]
    %v5960 = vld [vmem:[#allocation17 + $0x4] sm:$0xf]
    %v5961 = vld [vmem:[#allocation17 + $0x8] sm:$0xf]
    %v5962 = vld [vmem:[#allocation17 + $0xc] sm:$0xf]
    %v5963 = vld [vmem:[#allocation17 + $0x10] sm:$0xf]
    %v5964 = vld [vmem:[#allocation17 + $0x14] sm:$0xf]
    %v5965 = vld [vmem:[#allocation17 + $0x18] sm:$0xf]
    %v5966 = vld [vmem:[#allocation17 + $0x1c] sm:$0xf]
    %v5967 = vld [vmem:[#allocation17 + $0x20] sm:$0xf]
    %v5968 = vld [vmem:[#allocation17 + $0x24] sm:$0xf]
    %v5969 = vld [vmem:[#allocation17 + $0x28] sm:$0xf]
    %v5970 = vld [vmem:[#allocation17 + $0x2c] sm:$0xf]
    %v5971 = vld [vmem:[#allocation17 + $0x30] sm:$0xf]
    %v5972 = vld [vmem:[#allocation17 + $0x34] sm:$0xf]
    %v5973 = vld [vmem:[#allocation17 + $0x38] sm:$0xf]
    %v5974 = vld [vmem:[#allocation17 + $0x3c] sm:$0xf]
    %v5975 = vld [vmem:[#allocation17 + $0x40] sm:$0xf]
    %v5976 = vld [vmem:[#allocation17 + $0x44] sm:$0xf]
    %v5977 = vld [vmem:[#allocation17 + $0x48] sm:$0xf]
    %v5978 = vld [vmem:[#allocation17 + $0x4c] sm:$0xf]
    %v5979 = vld [vmem:[#allocation17 + $0x50] sm:$0xf]
    %v5980 = vld [vmem:[#allocation17 + $0x54] sm:$0xf]
    %v5981 = vld [vmem:[#allocation17 + $0x58] sm:$0xf]
    %v5982 = vld [vmem:[#allocation17 + $0x5c] sm:$0xf]
    %v5983 = vld [vmem:[#allocation17 + $0x60] sm:$0xf]
    %v5984 = vld [vmem:[#allocation17 + $0x64] sm:$0xf]
    %v5985 = vld [vmem:[#allocation17 + $0x68] sm:$0xf]
    %v5986 = vld [vmem:[#allocation17 + $0x6c] sm:$0xf]
    %v5987 = vld [vmem:[#allocation17 + $0x70] sm:$0xf]
    %v5988 = vld [vmem:[#allocation17 + $0x74] sm:$0xf]
    %v5989 = vld [vmem:[#allocation17 + $0x78] sm:$0xf]
    %v5990 = vld [vmem:[#allocation17 + $0x7c] sm:$0xf]
    %v5991 = vld [vmem:[#allocation17 + $0x80] sm:$0xf]
    %v5992 = vld [vmem:[#allocation17 + $0x84] sm:$0xf]
    %v5993 = vld [vmem:[#allocation17 + $0x88] sm:$0xf]
    %v5994 = vld [vmem:[#allocation17 + $0x8c] sm:$0xf]
    %v5995 = vld [vmem:[#allocation17 + $0x90] sm:$0xf]
    %v5996 = vld [vmem:[#allocation17 + $0x94] sm:$0xf]
    %v5997 = vld [vmem:[#allocation17 + $0x98] sm:$0xf]
    %v5998 = vld [vmem:[#allocation17 + $0x9c] sm:$0xf]
    %v5999 = vld [vmem:[#allocation17 + $0xa0] sm:$0xf]
    %v6000 = vld [vmem:[#allocation17 + $0xa4] sm:$0xf]
    %v6001 = vld [vmem:[#allocation17 + $0xa8] sm:$0xf]
    %v6002 = vld [vmem:[#allocation17 + $0xac] sm:$0xf]
    %v6003 = vld [vmem:[#allocation17 + $0xb0] sm:$0xf]
    %v6004 = vld [vmem:[#allocation17 + $0xb4] sm:$0xf]
    %v6005 = vld [vmem:[#allocation17 + $0xb8] sm:$0xf]
    %v6006 = vld [vmem:[#allocation17 + $0xbc] sm:$0xf]
    %v6007 = vld [vmem:[#allocation17 + $0xc0] sm:$0xf]
    %v6008 = vld [vmem:[#allocation17 + $0xc4] sm:$0xf]
    %v6009 = vld [vmem:[#allocation17 + $0xc8] sm:$0xf]
    %v6010 = vld [vmem:[#allocation17 + $0xcc] sm:$0xf]
    %v6011 = vld [vmem:[#allocation17 + $0xd0] sm:$0xf]
    %v6012 = vld [vmem:[#allocation17 + $0xd4] sm:$0xf]
    %v6013 = vld [vmem:[#allocation17 + $0xd8] sm:$0xf]
    %v6014 = vld [vmem:[#allocation17 + $0xdc] sm:$0xf]
    %v6015 = vld [vmem:[#allocation17 + $0xe0] sm:$0xf]
    %v6016 = vld [vmem:[#allocation17 + $0xe4] sm:$0xf]
    %v6017 = vld [vmem:[#allocation17 + $0xe8] sm:$0xf]
    %v6018 = vld [vmem:[#allocation17 + $0xec] sm:$0xf]
    %v6019 = vld [vmem:[#allocation17 + $0xf0] sm:$0xf]
    %v6020 = vld [vmem:[#allocation17 + $0xf4] sm:$0xf]
    %v6021 = vld [vmem:[#allocation17 + $0xf8] sm:$0xf]
    %v6022 = vld [vmem:[#allocation17 + $0xfc] sm:$0xf]
    %v6023 = vld [vmem:[#allocation17 + $0x100] sm:$0xf]
    %v6024 = vld [vmem:[#allocation17 + $0x104] sm:$0xf]
    %v6025 = vld [vmem:[#allocation17 + $0x108] sm:$0xf]
    %v6026 = vld [vmem:[#allocation17 + $0x10c] sm:$0xf]
    %v6027 = vld [vmem:[#allocation17 + $0x110] sm:$0xf]
    %v6028 = vld [vmem:[#allocation17 + $0x114] sm:$0xf]
    %v6029 = vld [vmem:[#allocation17 + $0x118] sm:$0xf]
    %v6030 = vld [vmem:[#allocation17 + $0x11c] sm:$0xf]
    %v6031 = vld [vmem:[#allocation17 + $0x120] sm:$0xf]
    %v6032 = vld [vmem:[#allocation17 + $0x124] sm:$0xf]
    %v6033 = vld [vmem:[#allocation17 + $0x128] sm:$0xf]
    %v6034 = vld [vmem:[#allocation17 + $0x12c] sm:$0xf]
    %v6035 = vld [vmem:[#allocation17 + $0x130] sm:$0xf]
    %v6036 = vld [vmem:[#allocation17 + $0x134] sm:$0xf]
    %v6037 = vld [vmem:[#allocation17 + $0x138] sm:$0xf]
    %v6038 = vld [vmem:[#allocation17 + $0x13c] sm:$0xf]
    %v6039 = vld [vmem:[#allocation17 + $0x140] sm:$0xf]
    %v6040 = vld [vmem:[#allocation17 + $0x144] sm:$0xf]
    %v6041 = vld [vmem:[#allocation17 + $0x148] sm:$0xf]
    %v6042 = vld [vmem:[#allocation17 + $0x14c] sm:$0xf]
    %v6043 = vld [vmem:[#allocation17 + $0x150] sm:$0xf]
    %v6044 = vld [vmem:[#allocation17 + $0x154] sm:$0xf]
    %v6045 = vld [vmem:[#allocation17 + $0x158] sm:$0xf]
    %v6046 = vld [vmem:[#allocation17 + $0x15c] sm:$0xf]
    %v6047 = vld [vmem:[#allocation17 + $0x160] sm:$0xf]
    %v6048 = vld [vmem:[#allocation17 + $0x164] sm:$0xf]
    %v6049 = vld [vmem:[#allocation17 + $0x168] sm:$0xf]
    %v6050 = vld [vmem:[#allocation17 + $0x16c] sm:$0xf]
    %v6051 = vld [vmem:[#allocation17 + $0x170] sm:$0xf]
    %v6052 = vld [vmem:[#allocation17 + $0x174] sm:$0xf]
    %v6053 = vld [vmem:[#allocation17 + $0x178] sm:$0xf]
    %v6054 = vld [vmem:[#allocation17 + $0x17c] sm:$0xf]
    %v6055 = vld [vmem:[#allocation17 + $0x180] sm:$0xf]
    %v6056 = vld [vmem:[#allocation17 + $0x184] sm:$0xf]
    %v6057 = vld [vmem:[#allocation17 + $0x188] sm:$0xf]
    %v6058 = vld [vmem:[#allocation17 + $0x18c] sm:$0xf]
    %v6059 = vld [vmem:[#allocation17 + $0x190] sm:$0xf]
    %v6060 = vld [vmem:[#allocation17 + $0x194] sm:$0xf]
    %v6061 = vld [vmem:[#allocation17 + $0x198] sm:$0xf]
    %v6062 = vld [vmem:[#allocation17 + $0x19c] sm:$0xf]
    %v6063 = vld [vmem:[#allocation17 + $0x1a0] sm:$0xf]
    %v6064 = vld [vmem:[#allocation17 + $0x1a4] sm:$0xf]
    %v6065 = vld [vmem:[#allocation17 + $0x1a8] sm:$0xf]
    %v6066 = vld [vmem:[#allocation17 + $0x1ac] sm:$0xf]
    %v6067 = vld [vmem:[#allocation17 + $0x1b0] sm:$0xf]
    %v6068 = vld [vmem:[#allocation17 + $0x1b4] sm:$0xf]
    %v6069 = vld [vmem:[#allocation17 + $0x1b8] sm:$0xf]
    %v6070 = vld [vmem:[#allocation17 + $0x1bc] sm:$0xf]
    %v6071 = vld [vmem:[#allocation19] sm:$0x1]
    %v6073 = vperm.slane %v6071, 0
    %v6187 = vunpack.c.l.b16 %v5959
    %v6188 = vunpack.c.l.b16 %v5960
    %v6189 = vunpack.c.l.b16 %v5961
    %v6190 = vunpack.c.l.b16 %v5962
    %v6191 = vunpack.c.l.b16 %v5963
    %v6192 = vunpack.c.l.b16 %v5964
    %v6193 = vunpack.c.l.b16 %v5965
    %v6194 = vunpack.c.l.b16 %v5966
    %v6195 = vunpack.c.l.b16 %v5967
    %v6196 = vunpack.c.l.b16 %v5968
    %v6197 = vunpack.c.l.b16 %v5969
    %v6198 = vunpack.c.l.b16 %v5970
    %v6199 = vunpack.c.l.b16 %v5971
    %v6200 = vunpack.c.l.b16 %v5972
    %v6201 = vunpack.c.l.b16 %v5973
    %v6202 = vunpack.c.l.b16 %v5974
    %v6203 = vunpack.c.l.b16 %v5975
    %v6204 = vunpack.c.l.b16 %v5976
    %v6205 = vunpack.c.l.b16 %v5977
    %v6206 = vunpack.c.l.b16 %v5978
    %v6207 = vunpack.c.l.b16 %v5979
    %v6208 = vunpack.c.l.b16 %v5980
    %v6209 = vunpack.c.l.b16 %v5981
    %v6210 = vunpack.c.l.b16 %v5982
    %v6211 = vunpack.c.l.b16 %v5983
    %v6212 = vunpack.c.l.b16 %v5984
    %v6213 = vunpack.c.l.b16 %v5985
    %v6214 = vunpack.c.l.b16 %v5986
    %v6215 = vunpack.c.l.b16 %v5987
    %v6216 = vunpack.c.l.b16 %v5988
    %v6217 = vunpack.c.l.b16 %v5989
    %v6218 = vunpack.c.l.b16 %v5990
    %v6219 = vunpack.c.l.b16 %v5991
    %v6220 = vunpack.c.l.b16 %v5992
    %v6221 = vunpack.c.l.b16 %v5993
    %v6222 = vunpack.c.l.b16 %v5994
    %v6223 = vunpack.c.l.b16 %v5995
    %v6224 = vunpack.c.l.b16 %v5996
    %v6225 = vunpack.c.l.b16 %v5997
    %v6226 = vunpack.c.l.b16 %v5998
    %v6227 = vunpack.c.l.b16 %v5999
    %v6228 = vunpack.c.l.b16 %v6000
    %v6229 = vunpack.c.l.b16 %v6001
    %v6230 = vunpack.c.l.b16 %v6002
    %v6231 = vunpack.c.l.b16 %v6003
    %v6232 = vunpack.c.l.b16 %v6004
    %v6233 = vunpack.c.l.b16 %v6005
    %v6234 = vunpack.c.l.b16 %v6006
    %v6235 = vunpack.c.l.b16 %v6007
    %v6236 = vunpack.c.l.b16 %v6008
    %v6237 = vunpack.c.l.b16 %v6009
    %v6238 = vunpack.c.l.b16 %v6010
    %v6239 = vunpack.c.l.b16 %v6011
    %v6240 = vunpack.c.l.b16 %v6012
    %v6241 = vunpack.c.l.b16 %v6013
    %v6242 = vunpack.c.l.b16 %v6014
    %v6243 = vunpack.c.l.b16 %v6015
    %v6244 = vunpack.c.l.b16 %v6016
    %v6245 = vunpack.c.l.b16 %v6017
    %v6246 = vunpack.c.l.b16 %v6018
    %v6247 = vunpack.c.l.b16 %v6019
    %v6248 = vunpack.c.l.b16 %v6020
    %v6249 = vunpack.c.l.b16 %v6021
    %v6250 = vunpack.c.l.b16 %v6022
    %v6251 = vunpack.c.l.b16 %v6023
    %v6252 = vunpack.c.l.b16 %v6024
    %v6253 = vunpack.c.l.b16 %v6025
    %v6254 = vunpack.c.l.b16 %v6026
    %v6255 = vunpack.c.l.b16 %v6027
    %v6256 = vunpack.c.l.b16 %v6028
    %v6257 = vunpack.c.l.b16 %v6029
    %v6258 = vunpack.c.l.b16 %v6030
    %v6259 = vunpack.c.l.b16 %v6031
    %v6260 = vunpack.c.l.b16 %v6032
    %v6261 = vunpack.c.l.b16 %v6033
    %v6262 = vunpack.c.l.b16 %v6034
    %v6263 = vunpack.c.l.b16 %v6035
    %v6264 = vunpack.c.l.b16 %v6036
    %v6265 = vunpack.c.l.b16 %v6037
    %v6266 = vunpack.c.l.b16 %v6038
    %v6267 = vunpack.c.l.b16 %v6039
    %v6268 = vunpack.c.l.b16 %v6040
    %v6269 = vunpack.c.l.b16 %v6041
    %v6270 = vunpack.c.l.b16 %v6042
    %v6271 = vunpack.c.l.b16 %v6043
    %v6272 = vunpack.c.l.b16 %v6044
    %v6273 = vunpack.c.l.b16 %v6045
    %v6274 = vunpack.c.l.b16 %v6046
    %v6275 = vunpack.c.l.b16 %v6047
    %v6276 = vunpack.c.l.b16 %v6048
    %v6277 = vunpack.c.l.b16 %v6049
    %v6278 = vunpack.c.l.b16 %v6050
    %v6279 = vunpack.c.l.b16 %v6051
    %v6280 = vunpack.c.l.b16 %v6052
    %v6281 = vunpack.c.l.b16 %v6053
    %v6282 = vunpack.c.l.b16 %v6054
    %v6283 = vunpack.c.l.b16 %v6055
    %v6284 = vunpack.c.l.b16 %v6056
    %v6285 = vunpack.c.l.b16 %v6057
    %v6286 = vunpack.c.l.b16 %v6058
    %v6287 = vunpack.c.l.b16 %v6059
    %v6288 = vunpack.c.l.b16 %v6060
    %v6289 = vunpack.c.l.b16 %v6061
    %v6290 = vunpack.c.l.b16 %v6062
    %v6291 = vunpack.c.l.b16 %v6063
    %v6292 = vunpack.c.l.b16 %v6064
    %v6293 = vunpack.c.l.b16 %v6065
    %v6294 = vunpack.c.l.b16 %v6066
    %v6295 = vunpack.c.l.b16 %v6067
    %v6296 = vunpack.c.l.b16 %v6068
    %v6297 = vunpack.c.l.b16 %v6069
    %v6298 = vunpack.c.l.b16 %v6070
    %v6299 = vpack.c.b16 %v6188, %v6187
    %v6300 = vpack.c.b16 %v6190, %v6189
    %v6301 = vpack.c.b16 %v6192, %v6191
    %v6302 = vpack.c.b16 %v6194, %v6193
    %v6303 = vpack.c.b16 %v6196, %v6195
    %v6304 = vpack.c.b16 %v6198, %v6197
    %v6305 = vpack.c.b16 %v6200, %v6199
    %v6306 = vpack.c.b16 %v6202, %v6201
    %v6307 = vpack.c.b16 %v6204, %v6203
    %v6308 = vpack.c.b16 %v6206, %v6205
    %v6309 = vpack.c.b16 %v6208, %v6207
    %v6310 = vpack.c.b16 %v6210, %v6209
    %v6311 = vpack.c.b16 %v6212, %v6211
    %v6312 = vpack.c.b16 %v6214, %v6213
    %v6313 = vpack.c.b16 %v6216, %v6215
    %v6314 = vpack.c.b16 %v6218, %v6217
    %v6315 = vpack.c.b16 %v6220, %v6219
    %v6316 = vpack.c.b16 %v6222, %v6221
    %v6317 = vpack.c.b16 %v6224, %v6223
    %v6318 = vpack.c.b16 %v6226, %v6225
    %v6319 = vpack.c.b16 %v6228, %v6227
    %v6320 = vpack.c.b16 %v6230, %v6229
    %v6321 = vpack.c.b16 %v6232, %v6231
    %v6322 = vpack.c.b16 %v6234, %v6233
    %v6323 = vpack.c.b16 %v6236, %v6235
    %v6324 = vpack.c.b16 %v6238, %v6237
    %v6325 = vpack.c.b16 %v6240, %v6239
    %v6326 = vpack.c.b16 %v6242, %v6241
    %v6327 = vpack.c.b16 %v6244, %v6243
    %v6328 = vpack.c.b16 %v6246, %v6245
    %v6329 = vpack.c.b16 %v6248, %v6247
    %v6330 = vpack.c.b16 %v6250, %v6249
    %v6331 = vpack.c.b16 %v6252, %v6251
    %v6332 = vpack.c.b16 %v6254, %v6253
    %v6333 = vpack.c.b16 %v6256, %v6255
    %v6334 = vpack.c.b16 %v6258, %v6257
    %v6335 = vpack.c.b16 %v6260, %v6259
    %v6336 = vpack.c.b16 %v6262, %v6261
    %v6337 = vpack.c.b16 %v6264, %v6263
    %v6338 = vpack.c.b16 %v6266, %v6265
    %v6339 = vpack.c.b16 %v6268, %v6267
    %v6340 = vpack.c.b16 %v6270, %v6269
    %v6341 = vpack.c.b16 %v6272, %v6271
    %v6342 = vpack.c.b16 %v6274, %v6273
    %v6343 = vpack.c.b16 %v6276, %v6275
    %v6344 = vpack.c.b16 %v6278, %v6277
    %v6345 = vpack.c.b16 %v6280, %v6279
    %v6346 = vpack.c.b16 %v6282, %v6281
    %v6347 = vpack.c.b16 %v6284, %v6283
    %v6348 = vpack.c.b16 %v6286, %v6285
    %v6349 = vpack.c.b16 %v6288, %v6287
    %v6350 = vpack.c.b16 %v6290, %v6289
    %v6351 = vpack.c.b16 %v6292, %v6291
    %v6352 = vpack.c.b16 %v6294, %v6293
    %v6353 = vpack.c.b16 %v6296, %v6295
    %v6354 = vpack.c.b16 %v6298, %v6297
    %6411 = vmatpush.bf16.msra.mxu0 %v6306
    %6412 = vmatpush.bf16.msra.mxu0 %v6305
    %6413 = vmatpush.bf16.msra.mxu0 %v6304
    %6414 = vmatpush.bf16.msra.mxu0 %v6303
    %6415 = vmatpush.bf16.msra.mxu0 %v6302
    %6416 = vmatpush.bf16.msra.mxu0 %v6301
    %6417 = vmatpush.bf16.msra.mxu0 %v6300
    %6418 = vmatpush.bf16.msra.mxu0 %v6299
    %6419 = vmatmul.bf16.gmra.mxu0 %v5952
    %v6420 = vpop.f32.mrf.mxu0
    %v6421 = vadd.f32 %v6073, %v6420
    %v6422 = vpop.f32.mrf.mxu0
    %6423 = vdwg.mxu0
    %6424 = vmatpush.bf16.msra.mxu0 %v6314
    %6425 = vmatpush.bf16.msra.mxu0 %v6313
    %6426 = vmatpush.bf16.msra.mxu0 %v6312
    %6427 = vmatpush.bf16.msra.mxu0 %v6311
    %6428 = vmatpush.bf16.msra.mxu0 %v6310
    %6429 = vmatpush.bf16.msra.mxu0 %v6309
    %6430 = vmatpush.bf16.msra.mxu0 %v6308
    %6431 = vmatpush.bf16.msra.mxu0 %v6307
    %6432 = vmatmul.bf16.gmra.mxu0 %v5953
    %v6433 = vpop.f32.mrf.mxu0
    %v6434 = vadd.f32 %v6421, %v6433
    %v6435 = vpop.f32.mrf.mxu0
    %6436 = vdwg.mxu0
    %6437 = vmatpush.bf16.msra.mxu0 %v6322
    %6438 = vmatpush.bf16.msra.mxu0 %v6321
    %6439 = vmatpush.bf16.msra.mxu0 %v6320
    %6440 = vmatpush.bf16.msra.mxu0 %v6319
    %6441 = vmatpush.bf16.msra.mxu0 %v6318
    %6442 = vmatpush.bf16.msra.mxu0 %v6317
    %6443 = vmatpush.bf16.msra.mxu0 %v6316
    %6444 = vmatpush.bf16.msra.mxu0 %v6315
    %6445 = vmatmul.bf16.gmra.mxu0 %v5954
    %v6446 = vpop.f32.mrf.mxu0
    %v6447 = vadd.f32 %v6434, %v6446
    %v6448 = vpop.f32.mrf.mxu0
    %6449 = vdwg.mxu0
    %6450 = vmatpush.bf16.msra.mxu0 %v6330
    %6451 = vmatpush.bf16.msra.mxu0 %v6329
    %6452 = vmatpush.bf16.msra.mxu0 %v6328
    %6453 = vmatpush.bf16.msra.mxu0 %v6327
    %6454 = vmatpush.bf16.msra.mxu0 %v6326
    %6455 = vmatpush.bf16.msra.mxu0 %v6325
    %6456 = vmatpush.bf16.msra.mxu0 %v6324
    %6457 = vmatpush.bf16.msra.mxu0 %v6323
    %6458 = vmatmul.bf16.gmra.mxu0 %v5955
    %v6459 = vpop.f32.mrf.mxu0
    %v6460 = vadd.f32 %v6447, %v6459
    %v6461 = vpop.f32.mrf.mxu0
    %6462 = vdwg.mxu0
    %6463 = vmatpush.bf16.msra.mxu0 %v6338
    %6464 = vmatpush.bf16.msra.mxu0 %v6337
    %6465 = vmatpush.bf16.msra.mxu0 %v6336
    %6466 = vmatpush.bf16.msra.mxu0 %v6335
    %6467 = vmatpush.bf16.msra.mxu0 %v6334
    %6468 = vmatpush.bf16.msra.mxu0 %v6333
    %6469 = vmatpush.bf16.msra.mxu0 %v6332
    %6470 = vmatpush.bf16.msra.mxu0 %v6331
    %6471 = vmatmul.bf16.gmra.mxu0 %v5956
    %v6472 = vpop.f32.mrf.mxu0
    %v6473 = vadd.f32 %v6460, %v6472
    %v6474 = vpop.f32.mrf.mxu0
    %6475 = vdwg.mxu0
    %6476 = vmatpush.bf16.msra.mxu0 %v6346
    %6477 = vmatpush.bf16.msra.mxu0 %v6345
    %6478 = vmatpush.bf16.msra.mxu0 %v6344
    %6479 = vmatpush.bf16.msra.mxu0 %v6343
    %6480 = vmatpush.bf16.msra.mxu0 %v6342
    %6481 = vmatpush.bf16.msra.mxu0 %v6341
    %6482 = vmatpush.bf16.msra.mxu0 %v6340
    %6483 = vmatpush.bf16.msra.mxu0 %v6339
    %6484 = vmatmul.bf16.gmra.mxu0 %v5957
    %v6485 = vpop.f32.mrf.mxu0
    %v6486 = vadd.f32 %v6473, %v6485
    %v6487 = vpop.f32.mrf.mxu0
    %6488 = vdwg.mxu0
    %6489 = vmatpush.bf16.msra.mxu0 %v6354
    %6490 = vmatpush.bf16.msra.mxu0 %v6353
    %6491 = vmatpush.bf16.msra.mxu0 %v6352
    %6492 = vmatpush.bf16.msra.mxu0 %v6351
    %6493 = vmatpush.bf16.msra.mxu0 %v6350
    %6494 = vmatpush.bf16.msra.mxu0 %v6349
    %6495 = vmatpush.bf16.msra.mxu0 %v6348
    %6496 = vmatpush.bf16.msra.mxu0 %v6347
    %6497 = vmatmul.bf16.gmra.mxu0 %v5958
    %v6498 = vpop.f32.mrf.mxu0
    %v6499 = vadd.f32 %v6486, %v6498
    %v6500 = vpop.f32.mrf.mxu0
    %6501 = vdwg.mxu0
    %6502 = vst [vmem:[#allocation20] sm:$0x3] %v6499
    // Predicated region
    $region90: #{tpu_custom_call.1} parent=1 // pred_check
      _
    $region91: #{tpu_custom_call.1} parent=1 // pred_check_branch
      %6504 = sbr.rel (0) target = $region93
    $region92: #{tpu_custom_call.1} parent=1 // pred_region
      %6506 = vsyncadd [#allocation4], 0
      %s6508 = sshll.u32 [#allocation20], 4
      %s6509 = int_to_ptr.vmem [resolvable:$true] %s6508
      %s6510 = sshll.u32 %s11, 4
      %s6511 = int_to_ptr.hbm [resolvable:$true] %s6510
      %6513 = dma.vmem_to_hbm [thread:$0]  %s6509, 32, %s6511, [#allocation4]
    $region93: #{tpu_custom_call.1} parent=1 // pred_fallthru
      _
    // Predicated region
    $region94: #{tpu_custom_call.1} parent=1 // pred_check
      _
    $region95: #{tpu_custom_call.1} parent=1 // pred_check_branch
      %6515 = sbr.rel (0) target = $region97
    $region96: #{tpu_custom_call.1} parent=1 // pred_region
      %6517 = dma.done [#allocation4], 32
    $region97: #{tpu_custom_call.1} parent=1 // pred_fallthru
      _
    %6518 = vsyncpa [#allocation3], 1
    %6519 = vsyncpa [#allocation6], 1
    %6520 = vsyncpa [#allocation9], 1
    %6521 = vsyncpa [#allocation12], 1
    %6522 = vsyncpa [#allocation15], 1
    %6523 = vsyncpa [#allocation18], 1
    %6524 = vsyncpa [#allocation4], 1

</llo_original>
